<compile_context>
chip_gen: v7x
topology: tpu7x:2x2x1
jax: 0.10.0
libtpu: 0.0.40
codegen_flags: <defaults>
</compile_context>

<pallas_src>
import functools

import jax
import jax.numpy as jnp
from jax.experimental import pallas as pl
from jax.experimental.pallas import tpu as pltpu


# ----------------------------- Pallas kernel --------------------------------

def _fused_head_kernel(x_ref, w1_ref, b1_ref, w2_ref, b2_ref, o_ref, *,
                       TH, W, Cin, num_classes):
    """One (batch, row-tile) step of the fused CenterNetHead.

    x_ref : (1, H+2, W+2, Cin) bf16  zero-padded NHWC input (full image)
    w1_ref: (9, Cin, 3*Cf)     bf16  fused 3x3 conv weights (tap-major)
    b1_ref: (1, 3*Cf)          f32
    w2_ref: (3*Cf, Cout)       bf16  block-diagonal fused 1x1 conv weights
    b2_ref: (1, Cout)          f32
    o_ref : (1, TH*W, Cout)    f32   fused output [heatmap | wh | offset]
    """
    r = pl.program_id(1)
    row0 = pl.multiple_of(r * TH, TH)
    xt = x_ref[0, pl.ds(row0, TH + 2), :, :]          # (TH+2, W+2, Cin) bf16

    # 3x3 conv as K-accumulation over the 9 taps; patch rows are built in
    # VMEM from shifted slices (no im2col tensor ever written to HBM).
    cf3 = w1_ref.shape[-1]
    acc = jnp.zeros((TH * W, cf3), jnp.float32)
    t = 0
    for dy in range(3):
        for dx in range(3):
            a_t = xt[dy:dy + TH, dx:dx + W, :].reshape(TH * W, Cin)
            acc = acc + jnp.dot(a_t, w1_ref[t],
                                preferred_element_type=jnp.float32)
            t += 1

    # bias + ReLU, cast to bf16 for the second MXU pass
    h = jnp.maximum(acc + b1_ref[...], 0.0).astype(jnp.bfloat16)

    # fused 1x1 convs of all three heads (block-diagonal weight)
    y = jnp.dot(h, w2_ref[...], preferred_element_type=jnp.float32) + b2_ref[...]

    # sigmoid only on the heatmap channels (first num_classes lanes)
    col = jax.lax.broadcasted_iota(jnp.int32, y.shape, 1)
    y = jnp.where(col < num_classes, jax.nn.sigmoid(y), y)

    o_ref[0] = y.astype(o_ref.dtype)


# --------------------------- parameter handling ------------------------------

def _pick_row_tile(H, W, max_rows=512):
    """Largest row tile TH dividing H with TH*W <= max_rows (and 8-aligned)."""
    for th in range(H, 0, -1):
        if H % th:
            continue
        rows = th * W
        if rows <= max_rows and (th == H or rows % 8 == 0):
            return th
    return H


def init_centernet_head_params(in_channel, feat_channel, num_classes, seed=0):
    """Deterministic synthetic init (shapes match nn.Conv2d of the spec).

    Raw PyTorch-layout params are kept for the reference check; the fused,
    transposed, bf16 weights used by the kernel are precomputed here (once).
    """
    # TODO(synk): PyTorch's default kaiming-uniform Conv2d init is not
    # replicated; deterministic Gaussian init with matching shapes is used.
    key = jax.random.PRNGKey(seed)
    out_chs = [num_classes, 2, 2]            # heatmap, wh, offset
    keys = jax.random.split(key, 4 * len(out_chs))

    raw = []
    ki = 0
    for oc in out_chs:
        w1 = 0.05 * jax.random.normal(keys[ki], (feat_channel, in_channel, 3, 3),
                                      jnp.float32); ki += 1
        b1 = 0.10 * jax.random.normal(keys[ki], (feat_channel,), jnp.float32); ki += 1
        w2 = 0.05 * jax.random.normal(keys[ki], (oc, feat_channel, 1, 1),
                                      jnp.float32); ki += 1
        b2 = 0.10 * jax.random.normal(keys[ki], (oc,), jnp.float32); ki += 1
        raw.append((w1, b1, w2, b2))

    # ---- fuse the three heads ----
    cf = feat_channel
    cout = sum(out_chs)

    # 3x3 stage: concat output channels -> (3,3,Cin,3*Cf) -> (9, Cin, 3*Cf)
    w1f = jnp.concatenate(
        [jnp.transpose(w1, (2, 3, 1, 0)) for (w1, _, _, _) in raw], axis=-1
    ).reshape(9, in_channel, 3 * cf)
    b1f = jnp.concatenate([b1 for (_, b1, _, _) in raw])[None, :]

    # 1x1 stage: block-diagonal (3*Cf, Cout), per-head column blocks
    w2f = jnp.zeros((3 * cf, cout), jnp.float32)
    b2f = jnp.zeros((cout,), jnp.float32)
    off = 0
    for hidx, ((_, _, w2, b2), oc) in enumerate(zip(raw, out_chs)):
        w2m = jnp.transpose(w2.reshape(oc, cf), (1, 0))          # (Cf, oc)
        w2f = w2f.at[hidx * cf:(hidx + 1) * cf, off:off + oc].set(w2m)
        b2f = b2f.at[off:off + oc].set(b2)
        off += oc

    fused = {
        "w1": w1f.astype(jnp.bfloat16),
        "b1": b1f.astype(jnp.float32),
        "w2": w2f.astype(jnp.bfloat16),
        "b2": b2f[None, :].astype(jnp.float32),
    }
    return {
        "raw": raw,
        "fused": fused,
        "num_classes": num_classes,
        "feat_channel": feat_channel,
        "in_channel": in_channel,
    }


# ------------------------------- forward pass --------------------------------

def centernet_head_forward(params, feat_nchw):
    """CenterNetHead.forward: NCHW feat -> (heatmap, wh, offset), all NCHW."""
    fused = params["fused"]
    num_classes = params["num_classes"]

    N, Cin, H, W = feat_nchw.shape
    cf3 = fused["w1"].shape[-1]
    cout = fused["w2"].shape[-1]

    # NHWC, zero-pad spatially by 1 (conv padding), bf16 MXU operands.
    x = jnp.transpose(feat_nchw, (0, 2, 3, 1)).astype(jnp.float32)
    x_pad = jnp.pad(x, ((0, 0), (1, 1), (1, 1), (0, 0))).astype(jnp.bfloat16)

    TH = _pick_row_tile(H, W)
    R = H // TH

    kernel = functools.partial(_fused_head_kernel,
                               TH=TH, W=W, Cin=Cin, num_classes=num_classes)

    out = pl.pallas_call(
        kernel,
        out_shape=jax.ShapeDtypeStruct((N, H * W, cout), jnp.float32),
        grid=(N, R),
        in_specs=[
            # full padded image per batch element (re-used across row tiles)
            pl.BlockSpec((1, H + 2, W + 2, Cin), lambda n, r: (n, 0, 0, 0)),
            pl.BlockSpec((9, Cin, cf3), lambda n, r: (0, 0, 0)),
            pl.BlockSpec((1, cf3), lambda n, r: (0, 0)),
            pl.BlockSpec((cf3, cout), lambda n, r: (0, 0)),
            pl.BlockSpec((1, cout), lambda n, r: (0, 0)),
        ],
        out_specs=pl.BlockSpec((1, TH * W, cout), lambda n, r: (n, r, 0)),
        compiler_params=pltpu.CompilerParams(
            dimension_semantics=("parallel", "parallel"),
            vmem_limit_bytes=40 * 1024 * 1024,   # safe on v7x (64 MiB VMEM/TC)
        ),
    )(x_pad, fused["w1"], fused["b1"], fused["w2"], fused["b2"])

    out = out.reshape(N, H, W, cout)
    out = jnp.transpose(out, (0, 3, 1, 2))                       # -> NCHW
    heatmap = out[:, :num_classes]
    wh = out[:, num_classes:num_classes + 2]
    offset = out[:, num_classes + 2:]
    return heatmap, wh, offset


# ------------------------- pure-JAX reference (check) ------------------------

def _reference_forward(params, feat_nchw):
    num_classes = params["num_classes"]
    x = jnp.transpose(feat_nchw, (0, 2, 3, 1)).astype(jnp.bfloat16)
    outs = []
    for (w1, b1, w2, b2) in params["raw"]:
        k1 = jnp.transpose(w1, (2, 3, 1, 0)).astype(jnp.bfloat16)   # HWIO
        y = jax.lax.conv_general_dilated(
            x, k1, window_strides=(1, 1), padding=((1, 1), (1, 1)),
            dimension_numbers=("NHWC", "HWIO", "NHWC"),
            preferred_element_type=jnp.float32)
        y = jnp.maximum(y + b1[None, None, None, :], 0.0).astype(jnp.bfloat16)
        k2 = jnp.transpose(w2, (2, 3, 1, 0)).astype(jnp.bfloat16)
        y = jax.lax.conv_general_dilated(
            y, k2, window_strides=(1, 1), padding=((0, 0), (0, 0)),
            dimension_numbers=("NHWC", "HWIO", "NHWC"),
            preferred_element_type=jnp.float32)
        y = y + b2[None, None, None, :]
        outs.append(jnp.transpose(y, (0, 3, 1, 2)))
    hm, wh, off = outs
    return jax.nn.sigmoid(hm), wh, off


# ------------------------------------ main ------------------------------------

if __name__ == "__main__":
    in_channel, feat_channel, num_classes = 32, 32, 4
    N, H, W = 2, 16, 16

    key = jax.random.PRNGKey(0)
    feat = jax.random.normal(key, (N, in_channel, H, W), jnp.float32)
    params = init_centernet_head_params(in_channel, feat_channel, num_classes,
                                        seed=0)

    fwd = jax.jit(functools.partial(centernet_head_forward, params))
    heatmap, wh, offset = fwd(feat)
    jax.block_until_ready((heatmap, wh, offset))

    assert heatmap.shape == (N, num_classes, H, W), heatmap.shape
    assert wh.shape == (N, 2, H, W), wh.shape
    assert offset.shape == (N, 2, H, W), offset.shape
    assert bool(jnp.all(jnp.isfinite(heatmap)))
    assert bool(jnp.all(jnp.isfinite(wh)))
    assert bool(jnp.all(jnp.isfinite(offset)))

    hm_r, wh_r, off_r = _reference_forward(params, feat)
    assert bool(jnp.allclose(heatmap, hm_r, atol=2e-2, rtol=2e-2))
    assert bool(jnp.allclose(wh, wh_r, atol=2e-2, rtol=2e-2))
    assert bool(jnp.allclose(offset, off_r, atol=2e-2, rtol=2e-2))

    print("KERNEL_OK")
</pallas_src>

<mosaic_0001>
module attributes {stable_mosaic.version = 11 : i64} {
  func.func @_fused_head_kernel(%arg0: i32, %arg1: i32, %arg2: memref<1x18x18x32xbf16, #tpu.memory_space<vmem>>, %arg3: memref<9x32x96xbf16, #tpu.memory_space<vmem>>, %arg4: memref<1x96xf32, #tpu.memory_space<vmem>>, %arg5: memref<96x8xbf16, #tpu.memory_space<vmem>>, %arg6: memref<1x8xf32, #tpu.memory_space<vmem>>, %arg7: memref<1x256x8xf32, #tpu.memory_space<vmem>>) attributes {dimension_semantics = [#tpu.dimension_semantics<parallel>, #tpu.dimension_semantics<parallel>], iteration_bounds = array<i64: 2, 1>, scalar_prefetch = 0 : i64, scratch_operands = 0 : i64, tpu.core_type = #tpu.core_type<tc>, window_params = [{transform_indices = @transform_0, window_bounds = array<i64: 1, 18, 18, 32>}, {pipeline_mode = #tpu.pipeline_mode<synchronous>, transform_indices = @transform_1, window_bounds = array<i64: 9, 32, 96>}, {pipeline_mode = #tpu.pipeline_mode<synchronous>, transform_indices = @transform_2, window_bounds = array<i64: 1, 96>}, {pipeline_mode = #tpu.pipeline_mode<synchronous>, transform_indices = @transform_3, window_bounds = array<i64: 96, 8>}, {pipeline_mode = #tpu.pipeline_mode<synchronous>, transform_indices = @transform_4, window_bounds = array<i64: 1, 8>}, {transform_indices = @transform_5, window_bounds = array<i64: 1, 256, 8>}]} {
    %c16_i32 = arith.constant 16 : i32
    %0 = arith.muli %arg1, %c16_i32 : i32
    %1 = tpu.assume_multiple %0, 16 : i32
    %c0 = arith.constant 0 : index
    %2 = arith.index_cast %1 : i32 to index
    %c0_0 = arith.constant 0 : index
    %c0_1 = arith.constant 0 : index
    %3 = vector.load %arg2[%c0, %2, %c0_0, %c0_1] : memref<1x18x18x32xbf16, #tpu.memory_space<vmem>>, vector<1x18x18x32xbf16>
    %4 = vector.shape_cast %3 : vector<1x18x18x32xbf16> to vector<18x18x32xbf16>
    %cst = arith.constant 0.000000e+00 : f32
    %5 = vector.broadcast %cst : f32 to vector<256x96xf32>
    %6 = vector.extract_strided_slice %4 {offsets = [0, 0, 0], sizes = [16, 16, 32], strides = [1, 1, 1]} : vector<18x18x32xbf16> to vector<16x16x32xbf16>
    %7 = vector.shape_cast %6 : vector<16x16x32xbf16> to vector<256x32xbf16>
    %c0_2 = arith.constant 0 : index
    %c0_3 = arith.constant 0 : index
    %c0_4 = arith.constant 0 : index
    %8 = vector.load %arg3[%c0_2, %c0_3, %c0_4] : memref<9x32x96xbf16, #tpu.memory_space<vmem>>, vector<1x32x96xbf16>
    %9 = vector.shape_cast %8 : vector<1x32x96xbf16> to vector<32x96xbf16>
    %cst_5 = arith.constant dense<0.000000e+00> : vector<256x96xf32>
    %10 = tpu.matmul %7, %9, %cst_5 {dimension_numbers = #tpu.dot_dimension_numbers<[1], [0], [0], [1], [0, 0, 1, 1], [], []>} : vector<256x32xbf16>, vector<32x96xbf16>, vector<256x96xf32> -> vector<256x96xf32>
    %11 = arith.addf %5, %10 : vector<256x96xf32>
    %12 = vector.extract_strided_slice %4 {offsets = [0, 1, 0], sizes = [16, 16, 32], strides = [1, 1, 1]} : vector<18x18x32xbf16> to vector<16x16x32xbf16>
    %13 = vector.shape_cast %12 : vector<16x16x32xbf16> to vector<256x32xbf16>
    %c1 = arith.constant 1 : index
    %c0_6 = arith.constant 0 : index
    %c0_7 = arith.constant 0 : index
    %14 = vector.load %arg3[%c1, %c0_6, %c0_7] : memref<9x32x96xbf16, #tpu.memory_space<vmem>>, vector<1x32x96xbf16>
    %15 = vector.shape_cast %14 : vector<1x32x96xbf16> to vector<32x96xbf16>
    %cst_8 = arith.constant dense<0.000000e+00> : vector<256x96xf32>
    %16 = tpu.matmul %13, %15, %cst_8 {dimension_numbers = #tpu.dot_dimension_numbers<[1], [0], [0], [1], [0, 0, 1, 1], [], []>} : vector<256x32xbf16>, vector<32x96xbf16>, vector<256x96xf32> -> vector<256x96xf32>
    %17 = arith.addf %11, %16 : vector<256x96xf32>
    %18 = vector.extract_strided_slice %4 {offsets = [0, 2, 0], sizes = [16, 16, 32], strides = [1, 1, 1]} : vector<18x18x32xbf16> to vector<16x16x32xbf16>
    %19 = vector.shape_cast %18 : vector<16x16x32xbf16> to vector<256x32xbf16>
    %c2 = arith.constant 2 : index
    %c0_9 = arith.constant 0 : index
    %c0_10 = arith.constant 0 : index
    %20 = vector.load %arg3[%c2, %c0_9, %c0_10] : memref<9x32x96xbf16, #tpu.memory_space<vmem>>, vector<1x32x96xbf16>
    %21 = vector.shape_cast %20 : vector<1x32x96xbf16> to vector<32x96xbf16>
    %cst_11 = arith.constant dense<0.000000e+00> : vector<256x96xf32>
    %22 = tpu.matmul %19, %21, %cst_11 {dimension_numbers = #tpu.dot_dimension_numbers<[1], [0], [0], [1], [0, 0, 1, 1], [], []>} : vector<256x32xbf16>, vector<32x96xbf16>, vector<256x96xf32> -> vector<256x96xf32>
    %23 = arith.addf %17, %22 : vector<256x96xf32>
    %24 = vector.extract_strided_slice %4 {offsets = [1, 0, 0], sizes = [16, 16, 32], strides = [1, 1, 1]} : vector<18x18x32xbf16> to vector<16x16x32xbf16>
    %25 = vector.shape_cast %24 : vector<16x16x32xbf16> to vector<256x32xbf16>
    %c3 = arith.constant 3 : index
    %c0_12 = arith.constant 0 : index
    %c0_13 = arith.constant 0 : index
    %26 = vector.load %arg3[%c3, %c0_12, %c0_13] : memref<9x32x96xbf16, #tpu.memory_space<vmem>>, vector<1x32x96xbf16>
    %27 = vector.shape_cast %26 : vector<1x32x96xbf16> to vector<32x96xbf16>
    %cst_14 = arith.constant dense<0.000000e+00> : vector<256x96xf32>
    %28 = tpu.matmul %25, %27, %cst_14 {dimension_numbers = #tpu.dot_dimension_numbers<[1], [0], [0], [1], [0, 0, 1, 1], [], []>} : vector<256x32xbf16>, vector<32x96xbf16>, vector<256x96xf32> -> vector<256x96xf32>
    %29 = arith.addf %23, %28 : vector<256x96xf32>
    %30 = vector.extract_strided_slice %4 {offsets = [1, 1, 0], sizes = [16, 16, 32], strides = [1, 1, 1]} : vector<18x18x32xbf16> to vector<16x16x32xbf16>
    %31 = vector.shape_cast %30 : vector<16x16x32xbf16> to vector<256x32xbf16>
    %c4 = arith.constant 4 : index
    %c0_15 = arith.constant 0 : index
    %c0_16 = arith.constant 0 : index
    %32 = vector.load %arg3[%c4, %c0_15, %c0_16] : memref<9x32x96xbf16, #tpu.memory_space<vmem>>, vector<1x32x96xbf16>
    %33 = vector.shape_cast %32 : vector<1x32x96xbf16> to vector<32x96xbf16>
    %cst_17 = arith.constant dense<0.000000e+00> : vector<256x96xf32>
    %34 = tpu.matmul %31, %33, %cst_17 {dimension_numbers = #tpu.dot_dimension_numbers<[1], [0], [0], [1], [0, 0, 1, 1], [], []>} : vector<256x32xbf16>, vector<32x96xbf16>, vector<256x96xf32> -> vector<256x96xf32>
    %35 = arith.addf %29, %34 : vector<256x96xf32>
    %36 = vector.extract_strided_slice %4 {offsets = [1, 2, 0], sizes = [16, 16, 32], strides = [1, 1, 1]} : vector<18x18x32xbf16> to vector<16x16x32xbf16>
    %37 = vector.shape_cast %36 : vector<16x16x32xbf16> to vector<256x32xbf16>
    %c5 = arith.constant 5 : index
    %c0_18 = arith.constant 0 : index
    %c0_19 = arith.constant 0 : index
    %38 = vector.load %arg3[%c5, %c0_18, %c0_19] : memref<9x32x96xbf16, #tpu.memory_space<vmem>>, vector<1x32x96xbf16>
    %39 = vector.shape_cast %38 : vector<1x32x96xbf16> to vector<32x96xbf16>
    %cst_20 = arith.constant dense<0.000000e+00> : vector<256x96xf32>
    %40 = tpu.matmul %37, %39, %cst_20 {dimension_numbers = #tpu.dot_dimension_numbers<[1], [0], [0], [1], [0, 0, 1, 1], [], []>} : vector<256x32xbf16>, vector<32x96xbf16>, vector<256x96xf32> -> vector<256x96xf32>
    %41 = arith.addf %35, %40 : vector<256x96xf32>
    %42 = vector.extract_strided_slice %4 {offsets = [2, 0, 0], sizes = [16, 16, 32], strides = [1, 1, 1]} : vector<18x18x32xbf16> to vector<16x16x32xbf16>
    %43 = vector.shape_cast %42 : vector<16x16x32xbf16> to vector<256x32xbf16>
    %c6 = arith.constant 6 : index
    %c0_21 = arith.constant 0 : index
    %c0_22 = arith.constant 0 : index
    %44 = vector.load %arg3[%c6, %c0_21, %c0_22] : memref<9x32x96xbf16, #tpu.memory_space<vmem>>, vector<1x32x96xbf16>
    %45 = vector.shape_cast %44 : vector<1x32x96xbf16> to vector<32x96xbf16>
    %cst_23 = arith.constant dense<0.000000e+00> : vector<256x96xf32>
    %46 = tpu.matmul %43, %45, %cst_23 {dimension_numbers = #tpu.dot_dimension_numbers<[1], [0], [0], [1], [0, 0, 1, 1], [], []>} : vector<256x32xbf16>, vector<32x96xbf16>, vector<256x96xf32> -> vector<256x96xf32>
    %47 = arith.addf %41, %46 : vector<256x96xf32>
    %48 = vector.extract_strided_slice %4 {offsets = [2, 1, 0], sizes = [16, 16, 32], strides = [1, 1, 1]} : vector<18x18x32xbf16> to vector<16x16x32xbf16>
    %49 = vector.shape_cast %48 : vector<16x16x32xbf16> to vector<256x32xbf16>
    %c7 = arith.constant 7 : index
    %c0_24 = arith.constant 0 : index
    %c0_25 = arith.constant 0 : index
    %50 = vector.load %arg3[%c7, %c0_24, %c0_25] : memref<9x32x96xbf16, #tpu.memory_space<vmem>>, vector<1x32x96xbf16>
    %51 = vector.shape_cast %50 : vector<1x32x96xbf16> to vector<32x96xbf16>
    %cst_26 = arith.constant dense<0.000000e+00> : vector<256x96xf32>
    %52 = tpu.matmul %49, %51, %cst_26 {dimension_numbers = #tpu.dot_dimension_numbers<[1], [0], [0], [1], [0, 0, 1, 1], [], []>} : vector<256x32xbf16>, vector<32x96xbf16>, vector<256x96xf32> -> vector<256x96xf32>
    %53 = arith.addf %47, %52 : vector<256x96xf32>
    %54 = vector.extract_strided_slice %4 {offsets = [2, 2, 0], sizes = [16, 16, 32], strides = [1, 1, 1]} : vector<18x18x32xbf16> to vector<16x16x32xbf16>
    %55 = vector.shape_cast %54 : vector<16x16x32xbf16> to vector<256x32xbf16>
    %c8 = arith.constant 8 : index
    %c0_27 = arith.constant 0 : index
    %c0_28 = arith.constant 0 : index
    %56 = vector.load %arg3[%c8, %c0_27, %c0_28] : memref<9x32x96xbf16, #tpu.memory_space<vmem>>, vector<1x32x96xbf16>
    %57 = vector.shape_cast %56 : vector<1x32x96xbf16> to vector<32x96xbf16>
    %cst_29 = arith.constant dense<0.000000e+00> : vector<256x96xf32>
    %58 = tpu.matmul %55, %57, %cst_29 {dimension_numbers = #tpu.dot_dimension_numbers<[1], [0], [0], [1], [0, 0, 1, 1], [], []>} : vector<256x32xbf16>, vector<32x96xbf16>, vector<256x96xf32> -> vector<256x96xf32>
    %59 = arith.addf %53, %58 : vector<256x96xf32>
    %c0_30 = arith.constant 0 : index
    %c0_31 = arith.constant 0 : index
    %60 = vector.load %arg4[%c0_30, %c0_31] : memref<1x96xf32, #tpu.memory_space<vmem>>, vector<1x96xf32>
    %61 = vector.broadcast %60 : vector<1x96xf32> to vector<256x96xf32>
    %62 = arith.addf %59, %61 : vector<256x96xf32>
    %cst_32 = arith.constant 0.000000e+00 : f32
    %63 = vector.broadcast %cst_32 : f32 to vector<256x96xf32>
    %64 = arith.maximumf %62, %63 : vector<256x96xf32>
    %65 = arith.truncf %64 : vector<256x96xf32> to vector<256x96xbf16>
    %c0_33 = arith.constant 0 : index
    %c0_34 = arith.constant 0 : index
    %66 = vector.load %arg5[%c0_33, %c0_34] : memref<96x8xbf16, #tpu.memory_space<vmem>>, vector<96x8xbf16>
    %cst_35 = arith.constant dense<0.000000e+00> : vector<256x8xf32>
    %67 = tpu.matmul %65, %66, %cst_35 {dimension_numbers = #tpu.dot_dimension_numbers<[1], [0], [0], [1], [0, 0, 1, 1], [], []>} : vector<256x96xbf16>, vector<96x8xbf16>, vector<256x8xf32> -> vector<256x8xf32>
    %c0_36 = arith.constant 0 : index
    %c0_37 = arith.constant 0 : index
    %68 = vector.load %arg6[%c0_36, %c0_37] : memref<1x8xf32, #tpu.memory_space<vmem>>, vector<1x8xf32>
    %69 = vector.broadcast %68 : vector<1x8xf32> to vector<256x8xf32>
    %70 = arith.addf %67, %69 : vector<256x8xf32>
    %71 = tpu.iota {dimensions = array<i32: 1>} : vector<256x8xi32>
    %c4_i32 = arith.constant 4 : i32
    %72 = vector.broadcast %c4_i32 : i32 to vector<256x8xi32>
    %73 = arith.cmpi slt, %71, %72 : vector<256x8xi32>
    %74 = arith.negf %70 : vector<256x8xf32>
    %75 = math.exp %74 : vector<256x8xf32>
    %cst_38 = arith.constant 1.000000e+00 : f32
    %76 = vector.broadcast %cst_38 : f32 to vector<256x8xf32>
    %77 = arith.addf %76, %75 : vector<256x8xf32>
    %78 = arith.divf %76, %77 : vector<256x8xf32>
    %79 = arith.select %73, %78, %70 : vector<256x8xi1>, vector<256x8xf32>
    %c0_39 = arith.constant 0 : index
    %c0_40 = arith.constant 0 : index
    %c0_41 = arith.constant 0 : index
    %80 = vector.load %arg7[%c0_39, %c0_40, %c0_41] : memref<1x256x8xf32, #tpu.memory_space<vmem>>, vector<1x256x8xf32>
    %81 = vector.shape_cast %80 : vector<1x256x8xf32> to vector<256x8xf32>
    %82 = vector.shape_cast %79 : vector<256x8xf32> to vector<1x256x8xf32>
    tpu.vector_store %arg7[%c0_39, %c0_40, %c0_41], %82 {strides = array<i32>} : memref<1x256x8xf32, #tpu.memory_space<vmem>>, vector<1x256x8xf32>,
    return
  }
  func.func @transform_0(%arg0: i32, %arg1: i32) -> (i32, i32, i32, i32) {
    %c0_i32 = arith.constant 0 : i32
    %c0_i32_0 = arith.constant 0 : i32
    %c0_i32_1 = arith.constant 0 : i32
    %c0_i32_2 = arith.constant 0 : i32
    return %arg0, %c0_i32, %c0_i32_0, %c0_i32_1 : i32, i32, i32, i32
  }
  func.func @transform_1(%arg0: i32, %arg1: i32) -> (i32, i32, i32) {
    %c0_i32 = arith.constant 0 : i32
    %c0_i32_0 = arith.constant 0 : i32
    %c0_i32_1 = arith.constant 0 : i32
    %c0_i32_2 = arith.constant 0 : i32
    return %c0_i32, %c0_i32_0, %c0_i32_1 : i32, i32, i32
  }
  func.func @transform_2(%arg0: i32, %arg1: i32) -> (i32, i32) {
    %c0_i32 = arith.constant 0 : i32
    %c0_i32_0 = arith.constant 0 : i32
    %c0_i32_1 = arith.constant 0 : i32
    return %c0_i32, %c0_i32_0 : i32, i32
  }
  func.func @transform_3(%arg0: i32, %arg1: i32) -> (i32, i32) {
    %c0_i32 = arith.constant 0 : i32
    %c0_i32_0 = arith.constant 0 : i32
    %c0_i32_1 = arith.constant 0 : i32
    return %c0_i32, %c0_i32_0 : i32, i32
  }
  func.func @transform_4(%arg0: i32, %arg1: i32) -> (i32, i32) {
    %c0_i32 = arith.constant 0 : i32
    %c0_i32_0 = arith.constant 0 : i32
    %c0_i32_1 = arith.constant 0 : i32
    return %c0_i32, %c0_i32_0 : i32, i32
  }
  func.func @transform_5(%arg0: i32, %arg1: i32) -> (i32, i32, i32) {
    %c0_i32 = arith.constant 0 : i32
    %c0_i32_0 = arith.constant 0 : i32
    return %arg0, %arg1, %c0_i32 : i32, i32, i32
  }
}

</mosaic_0001>

<llo_original>
// kernel: centernet_head_forward.1
$region0: #{centernet_head_forward.1}
  #allocation0 [shape = 'u32[]', space=smem, size = 0x4, offset = 0x4, fixed_abs, tag = 'smem constant byte address 0x4 - core index']
  #allocation1 [shape = 'u32[144,128]{1,0:T(1,128)}', space=vmem, size = 0x12000, scoped, tag = 'internal scratch']
  %s0 = inlined_call_operand.vmem [shape: bf16[2,18,18,32], index: 0, kind: input, shape index: {}]
  %s1 = inlined_call_operand.vmem [shape: bf16[9,32,96], index: 1, kind: input, shape index: {}]
  %s2 = inlined_call_operand.vmem [shape: f32[1,96], index: 2, kind: input, shape index: {}]
  %s3 = inlined_call_operand.vmem [shape: bf16[96,8], index: 3, kind: input, shape index: {}]
  %s4 = inlined_call_operand.vmem [shape: f32[1,8], index: 4, kind: input, shape index: {}]
  %s5 = inlined_call_operand.vmem [shape: f32[2,256,8], index: 5, kind: output, shape index: {}]
  %s6 = sld [smem:[#allocation0]]
  $region53: #{centernet_head_forward.1} parent=0
    _
  %s8 = ssub.s32 1, %s6
  %s9 = scalar_select 0, %s8, %s6
  loop: start=0, step=1, limit=4
  $region2: #{centernet_head_forward.1} parent=0 // loop_pre_header
    _
  $region3: #{centernet_head_forward.1} parent=0 // loop_header
    %s11 = sphi 0, %s15
    %p12 = scmp.ge.s32.totalorder %s11, 4
    %s18 = sphi 0, %s30
    %s19 = sphi 0, %s26
    %s20 = sphi 0, %s18
    %s21 = sphi 0, %s19
    %s22 = sphi 0, %s20
    %s23 = sphi 0, %s21
    %s33 = sphi 0, %s35
    %s36 = sphi 0, %s33
    %s37 = sphi 0, %s36
    %s53 = sphi 0, %s37
    %s57 = sphi 0, %s57
    %s59 = sphi 0, %s57
    %s60 = sphi 0, %s59
    %s74 = sphi 0, %s60
    %s78 = sphi 0, %s78
    %s80 = sphi 0, %s78
    %s81 = sphi 0, %s80
    %s95 = sphi 0, %s81
    %s99 = sphi 0, %s99
    %s101 = sphi 0, %s99
    %s102 = sphi 0, %s101
    %s116 = sphi 0, %s102
    %s120 = sphi 0, %s120
    %s122 = sphi 0, %s120
    %s123 = sphi 0, %s122
    %s137 = sphi 0, %s123
    %s145 = sphi 0, %s147
    %s148 = sphi 0, %s145
    %s149 = sphi 0, %s148
    %s165 = sphi 0, %s149
  $region4: #{centernet_head_forward.1} parent=0 // loop_header_branch
    %14 = sbr.rel (%p12) target = $region8
  $region5: #{centernet_head_forward.1} parent=0 // loop_body
    %s16 = ssub.s32 %s11, 1
    %s17 = ssub.s32 %s11, 2
    %s24 = sadd.s32 1, %s19
    %p25 = scmp.ge.s32.totalorder %s24, 1
    %s26 = scalar_select %p25, 0, %s24
    %s27 = sadd.s32 1, %s18
    %s28 = scalar_select %p25, %s27, %s18
    %p29 = scmp.ge.s32.totalorder %s28, 2
    %s30 = scalar_select %p29, 0, %s28
    %s31 = ssub.s32 %s18, %s30
    %p32 = scmp.eq.s32.totalorder %s31, 0
    %s34 = sadd.s32 %s33, 1
    %s35 = scalar_select %p32, %s33, %s34
    %p38 = pneg %p32
    %p39 = scmp.eq.s32.totalorder %s11, 1
    %p40 = por %p38, %p39
    %p41 = scmp.ne.s32.totalorder %s33, %s36
    %p42 = scmp.eq.s32.totalorder %s11, 0
    %p43 = por %p41, %p42
    %p44 = scmp.ne.s32.totalorder %s33, %s36
    %p45 = scmp.eq.s32.totalorder %s16, 1
    %p46 = por %p44, %p45
    %p47 = scmp.ne.s32.totalorder %s36, %s37
    %p48 = scmp.eq.s32.totalorder %s16, 0
    %p49 = por %p47, %p48
    %p50 = scmp.ne.s32.totalorder %s36, %s37
    %p51 = scmp.eq.s32.totalorder %s17, 1
    %p52 = por %p50, %p51
    %p54 = scmp.ne.s32.totalorder %s37, %s53
    %p55 = scmp.eq.s32.totalorder %s17, 0
    %p56 = por %p54, %p55
    %s58 = sadd.s32 %s57, 1
    %p61 = scmp.eq.s32.totalorder %s11, 1
    %p62 = scmp.ne.s32.totalorder %s57, %s59
    %p63 = scmp.eq.s32.totalorder %s11, 0
    %p64 = por %p62, %p63
    %p65 = scmp.ne.s32.totalorder %s57, %s59
    %p66 = scmp.eq.s32.totalorder %s16, 1
    %p67 = por %p65, %p66
    %p68 = scmp.ne.s32.totalorder %s59, %s60
    %p69 = scmp.eq.s32.totalorder %s16, 0
    %p70 = por %p68, %p69
    %p71 = scmp.ne.s32.totalorder %s59, %s60
    %p72 = scmp.eq.s32.totalorder %s17, 1
    %p73 = por %p71, %p72
    %p75 = scmp.ne.s32.totalorder %s60, %s74
    %p76 = scmp.eq.s32.totalorder %s17, 0
    %p77 = por %p75, %p76
    %s79 = sadd.s32 %s78, 1
    %p82 = scmp.eq.s32.totalorder %s11, 1
    %p83 = scmp.ne.s32.totalorder %s78, %s80
    %p84 = scmp.eq.s32.totalorder %s11, 0
    %p85 = por %p83, %p84
    %p86 = scmp.ne.s32.totalorder %s78, %s80
    %p87 = scmp.eq.s32.totalorder %s16, 1
    %p88 = por %p86, %p87
    %p89 = scmp.ne.s32.totalorder %s80, %s81
    %p90 = scmp.eq.s32.totalorder %s16, 0
    %p91 = por %p89, %p90
    %p92 = scmp.ne.s32.totalorder %s80, %s81
    %p93 = scmp.eq.s32.totalorder %s17, 1
    %p94 = por %p92, %p93
    %p96 = scmp.ne.s32.totalorder %s81, %s95
    %p97 = scmp.eq.s32.totalorder %s17, 0
    %p98 = por %p96, %p97
    %s100 = sadd.s32 %s99, 1
    %p103 = scmp.eq.s32.totalorder %s11, 1
    %p104 = scmp.ne.s32.totalorder %s99, %s101
    %p105 = scmp.eq.s32.totalorder %s11, 0
    %p106 = por %p104, %p105
    %p107 = scmp.ne.s32.totalorder %s99, %s101
    %p108 = scmp.eq.s32.totalorder %s16, 1
    %p109 = por %p107, %p108
    %p110 = scmp.ne.s32.totalorder %s101, %s102
    %p111 = scmp.eq.s32.totalorder %s16, 0
    %p112 = por %p110, %p111
    %p113 = scmp.ne.s32.totalorder %s101, %s102
    %p114 = scmp.eq.s32.totalorder %s17, 1
    %p115 = por %p113, %p114
    %p117 = scmp.ne.s32.totalorder %s102, %s116
    %p118 = scmp.eq.s32.totalorder %s17, 0
    %p119 = por %p117, %p118
    %s121 = sadd.s32 %s120, 1
    %p124 = scmp.eq.s32.totalorder %s11, 1
    %p125 = scmp.ne.s32.totalorder %s120, %s122
    %p126 = scmp.eq.s32.totalorder %s11, 0
    %p127 = por %p125, %p126
    %p128 = scmp.ne.s32.totalorder %s120, %s122
    %p129 = scmp.eq.s32.totalorder %s16, 1
    %p130 = por %p128, %p129
    %p131 = scmp.ne.s32.totalorder %s122, %s123
    %p132 = scmp.eq.s32.totalorder %s16, 0
    %p133 = por %p131, %p132
    %p134 = scmp.ne.s32.totalorder %s122, %s123
    %p135 = scmp.eq.s32.totalorder %s17, 1
    %p136 = por %p134, %p135
    %p138 = scmp.ne.s32.totalorder %s123, %s137
    %p139 = scmp.eq.s32.totalorder %s17, 0
    %p140 = por %p138, %p139
    %s141 = ssub.s32 %s18, %s30
    %s142 = ssub.s32 %s19, %s26
    %s143 = sor.u32 %s141, %s142
    %p144 = scmp.eq.s32.totalorder %s143, 0
    %s146 = sadd.s32 %s145, 1
    %s147 = scalar_select %p144, %s145, %s146
    %p150 = pneg %p144
    %p151 = scmp.eq.s32.totalorder %s11, 1
    %p152 = por %p150, %p151
    %p153 = scmp.ne.s32.totalorder %s145, %s148
    %p154 = scmp.eq.s32.totalorder %s11, 0
    %p155 = por %p153, %p154
    %p156 = scmp.ne.s32.totalorder %s145, %s148
    %p157 = scmp.eq.s32.totalorder %s16, 1
    %p158 = por %p156, %p157
    %p159 = scmp.ne.s32.totalorder %s148, %s149
    %p160 = scmp.eq.s32.totalorder %s16, 0
    %p161 = por %p159, %p160
    %p162 = scmp.ne.s32.totalorder %s148, %s149
    %p163 = scmp.eq.s32.totalorder %s17, 1
    %p164 = por %p162, %p163
    %p166 = scmp.ne.s32.totalorder %s149, %s165
    %p167 = scmp.eq.s32.totalorder %s17, 0
    %p168 = por %p166, %p167
    %p169 = scmp.le.s32.totalorder 1, %s11
    %p170 = scmp.lt.s32.totalorder %s11, 3
    %p171 = pnand %p169, %p170
    %p172 = pneg %p171
    // Predicated region
    $region9: #{centernet_head_forward.1} parent=5 // pred_check
      _
    $region10: #{centernet_head_forward.1} parent=5 // pred_check_branch
      %174 = sbr.rel (%p171) target = $region12
    $region11: #{centernet_head_forward.1} parent=5 // pred_region
      %s175 = ssub.s32 %s11, 1
      // Predicated region
      $region13: #{centernet_head_forward.1} parent=11 // pred_check
        %p176 = pneg %p70
      $region14: #{centernet_head_forward.1} parent=11 // pred_check_branch
        %178 = sbr.rel (%p176) target = $region16
      $region15: #{centernet_head_forward.1} parent=11 // pred_region
        _
      $region16: #{centernet_head_forward.1} parent=11 // pred_fallthru
        _
      // Predicated region
      $region17: #{centernet_head_forward.1} parent=11 // pred_check
        %p179 = pneg %p91
      $region18: #{centernet_head_forward.1} parent=11 // pred_check_branch
        %181 = sbr.rel (%p179) target = $region20
      $region19: #{centernet_head_forward.1} parent=11 // pred_region
        _
      $region20: #{centernet_head_forward.1} parent=11 // pred_fallthru
        _
      // Predicated region
      $region21: #{centernet_head_forward.1} parent=11 // pred_check
        %p182 = pneg %p112
      $region22: #{centernet_head_forward.1} parent=11 // pred_check_branch
        %184 = sbr.rel (%p182) target = $region24
      $region23: #{centernet_head_forward.1} parent=11 // pred_region
        _
      $region24: #{centernet_head_forward.1} parent=11 // pred_fallthru
        _
      // Predicated region
      $region25: #{centernet_head_forward.1} parent=11 // pred_check
        %p185 = pneg %p133
      $region26: #{centernet_head_forward.1} parent=11 // pred_check_branch
        %187 = sbr.rel (%p185) target = $region28
      $region27: #{centernet_head_forward.1} parent=11 // pred_region
        _
      $region28: #{centernet_head_forward.1} parent=11 // pred_fallthru
        _
    $region12: #{centernet_head_forward.1} parent=5 // pred_fallthru
      _
    %p188 = scmp.lt.s32.totalorder %s11, 2
    // Predicated region
    $region29: #{centernet_head_forward.1} parent=5 // pred_check
      %p189 = pneg %p188
    $region30: #{centernet_head_forward.1} parent=5 // pred_check_branch
      %191 = sbr.rel (%p189) target = $region32
    $region31: #{centernet_head_forward.1} parent=5 // pred_region
      // Predicated region
      $region33: #{centernet_head_forward.1} parent=31 // pred_check
        %p192 = pneg %p43
      $region34: #{centernet_head_forward.1} parent=31 // pred_check_branch
        %194 = sbr.rel (%p192) target = $region36
      $region35: #{centernet_head_forward.1} parent=31 // pred_region
        %p195 = scmp.lt.s32.totalorder %s18, 1
        %s196 = scalar_select %p195, %s18, 1
        %s197 = smul.addr %s196, 54
        %s198 = smul.addr %s197, 4
        %s199 = scalar_lea.vmem %s0, %s198
      $region36: #{centernet_head_forward.1} parent=31 // pred_fallthru
        _
    $region32: #{centernet_head_forward.1} parent=5 // pred_fallthru
      _
    %p200 = scmp.le.s32.totalorder 1, %s11
    %p201 = scmp.lt.s32.totalorder %s11, 3
    %p202 = pnand %p200, %p201
    %p203 = pneg %p202
    // Predicated region
    $region37: #{centernet_head_forward.1} parent=5 // pred_check
      _
    $region38: #{centernet_head_forward.1} parent=5 // pred_check_branch
      %205 = sbr.rel (%p202) target = $region40
    $region39: #{centernet_head_forward.1} parent=5 // pred_region
      %s206 = ssub.s32 %s11, 1
      %p207 = scmp.lt.s32.totalorder %s20, 1
      %s208 = scalar_select %p207, %s20, 1
      %s209 = smul.addr %s208, 54
      %s210 = smul.addr %s209, 4
      %s211 = scalar_lea.vmem %s0, %s210
      %p212 = pneg %p49
      %p213 = pneg %p46
      %p214 = pneg %p70
      %p215 = pneg %p67
      %p216 = pneg %p91
      %p217 = pneg %p88
      %p218 = pneg %p112
      %p219 = pneg %p109
      %p220 = pneg %p133
      %p221 = pneg %p130
      %p222 = pneg %p161
      %p223 = pneg %p158
      %s224 = smul.u32 32, %s21
      %p225 = scmp.lt.s32.totalorder %s20, 1
      %s226 = scalar_select %p225, %s20, 1
      %p227 = scmp.lt.s32.totalorder %s224, 31
      %s228 = scalar_select %p227, %s224, 31
      %s229 = smul.addr %s226, 32
      %s230 = sadd.s32 %s228, %s229
      %s231 = smul.addr %s230, 8
      %s232 = scalar_lea.vmem %s5, %s231
      %p233 = scmp.lt.s32.totalorder %s20, 1
      %s234 = scalar_select %p233, %s20, 1
      %s235 = smul.addr %s234, 54
      %s236 = smul.addr %s235, 4
      %s237 = scalar_lea.vmem %s0, %s236
      %s238 = smul.u32 32, %s21
      %p239 = scmp.lt.s32.totalorder %s20, 1
      %s240 = scalar_select %p239, %s20, 1
      %p241 = scmp.lt.s32.totalorder %s238, 31
      %s242 = scalar_select %p241, %s238, 31
      %s243 = smul.addr %s240, 32
      %s244 = sadd.s32 %s242, %s243
      %s245 = smul.addr %s244, 8
      %s246 = scalar_lea.vmem %s5, %s245
      %s247 = smul.u32 32, %s21
      %s249 = smul.u32 %s21, 16
      %s250 = smul.u32 %s249, 3
      %s251 = smul.addr %s250, 4
      %s252 = scalar_lea.vmem %s237, %s251
      %v253 = vld [vmem:[%s252] sm:$0xf]
      %v254 = vld [vmem:[%s252 + $0x4] sm:$0xf]
      %v255 = vld [vmem:[%s252 + $0x8] sm:$0x1]
      %v256 = vld [vmem:[%s252 + $0xc] sm:$0xf]
      %v257 = vld [vmem:[%s252 + $0x10] sm:$0xf]
      %v258 = vld [vmem:[%s252 + $0x14] sm:$0x1]
      %v259 = vld [vmem:[%s252 + $0x18] sm:$0xf]
      %v260 = vld [vmem:[%s252 + $0x1c] sm:$0xf]
      %v261 = vld [vmem:[%s252 + $0x20] sm:$0x1]
      %v262 = vld [vmem:[%s252 + $0x24] sm:$0xf]
      %v263 = vld [vmem:[%s252 + $0x28] sm:$0xf]
      %v264 = vld [vmem:[%s252 + $0x2c] sm:$0x1]
      %v265 = vld [vmem:[%s252 + $0x30] sm:$0xf]
      %v266 = vld [vmem:[%s252 + $0x34] sm:$0xf]
      %v267 = vld [vmem:[%s252 + $0x38] sm:$0x1]
      %v268 = vld [vmem:[%s252 + $0x3c] sm:$0xf]
      %v269 = vld [vmem:[%s252 + $0x40] sm:$0xf]
      %v270 = vld [vmem:[%s252 + $0x44] sm:$0x1]
      %v271 = vld [vmem:[%s252 + $0x48] sm:$0xf]
      %v272 = vld [vmem:[%s252 + $0x4c] sm:$0xf]
      %v273 = vld [vmem:[%s252 + $0x50] sm:$0x1]
      %v274 = vld [vmem:[%s252 + $0x54] sm:$0xf]
      %v275 = vld [vmem:[%s252 + $0x58] sm:$0xf]
      %v276 = vld [vmem:[%s252 + $0x5c] sm:$0x1]
      %v277 = vld [vmem:[%s252 + $0x60] sm:$0xf]
      %v278 = vld [vmem:[%s252 + $0x64] sm:$0xf]
      %v279 = vld [vmem:[%s252 + $0x68] sm:$0x1]
      %v280 = vld [vmem:[%s252 + $0x6c] sm:$0xf]
      %v281 = vld [vmem:[%s252 + $0x70] sm:$0xf]
      %v282 = vld [vmem:[%s252 + $0x74] sm:$0x1]
      %v283 = vld [vmem:[%s252 + $0x78] sm:$0xf]
      %v284 = vld [vmem:[%s252 + $0x7c] sm:$0xf]
      %v285 = vld [vmem:[%s252 + $0x80] sm:$0x1]
      %v286 = vld [vmem:[%s252 + $0x84] sm:$0xf]
      %v287 = vld [vmem:[%s252 + $0x88] sm:$0xf]
      %v288 = vld [vmem:[%s252 + $0x8c] sm:$0x1]
      %v289 = vld [vmem:[%s252 + $0x90] sm:$0xf]
      %v290 = vld [vmem:[%s252 + $0x94] sm:$0xf]
      %v291 = vld [vmem:[%s252 + $0x98] sm:$0x1]
      %v292 = vld [vmem:[%s252 + $0x9c] sm:$0xf]
      %v293 = vld [vmem:[%s252 + $0xa0] sm:$0xf]
      %v294 = vld [vmem:[%s252 + $0xa4] sm:$0x1]
      %v295 = vld [vmem:[%s252 + $0xa8] sm:$0xf]
      %v296 = vld [vmem:[%s252 + $0xac] sm:$0xf]
      %v297 = vld [vmem:[%s252 + $0xb0] sm:$0x1]
      %v298 = vld [vmem:[%s252 + $0xb4] sm:$0xf]
      %v299 = vld [vmem:[%s252 + $0xb8] sm:$0xf]
      %v300 = vld [vmem:[%s252 + $0xbc] sm:$0x1]
      %v301 = vld [vmem:[%s252 + $0xc0] sm:$0xf]
      %v302 = vld [vmem:[%s252 + $0xc4] sm:$0xf]
      %v303 = vld [vmem:[%s252 + $0xc8] sm:$0x1]
      %v304 = vld [vmem:[%s252 + $0xcc] sm:$0xf]
      %v305 = vld [vmem:[%s252 + $0xd0] sm:$0xf]
      %v306 = vld [vmem:[%s252 + $0xd4] sm:$0x1]
      %v307 = vld [vmem:[%s1] sm:$0xf]
      %v308 = vld [vmem:[%s1 + $0x4] sm:$0xf]
      %v309 = vld [vmem:[%s1 + $0x8] sm:$0xf]
      %v310 = vld [vmem:[%s1 + $0xc] sm:$0xf]
      %vm311 = vsmask.f32 3328
      %vm312 = vsmask.f32 7440
      %vm313 = vmor %vm311, %vm312
      %v315 = vshrl.u32 %v253, 16
      %v317 = vrot.slane %v315, 4
      %v318 = vshll.u32 %v253, 16
      %v320 = vrot.slane %v318, 5
      %v321 = vor.u32 %v317, %v320
      %v322 = vrot.slane %v321, 4
      %v324 = vshll.u32 %v254, 16
      %v326 = vrot.slane %v324, 5
      %v327 = vsel %vm313, %v322, %v326
      %v328 = vshrl.u32 %v254, 16
      %v330 = vrot.slane %v328, 4
      %v331 = vor.u32 %v330, %v326
      %v332 = vrot.slane %v331, 4
      %v334 = vshll.u32 %v255, 16
      %v336 = vrot.slane %v334, 5
      %v337 = vsel %vm313, %v332, %v336
      %v339 = vshrl.u32 %v256, 16
      %v341 = vrot.slane %v339, 4
      %v342 = vshll.u32 %v256, 16
      %v344 = vrot.slane %v342, 5
      %v345 = vor.u32 %v341, %v344
      %v346 = vrot.slane %v345, 4
      %v348 = vshll.u32 %v257, 16
      %v350 = vrot.slane %v348, 5
      %v351 = vsel %vm313, %v346, %v350
      %v352 = vshrl.u32 %v257, 16
      %v354 = vrot.slane %v352, 4
      %v355 = vor.u32 %v354, %v350
      %v356 = vrot.slane %v355, 4
      %v358 = vshll.u32 %v258, 16
      %v360 = vrot.slane %v358, 5
      %v361 = vsel %vm313, %v356, %v360
      %v363 = vshrl.u32 %v259, 16
      %v365 = vrot.slane %v363, 4
      %v366 = vshll.u32 %v259, 16
      %v368 = vrot.slane %v366, 5
      %v369 = vor.u32 %v365, %v368
      %v370 = vrot.slane %v369, 4
      %v372 = vshll.u32 %v260, 16
      %v374 = vrot.slane %v372, 5
      %v375 = vsel %vm313, %v370, %v374
      %v376 = vshrl.u32 %v260, 16
      %v378 = vrot.slane %v376, 4
      %v379 = vor.u32 %v378, %v374
      %v380 = vrot.slane %v379, 4
      %v382 = vshll.u32 %v261, 16
      %v384 = vrot.slane %v382, 5
      %v385 = vsel %vm313, %v380, %v384
      %v387 = vshrl.u32 %v262, 16
      %v389 = vrot.slane %v387, 4
      %v390 = vshll.u32 %v262, 16
      %v392 = vrot.slane %v390, 5
      %v393 = vor.u32 %v389, %v392
      %v394 = vrot.slane %v393, 4
      %v396 = vshll.u32 %v263, 16
      %v398 = vrot.slane %v396, 5
      %v399 = vsel %vm313, %v394, %v398
      %v400 = vshrl.u32 %v263, 16
      %v402 = vrot.slane %v400, 4
      %v403 = vor.u32 %v402, %v398
      %v404 = vrot.slane %v403, 4
      %v406 = vshll.u32 %v264, 16
      %v408 = vrot.slane %v406, 5
      %v409 = vsel %vm313, %v404, %v408
      %v411 = vshrl.u32 %v265, 16
      %v413 = vrot.slane %v411, 4
      %v414 = vshll.u32 %v265, 16
      %v416 = vrot.slane %v414, 5
      %v417 = vor.u32 %v413, %v416
      %v418 = vrot.slane %v417, 4
      %v420 = vshll.u32 %v266, 16
      %v422 = vrot.slane %v420, 5
      %v423 = vsel %vm313, %v418, %v422
      %v424 = vshrl.u32 %v266, 16
      %v426 = vrot.slane %v424, 4
      %v427 = vor.u32 %v426, %v422
      %v428 = vrot.slane %v427, 4
      %v430 = vshll.u32 %v267, 16
      %v432 = vrot.slane %v430, 5
      %v433 = vsel %vm313, %v428, %v432
      %v435 = vshrl.u32 %v268, 16
      %v437 = vrot.slane %v435, 4
      %v438 = vshll.u32 %v268, 16
      %v440 = vrot.slane %v438, 5
      %v441 = vor.u32 %v437, %v440
      %v442 = vrot.slane %v441, 4
      %v444 = vshll.u32 %v269, 16
      %v446 = vrot.slane %v444, 5
      %v447 = vsel %vm313, %v442, %v446
      %v448 = vshrl.u32 %v269, 16
      %v450 = vrot.slane %v448, 4
      %v451 = vor.u32 %v450, %v446
      %v452 = vrot.slane %v451, 4
      %v454 = vshll.u32 %v270, 16
      %v456 = vrot.slane %v454, 5
      %v457 = vsel %vm313, %v452, %v456
      %v459 = vshrl.u32 %v271, 16
      %v461 = vrot.slane %v459, 4
      %v462 = vshll.u32 %v271, 16
      %v464 = vrot.slane %v462, 5
      %v465 = vor.u32 %v461, %v464
      %v466 = vrot.slane %v465, 4
      %v468 = vshll.u32 %v272, 16
      %v470 = vrot.slane %v468, 5
      %v471 = vsel %vm313, %v466, %v470
      %v472 = vshrl.u32 %v272, 16
      %v474 = vrot.slane %v472, 4
      %v475 = vor.u32 %v474, %v470
      %v476 = vrot.slane %v475, 4
      %v478 = vshll.u32 %v273, 16
      %v480 = vrot.slane %v478, 5
      %v481 = vsel %vm313, %v476, %v480
      %v483 = vshrl.u32 %v274, 16
      %v485 = vrot.slane %v483, 4
      %v486 = vshll.u32 %v274, 16
      %v488 = vrot.slane %v486, 5
      %v489 = vor.u32 %v485, %v488
      %v490 = vrot.slane %v489, 4
      %v492 = vshll.u32 %v275, 16
      %v494 = vrot.slane %v492, 5
      %v495 = vsel %vm313, %v490, %v494
      %v496 = vshrl.u32 %v275, 16
      %v498 = vrot.slane %v496, 4
      %v499 = vor.u32 %v498, %v494
      %v500 = vrot.slane %v499, 4
      %v502 = vshll.u32 %v276, 16
      %v504 = vrot.slane %v502, 5
      %v505 = vsel %vm313, %v500, %v504
      %v507 = vshrl.u32 %v277, 16
      %v509 = vrot.slane %v507, 4
      %v510 = vshll.u32 %v277, 16
      %v512 = vrot.slane %v510, 5
      %v513 = vor.u32 %v509, %v512
      %v514 = vrot.slane %v513, 4
      %v516 = vshll.u32 %v278, 16
      %v518 = vrot.slane %v516, 5
      %v519 = vsel %vm313, %v514, %v518
      %v520 = vshrl.u32 %v278, 16
      %v522 = vrot.slane %v520, 4
      %v523 = vor.u32 %v522, %v518
      %v524 = vrot.slane %v523, 4
      %v526 = vshll.u32 %v279, 16
      %v528 = vrot.slane %v526, 5
      %v529 = vsel %vm313, %v524, %v528
      %v531 = vshrl.u32 %v280, 16
      %v533 = vrot.slane %v531, 4
      %v534 = vshll.u32 %v280, 16
      %v536 = vrot.slane %v534, 5
      %v537 = vor.u32 %v533, %v536
      %v538 = vrot.slane %v537, 4
      %v540 = vshll.u32 %v281, 16
      %v542 = vrot.slane %v540, 5
      %v543 = vsel %vm313, %v538, %v542
      %v544 = vshrl.u32 %v281, 16
      %v546 = vrot.slane %v544, 4
      %v547 = vor.u32 %v546, %v542
      %v548 = vrot.slane %v547, 4
      %v550 = vshll.u32 %v282, 16
      %v552 = vrot.slane %v550, 5
      %v553 = vsel %vm313, %v548, %v552
      %v555 = vshrl.u32 %v283, 16
      %v557 = vrot.slane %v555, 4
      %v558 = vshll.u32 %v283, 16
      %v560 = vrot.slane %v558, 5
      %v561 = vor.u32 %v557, %v560
      %v562 = vrot.slane %v561, 4
      %v564 = vshll.u32 %v284, 16
      %v566 = vrot.slane %v564, 5
      %v567 = vsel %vm313, %v562, %v566
      %v568 = vshrl.u32 %v284, 16
      %v570 = vrot.slane %v568, 4
      %v571 = vor.u32 %v570, %v566
      %v572 = vrot.slane %v571, 4
      %v574 = vshll.u32 %v285, 16
      %v576 = vrot.slane %v574, 5
      %v577 = vsel %vm313, %v572, %v576
      %v579 = vshrl.u32 %v286, 16
      %v581 = vrot.slane %v579, 4
      %v582 = vshll.u32 %v286, 16
      %v584 = vrot.slane %v582, 5
      %v585 = vor.u32 %v581, %v584
      %v586 = vrot.slane %v585, 4
      %v588 = vshll.u32 %v287, 16
      %v590 = vrot.slane %v588, 5
      %v591 = vsel %vm313, %v586, %v590
      %v592 = vshrl.u32 %v287, 16
      %v594 = vrot.slane %v592, 4
      %v595 = vor.u32 %v594, %v590
      %v596 = vrot.slane %v595, 4
      %v598 = vshll.u32 %v288, 16
      %v600 = vrot.slane %v598, 5
      %v601 = vsel %vm313, %v596, %v600
      %v603 = vshrl.u32 %v289, 16
      %v605 = vrot.slane %v603, 4
      %v606 = vshll.u32 %v289, 16
      %v608 = vrot.slane %v606, 5
      %v609 = vor.u32 %v605, %v608
      %v610 = vrot.slane %v609, 4
      %v612 = vshll.u32 %v290, 16
      %v614 = vrot.slane %v612, 5
      %v615 = vsel %vm313, %v610, %v614
      %v616 = vshrl.u32 %v290, 16
      %v618 = vrot.slane %v616, 4
      %v619 = vor.u32 %v618, %v614
      %v620 = vrot.slane %v619, 4
      %v622 = vshll.u32 %v291, 16
      %v624 = vrot.slane %v622, 5
      %v625 = vsel %vm313, %v620, %v624
      %v627 = vshrl.u32 %v292, 16
      %v629 = vrot.slane %v627, 4
      %v630 = vshll.u32 %v292, 16
      %v632 = vrot.slane %v630, 5
      %v633 = vor.u32 %v629, %v632
      %v634 = vrot.slane %v633, 4
      %v636 = vshll.u32 %v293, 16
      %v638 = vrot.slane %v636, 5
      %v639 = vsel %vm313, %v634, %v638
      %v640 = vshrl.u32 %v293, 16
      %v642 = vrot.slane %v640, 4
      %v643 = vor.u32 %v642, %v638
      %v644 = vrot.slane %v643, 4
      %v646 = vshll.u32 %v294, 16
      %v648 = vrot.slane %v646, 5
      %v649 = vsel %vm313, %v644, %v648
      %v651 = vshrl.u32 %v295, 16
      %v653 = vrot.slane %v651, 4
      %v654 = vshll.u32 %v295, 16
      %v656 = vrot.slane %v654, 5
      %v657 = vor.u32 %v653, %v656
      %v658 = vrot.slane %v657, 4
      %v660 = vshll.u32 %v296, 16
      %v662 = vrot.slane %v660, 5
      %v663 = vsel %vm313, %v658, %v662
      %v664 = vshrl.u32 %v296, 16
      %v666 = vrot.slane %v664, 4
      %v667 = vor.u32 %v666, %v662
      %v668 = vrot.slane %v667, 4
      %v670 = vshll.u32 %v297, 16
      %v672 = vrot.slane %v670, 5
      %v673 = vsel %vm313, %v668, %v672
      %v675 = vshrl.u32 %v298, 16
      %v677 = vrot.slane %v675, 4
      %v678 = vshll.u32 %v298, 16
      %v680 = vrot.slane %v678, 5
      %v681 = vor.u32 %v677, %v680
      %v682 = vrot.slane %v681, 4
      %v684 = vshll.u32 %v299, 16
      %v686 = vrot.slane %v684, 5
      %v687 = vsel %vm313, %v682, %v686
      %v688 = vshrl.u32 %v299, 16
      %v690 = vrot.slane %v688, 4
      %v691 = vor.u32 %v690, %v686
      %v692 = vrot.slane %v691, 4
      %v694 = vshll.u32 %v300, 16
      %v696 = vrot.slane %v694, 5
      %v697 = vsel %vm313, %v692, %v696
      %s698 = scalar_lea.vmem %s1, 16
      %v699 = vld [vmem:[%s698] sm:$0xf]
      %v700 = vld [vmem:[%s698 + $0x4] sm:$0xf]
      %v701 = vld [vmem:[%s698 + $0x8] sm:$0xf]
      %v702 = vld [vmem:[%s698 + $0xc] sm:$0xf]
      %v703 = vunpack.c.l.b16 %v327
      %v704 = vunpack.c.l.b16 %v337
      %v705 = vunpack.c.l.b16 %v351
      %v706 = vunpack.c.l.b16 %v361
      %v707 = vunpack.c.l.b16 %v375
      %v708 = vunpack.c.l.b16 %v385
      %v709 = vunpack.c.l.b16 %v399
      %v710 = vunpack.c.l.b16 %v409
      %v711 = vunpack.c.l.b16 %v423
      %v712 = vunpack.c.l.b16 %v433
      %v713 = vunpack.c.l.b16 %v447
      %v714 = vunpack.c.l.b16 %v457
      %v715 = vunpack.c.l.b16 %v471
      %v716 = vunpack.c.l.b16 %v481
      %v717 = vunpack.c.l.b16 %v495
      %v718 = vunpack.c.l.b16 %v505
      %v719 = vunpack.c.l.b16 %v519
      %v720 = vunpack.c.l.b16 %v529
      %v721 = vunpack.c.l.b16 %v543
      %v722 = vunpack.c.l.b16 %v553
      %v723 = vunpack.c.l.b16 %v567
      %v724 = vunpack.c.l.b16 %v577
      %v725 = vunpack.c.l.b16 %v591
      %v726 = vunpack.c.l.b16 %v601
      %v727 = vunpack.c.l.b16 %v615
      %v728 = vunpack.c.l.b16 %v625
      %v729 = vunpack.c.l.b16 %v639
      %v730 = vunpack.c.l.b16 %v649
      %v731 = vunpack.c.l.b16 %v663
      %v732 = vunpack.c.l.b16 %v673
      %v733 = vunpack.c.l.b16 %v687
      %v734 = vunpack.c.l.b16 %v697
      %v735 = vpack.c.b16 %v704, %v703
      %v736 = vpack.c.b16 %v706, %v705
      %v737 = vpack.c.b16 %v708, %v707
      %v738 = vpack.c.b16 %v710, %v709
      %v739 = vpack.c.b16 %v712, %v711
      %v740 = vpack.c.b16 %v714, %v713
      %v741 = vpack.c.b16 %v716, %v715
      %v742 = vpack.c.b16 %v718, %v717
      %v743 = vpack.c.b16 %v720, %v719
      %v744 = vpack.c.b16 %v722, %v721
      %v745 = vpack.c.b16 %v724, %v723
      %v746 = vpack.c.b16 %v726, %v725
      %v747 = vpack.c.b16 %v728, %v727
      %v748 = vpack.c.b16 %v730, %v729
      %v749 = vpack.c.b16 %v732, %v731
      %v750 = vpack.c.b16 %v734, %v733
      %v755 = vunpack.c.l.b16 %v699
      %v756 = vunpack.c.l.b16 %v700
      %v757 = vunpack.c.l.b16 %v701
      %v758 = vunpack.c.l.b16 %v702
      %v759 = vpack.c.b16 %v756, %v755
      %v760 = vpack.c.b16 %v758, %v757
      %vm763 = vcmask 261120
      %v765 = vsel %vm763, %v735, 0
      %v768 = vsel %vm763, %v736, 0
      %v771 = vsel %vm763, %v737, 0
      %v774 = vsel %vm763, %v738, 0
      %v777 = vsel %vm763, %v739, 0
      %v780 = vsel %vm763, %v740, 0
      %v783 = vsel %vm763, %v741, 0
      %v786 = vsel %vm763, %v742, 0
      %v789 = vsel %vm763, %v743, 0
      %v792 = vsel %vm763, %v744, 0
      %v795 = vsel %vm763, %v745, 0
      %v798 = vsel %vm763, %v746, 0
      %v801 = vsel %vm763, %v747, 0
      %v804 = vsel %vm763, %v748, 0
      %v807 = vsel %vm763, %v749, 0
      %v810 = vsel %vm763, %v750, 0
      %812 = vmatprep.subr.bf16.mxu0 0
      %813 = vmatpush1.bf16.msra.mxu0 %v759
      %814 = vmatprep.subr.bf16.mxu0 0
      %815 = vmatpush1.bf16.msra.mxu0 %v760
      %816 = vmatprep.subr.bf16.mxu0 0
      %817 = vmatpush1.bf16.msra.mxu0 0
      %818 = vmatprep.subr.bf16.mxu0 0
      %819 = vmatpush1.bf16.msra.mxu0 0
      %820 = vmatprep.subr.bf16.mxu0 0
      %821 = vmatpush1.bf16.msra.mxu0 0
      %822 = vmatprep.subr.bf16.mxu0 0
      %823 = vmatpush1.bf16.msra.mxu0 0
      %824 = vmatprep.subr.bf16.mxu0 0
      %825 = vmatpush1.bf16.msra.mxu0 0
      %826 = vmatprep.subr.bf16.mxu0 0
      %827 = vmatpush1.bf16.msra.mxu0 0
      %828 = vmatprep.subr.bf16.mxu0 0
      %829 = vmatpush1.bf16.msra.mxu0 0
      %830 = vmatprep.subr.bf16.mxu0 0
      %831 = vmatpush1.bf16.msra.mxu0 0
      %832 = vmatprep.subr.bf16.mxu0 0
      %833 = vmatpush1.bf16.msra.mxu0 0
      %834 = vmatprep.subr.bf16.mxu0 0
      %835 = vmatpush1.bf16.msra.mxu0 0
      %836 = vmatprep.subr.bf16.mxu0 0
      %837 = vmatpush1.bf16.msra.mxu0 0
      %838 = vmatprep.subr.bf16.mxu0 0
      %839 = vmatpush1.bf16.msra.mxu0 0
      %840 = vmatprep.subr.bf16.mxu0 0
      %841 = vmatpush1.bf16.msra.mxu0 0
      %842 = vmatprep.subr.bf16.mxu0 0
      %843 = vmatpush1.bf16.msra.mxu0 0
      %844 = vmatprep.mubr.bf16.mxu0 0
      %845 = vmatmul.mubr.bf16.gmra.mrb[0].mxu0 %v765
      %v846 = vpop.f32.mrb[0].mxu0
      %v847 = vadd.f32 0.0, %v846
      %v848 = vpop.f32.mrb[0].mxu0
      %v849 = vpop.f32.mrb[0].mxu0
      %v850 = vadd.f32 0.0, %v849
      %v851 = vpop.f32.mrb[0].mxu0
      %852 = vmatprep.mubr.bf16.mxu0 0
      %853 = vmatmul.mubr.bf16.gmra.mrb[0].mxu0 %v768
      %v854 = vpop.f32.mrb[0].mxu0
      %v855 = vadd.f32 0.0, %v854
      %v856 = vpop.f32.mrb[0].mxu0
      %v857 = vpop.f32.mrb[0].mxu0
      %v858 = vadd.f32 0.0, %v857
      %v859 = vpop.f32.mrb[0].mxu0
      %860 = vmatprep.mubr.bf16.mxu0 0
      %861 = vmatmul.mubr.bf16.gmra.mrb[0].mxu0 %v771
      %v862 = vpop.f32.mrb[0].mxu0
      %v863 = vadd.f32 0.0, %v862
      %v864 = vpop.f32.mrb[0].mxu0
      %v865 = vpop.f32.mrb[0].mxu0
      %v866 = vadd.f32 0.0, %v865
      %v867 = vpop.f32.mrb[0].mxu0
      %868 = vmatprep.mubr.bf16.mxu0 0
      %869 = vmatmul.mubr.bf16.gmra.mrb[0].mxu0 %v774
      %v870 = vpop.f32.mrb[0].mxu0
      %v871 = vadd.f32 0.0, %v870
      %v872 = vpop.f32.mrb[0].mxu0
      %v873 = vpop.f32.mrb[0].mxu0
      %v874 = vadd.f32 0.0, %v873
      %v875 = vpop.f32.mrb[0].mxu0
      %876 = vmatprep.mubr.bf16.mxu0 0
      %877 = vmatmul.mubr.bf16.gmra.mrb[0].mxu0 %v777
      %v878 = vpop.f32.mrb[0].mxu0
      %v879 = vadd.f32 0.0, %v878
      %v880 = vpop.f32.mrb[0].mxu0
      %v881 = vpop.f32.mrb[0].mxu0
      %v882 = vadd.f32 0.0, %v881
      %v883 = vpop.f32.mrb[0].mxu0
      %884 = vmatprep.mubr.bf16.mxu0 0
      %885 = vmatmul.mubr.bf16.gmra.mrb[0].mxu0 %v780
      %v886 = vpop.f32.mrb[0].mxu0
      %v887 = vadd.f32 0.0, %v886
      %v888 = vpop.f32.mrb[0].mxu0
      %v889 = vpop.f32.mrb[0].mxu0
      %v890 = vadd.f32 0.0, %v889
      %v891 = vpop.f32.mrb[0].mxu0
      %892 = vmatprep.mubr.bf16.mxu0 0
      %893 = vmatmul.mubr.bf16.gmra.mrb[0].mxu0 %v783
      %v894 = vpop.f32.mrb[0].mxu0
      %v895 = vadd.f32 0.0, %v894
      %v896 = vpop.f32.mrb[0].mxu0
      %v897 = vpop.f32.mrb[0].mxu0
      %v898 = vadd.f32 0.0, %v897
      %v899 = vpop.f32.mrb[0].mxu0
      %900 = vmatprep.mubr.bf16.mxu0 0
      %901 = vmatmul.mubr.bf16.gmra.mrb[0].mxu0 %v786
      %v902 = vpop.f32.mrb[0].mxu0
      %v903 = vadd.f32 0.0, %v902
      %v904 = vpop.f32.mrb[0].mxu0
      %v905 = vpop.f32.mrb[0].mxu0
      %v906 = vadd.f32 0.0, %v905
      %v907 = vpop.f32.mrb[0].mxu0
      %908 = vmatprep.mubr.bf16.mxu0 0
      %909 = vmatmul.mubr.bf16.gmra.mrb[0].mxu0 %v789
      %v910 = vpop.f32.mrb[0].mxu0
      %v911 = vadd.f32 0.0, %v910
      %v912 = vpop.f32.mrb[0].mxu0
      %v913 = vpop.f32.mrb[0].mxu0
      %v914 = vadd.f32 0.0, %v913
      %v915 = vpop.f32.mrb[0].mxu0
      %916 = vmatprep.mubr.bf16.mxu0 0
      %917 = vmatmul.mubr.bf16.gmra.mrb[0].mxu0 %v792
      %v918 = vpop.f32.mrb[0].mxu0
      %v919 = vadd.f32 0.0, %v918
      %v920 = vpop.f32.mrb[0].mxu0
      %v921 = vpop.f32.mrb[0].mxu0
      %v922 = vadd.f32 0.0, %v921
      %v923 = vpop.f32.mrb[0].mxu0
      %924 = vmatprep.mubr.bf16.mxu0 0
      %925 = vmatmul.mubr.bf16.gmra.mrb[0].mxu0 %v795
      %v926 = vpop.f32.mrb[0].mxu0
      %v927 = vadd.f32 0.0, %v926
      %v928 = vpop.f32.mrb[0].mxu0
      %v929 = vpop.f32.mrb[0].mxu0
      %v930 = vadd.f32 0.0, %v929
      %v931 = vpop.f32.mrb[0].mxu0
      %932 = vmatprep.mubr.bf16.mxu0 0
      %933 = vmatmul.mubr.bf16.gmra.mrb[0].mxu0 %v798
      %v934 = vpop.f32.mrb[0].mxu0
      %v935 = vadd.f32 0.0, %v934
      %v936 = vpop.f32.mrb[0].mxu0
      %v937 = vpop.f32.mrb[0].mxu0
      %v938 = vadd.f32 0.0, %v937
      %v939 = vpop.f32.mrb[0].mxu0
      %940 = vmatprep.mubr.bf16.mxu0 0
      %941 = vmatmul.mubr.bf16.gmra.mrb[0].mxu0 %v801
      %v942 = vpop.f32.mrb[0].mxu0
      %v943 = vadd.f32 0.0, %v942
      %v944 = vpop.f32.mrb[0].mxu0
      %v945 = vpop.f32.mrb[0].mxu0
      %v946 = vadd.f32 0.0, %v945
      %v947 = vpop.f32.mrb[0].mxu0
      %948 = vmatprep.mubr.bf16.mxu0 0
      %949 = vmatmul.mubr.bf16.gmra.mrb[0].mxu0 %v804
      %v950 = vpop.f32.mrb[0].mxu0
      %v951 = vadd.f32 0.0, %v950
      %v952 = vpop.f32.mrb[0].mxu0
      %v953 = vpop.f32.mrb[0].mxu0
      %v954 = vadd.f32 0.0, %v953
      %v955 = vpop.f32.mrb[0].mxu0
      %956 = vmatprep.mubr.bf16.mxu0 0
      %957 = vmatmul.mubr.bf16.gmra.mrb[0].mxu0 %v807
      %v958 = vpop.f32.mrb[0].mxu0
      %v959 = vadd.f32 0.0, %v958
      %v960 = vpop.f32.mrb[0].mxu0
      %v961 = vpop.f32.mrb[0].mxu0
      %v962 = vadd.f32 0.0, %v961
      %v963 = vpop.f32.mrb[0].mxu0
      %964 = vmatprep.mubr.bf16.mxu0 0
      %965 = vmatmul.mubr.bf16.gmra.mrb[0].mxu0 %v810
      %v966 = vpop.f32.mrb[0].mxu0
      %v967 = vadd.f32 0.0, %v966
      %v968 = vpop.f32.mrb[0].mxu0
      %v969 = vpop.f32.mrb[0].mxu0
      %v970 = vadd.f32 0.0, %v969
      %v971 = vpop.f32.mrb[0].mxu0
      %972 = vdwg.mxu0
      %v1005 = vunpack.c.l.b16 %v253
      %v1006 = vunpack.c.l.b16 %v254
      %v1007 = vunpack.c.l.b16 %v256
      %v1008 = vunpack.c.l.b16 %v257
      %v1009 = vunpack.c.l.b16 %v259
      %v1010 = vunpack.c.l.b16 %v260
      %v1011 = vunpack.c.l.b16 %v262
      %v1012 = vunpack.c.l.b16 %v263
      %v1013 = vunpack.c.l.b16 %v265
      %v1014 = vunpack.c.l.b16 %v266
      %v1015 = vunpack.c.l.b16 %v268
      %v1016 = vunpack.c.l.b16 %v269
      %v1017 = vunpack.c.l.b16 %v271
      %v1018 = vunpack.c.l.b16 %v272
      %v1019 = vunpack.c.l.b16 %v274
      %v1020 = vunpack.c.l.b16 %v275
      %v1021 = vunpack.c.l.b16 %v277
      %v1022 = vunpack.c.l.b16 %v278
      %v1023 = vunpack.c.l.b16 %v280
      %v1024 = vunpack.c.l.b16 %v281
      %v1025 = vunpack.c.l.b16 %v283
      %v1026 = vunpack.c.l.b16 %v284
      %v1027 = vunpack.c.l.b16 %v286
      %v1028 = vunpack.c.l.b16 %v287
      %v1029 = vunpack.c.l.b16 %v289
      %v1030 = vunpack.c.l.b16 %v290
      %v1031 = vunpack.c.l.b16 %v292
      %v1032 = vunpack.c.l.b16 %v293
      %v1033 = vunpack.c.l.b16 %v295
      %v1034 = vunpack.c.l.b16 %v296
      %v1035 = vunpack.c.l.b16 %v298
      %v1036 = vunpack.c.l.b16 %v299
      %v1037 = vpack.c.b16 %v1006, %v1005
      %v1038 = vpack.c.b16 %v1008, %v1007
      %v1039 = vpack.c.b16 %v1010, %v1009
      %v1040 = vpack.c.b16 %v1012, %v1011
      %v1041 = vpack.c.b16 %v1014, %v1013
      %v1042 = vpack.c.b16 %v1016, %v1015
      %v1043 = vpack.c.b16 %v1018, %v1017
      %v1044 = vpack.c.b16 %v1020, %v1019
      %v1045 = vpack.c.b16 %v1022, %v1021
      %v1046 = vpack.c.b16 %v1024, %v1023
      %v1047 = vpack.c.b16 %v1026, %v1025
      %v1048 = vpack.c.b16 %v1028, %v1027
      %v1049 = vpack.c.b16 %v1030, %v1029
      %v1050 = vpack.c.b16 %v1032, %v1031
      %v1051 = vpack.c.b16 %v1034, %v1033
      %v1052 = vpack.c.b16 %v1036, %v1035
      %v1057 = vunpack.c.l.b16 %v307
      %v1058 = vunpack.c.l.b16 %v308
      %v1059 = vunpack.c.l.b16 %v309
      %v1060 = vunpack.c.l.b16 %v310
      %v1061 = vpack.c.b16 %v1058, %v1057
      %v1062 = vpack.c.b16 %v1060, %v1059
      %v1066 = vsel %vm763, %v1037, 0
      %v1069 = vsel %vm763, %v1038, 0
      %v1072 = vsel %vm763, %v1039, 0
      %v1075 = vsel %vm763, %v1040, 0
      %v1078 = vsel %vm763, %v1041, 0
      %v1081 = vsel %vm763, %v1042, 0
      %v1084 = vsel %vm763, %v1043, 0
      %v1087 = vsel %vm763, %v1044, 0
      %v1090 = vsel %vm763, %v1045, 0
      %v1093 = vsel %vm763, %v1046, 0
      %v1096 = vsel %vm763, %v1047, 0
      %v1099 = vsel %vm763, %v1048, 0
      %v1102 = vsel %vm763, %v1049, 0
      %v1105 = vsel %vm763, %v1050, 0
      %v1108 = vsel %vm763, %v1051, 0
      %v1111 = vsel %vm763, %v1052, 0
      %1113 = vmatprep.subr.bf16.mxu0 0
      %1114 = vmatpush1.bf16.msra.mxu0 %v1061
      %1115 = vmatprep.subr.bf16.mxu0 0
      %1116 = vmatpush1.bf16.msra.mxu0 %v1062
      %1117 = vmatprep.subr.bf16.mxu0 0
      %1118 = vmatpush1.bf16.msra.mxu0 0
      %1119 = vmatprep.subr.bf16.mxu0 0
      %1120 = vmatpush1.bf16.msra.mxu0 0
      %1121 = vmatprep.subr.bf16.mxu0 0
      %1122 = vmatpush1.bf16.msra.mxu0 0
      %1123 = vmatprep.subr.bf16.mxu0 0
      %1124 = vmatpush1.bf16.msra.mxu0 0
      %1125 = vmatprep.subr.bf16.mxu0 0
      %1126 = vmatpush1.bf16.msra.mxu0 0
      %1127 = vmatprep.subr.bf16.mxu0 0
      %1128 = vmatpush1.bf16.msra.mxu0 0
      %1129 = vmatprep.subr.bf16.mxu0 0
      %1130 = vmatpush1.bf16.msra.mxu0 0
      %1131 = vmatprep.subr.bf16.mxu0 0
      %1132 = vmatpush1.bf16.msra.mxu0 0
      %1133 = vmatprep.subr.bf16.mxu0 0
      %1134 = vmatpush1.bf16.msra.mxu0 0
      %1135 = vmatprep.subr.bf16.mxu0 0
      %1136 = vmatpush1.bf16.msra.mxu0 0
      %1137 = vmatprep.subr.bf16.mxu0 0
      %1138 = vmatpush1.bf16.msra.mxu0 0
      %1139 = vmatprep.subr.bf16.mxu0 0
      %1140 = vmatpush1.bf16.msra.mxu0 0
      %1141 = vmatprep.subr.bf16.mxu0 0
      %1142 = vmatpush1.bf16.msra.mxu0 0
      %1143 = vmatprep.subr.bf16.mxu0 0
      %1144 = vmatpush1.bf16.msra.mxu0 0
      %1145 = vmatprep.mubr.bf16.mxu0 0
      %1146 = vmatmul.mubr.bf16.gmra.mrb[0].mxu0 %v1066
      %v1147 = vpop.f32.mrb[0].mxu0
      %v1148 = vadd.f32 %v847, %v1147
      %v1149 = vpop.f32.mrb[0].mxu0
      %v1150 = vpop.f32.mrb[0].mxu0
      %v1151 = vadd.f32 %v850, %v1150
      %v1152 = vpop.f32.mrb[0].mxu0
      %1153 = vmatprep.mubr.bf16.mxu0 0
      %1154 = vmatmul.mubr.bf16.gmra.mrb[0].mxu0 %v1069
      %v1155 = vpop.f32.mrb[0].mxu0
      %v1156 = vadd.f32 %v855, %v1155
      %v1157 = vpop.f32.mrb[0].mxu0
      %v1158 = vpop.f32.mrb[0].mxu0
      %v1159 = vadd.f32 %v858, %v1158
      %v1160 = vpop.f32.mrb[0].mxu0
      %1161 = vmatprep.mubr.bf16.mxu0 0
      %1162 = vmatmul.mubr.bf16.gmra.mrb[0].mxu0 %v1072
      %v1163 = vpop.f32.mrb[0].mxu0
      %v1164 = vadd.f32 %v863, %v1163
      %v1165 = vpop.f32.mrb[0].mxu0
      %v1166 = vpop.f32.mrb[0].mxu0
      %v1167 = vadd.f32 %v866, %v1166
      %v1168 = vpop.f32.mrb[0].mxu0
      %1169 = vmatprep.mubr.bf16.mxu0 0
      %1170 = vmatmul.mubr.bf16.gmra.mrb[0].mxu0 %v1075
      %v1171 = vpop.f32.mrb[0].mxu0
      %v1172 = vadd.f32 %v871, %v1171
      %v1173 = vpop.f32.mrb[0].mxu0
      %v1174 = vpop.f32.mrb[0].mxu0
      %v1175 = vadd.f32 %v874, %v1174
      %v1176 = vpop.f32.mrb[0].mxu0
      %1177 = vmatprep.mubr.bf16.mxu0 0
      %1178 = vmatmul.mubr.bf16.gmra.mrb[0].mxu0 %v1078
      %v1179 = vpop.f32.mrb[0].mxu0
      %v1180 = vadd.f32 %v879, %v1179
      %v1181 = vpop.f32.mrb[0].mxu0
      %v1182 = vpop.f32.mrb[0].mxu0
      %v1183 = vadd.f32 %v882, %v1182
      %v1184 = vpop.f32.mrb[0].mxu0
      %1185 = vmatprep.mubr.bf16.mxu0 0
      %1186 = vmatmul.mubr.bf16.gmra.mrb[0].mxu0 %v1081
      %v1187 = vpop.f32.mrb[0].mxu0
      %v1188 = vadd.f32 %v887, %v1187
      %v1189 = vpop.f32.mrb[0].mxu0
      %v1190 = vpop.f32.mrb[0].mxu0
      %v1191 = vadd.f32 %v890, %v1190
      %v1192 = vpop.f32.mrb[0].mxu0
      %1193 = vmatprep.mubr.bf16.mxu0 0
      %1194 = vmatmul.mubr.bf16.gmra.mrb[0].mxu0 %v1084
      %v1195 = vpop.f32.mrb[0].mxu0
      %v1196 = vadd.f32 %v895, %v1195
      %v1197 = vpop.f32.mrb[0].mxu0
      %v1198 = vpop.f32.mrb[0].mxu0
      %v1199 = vadd.f32 %v898, %v1198
      %v1200 = vpop.f32.mrb[0].mxu0
      %1201 = vmatprep.mubr.bf16.mxu0 0
      %1202 = vmatmul.mubr.bf16.gmra.mrb[0].mxu0 %v1087
      %v1203 = vpop.f32.mrb[0].mxu0
      %v1204 = vadd.f32 %v903, %v1203
      %v1205 = vpop.f32.mrb[0].mxu0
      %v1206 = vpop.f32.mrb[0].mxu0
      %v1207 = vadd.f32 %v906, %v1206
      %v1208 = vpop.f32.mrb[0].mxu0
      %1209 = vmatprep.mubr.bf16.mxu0 0
      %1210 = vmatmul.mubr.bf16.gmra.mrb[0].mxu0 %v1090
      %v1211 = vpop.f32.mrb[0].mxu0
      %v1212 = vadd.f32 %v911, %v1211
      %v1213 = vpop.f32.mrb[0].mxu0
      %v1214 = vpop.f32.mrb[0].mxu0
      %v1215 = vadd.f32 %v914, %v1214
      %v1216 = vpop.f32.mrb[0].mxu0
      %1217 = vmatprep.mubr.bf16.mxu0 0
      %1218 = vmatmul.mubr.bf16.gmra.mrb[0].mxu0 %v1093
      %v1219 = vpop.f32.mrb[0].mxu0
      %v1220 = vadd.f32 %v919, %v1219
      %v1221 = vpop.f32.mrb[0].mxu0
      %v1222 = vpop.f32.mrb[0].mxu0
      %v1223 = vadd.f32 %v922, %v1222
      %v1224 = vpop.f32.mrb[0].mxu0
      %1225 = vmatprep.mubr.bf16.mxu0 0
      %1226 = vmatmul.mubr.bf16.gmra.mrb[0].mxu0 %v1096
      %v1227 = vpop.f32.mrb[0].mxu0
      %v1228 = vadd.f32 %v927, %v1227
      %v1229 = vpop.f32.mrb[0].mxu0
      %v1230 = vpop.f32.mrb[0].mxu0
      %v1231 = vadd.f32 %v930, %v1230
      %v1232 = vpop.f32.mrb[0].mxu0
      %1233 = vmatprep.mubr.bf16.mxu0 0
      %1234 = vmatmul.mubr.bf16.gmra.mrb[0].mxu0 %v1099
      %v1235 = vpop.f32.mrb[0].mxu0
      %v1236 = vadd.f32 %v935, %v1235
      %v1237 = vpop.f32.mrb[0].mxu0
      %v1238 = vpop.f32.mrb[0].mxu0
      %v1239 = vadd.f32 %v938, %v1238
      %v1240 = vpop.f32.mrb[0].mxu0
      %1241 = vmatprep.mubr.bf16.mxu0 0
      %1242 = vmatmul.mubr.bf16.gmra.mrb[0].mxu0 %v1102
      %v1243 = vpop.f32.mrb[0].mxu0
      %v1244 = vadd.f32 %v943, %v1243
      %v1245 = vpop.f32.mrb[0].mxu0
      %v1246 = vpop.f32.mrb[0].mxu0
      %v1247 = vadd.f32 %v946, %v1246
      %v1248 = vpop.f32.mrb[0].mxu0
      %1249 = vmatprep.mubr.bf16.mxu0 0
      %1250 = vmatmul.mubr.bf16.gmra.mrb[0].mxu0 %v1105
      %v1251 = vpop.f32.mrb[0].mxu0
      %v1252 = vadd.f32 %v951, %v1251
      %v1253 = vpop.f32.mrb[0].mxu0
      %v1254 = vpop.f32.mrb[0].mxu0
      %v1255 = vadd.f32 %v954, %v1254
      %v1256 = vpop.f32.mrb[0].mxu0
      %1257 = vmatprep.mubr.bf16.mxu0 0
      %1258 = vmatmul.mubr.bf16.gmra.mrb[0].mxu0 %v1108
      %v1259 = vpop.f32.mrb[0].mxu0
      %v1260 = vadd.f32 %v959, %v1259
      %v1261 = vpop.f32.mrb[0].mxu0
      %v1262 = vpop.f32.mrb[0].mxu0
      %v1263 = vadd.f32 %v962, %v1262
      %v1264 = vpop.f32.mrb[0].mxu0
      %1265 = vmatprep.mubr.bf16.mxu0 0
      %1266 = vmatmul.mubr.bf16.gmra.mrb[0].mxu0 %v1111
      %v1267 = vpop.f32.mrb[0].mxu0
      %v1268 = vadd.f32 %v967, %v1267
      %v1269 = vpop.f32.mrb[0].mxu0
      %v1270 = vpop.f32.mrb[0].mxu0
      %v1271 = vadd.f32 %v970, %v1270
      %v1272 = vpop.f32.mrb[0].mxu0
      %1273 = vdwg.mxu0
      %vm1290 = vcmask 1042432
      %vm1291 = vcmask 1046532
      %vm1292 = vmor %vm1290, %vm1291
      %v1293 = vrot.slane %v253, 5
      %v1294 = vrot.slane %v1293, 4
      %v1295 = vrot.slane %v254, 5
      %v1296 = vsel %vm1292, %v1294, %v1295
      %v1297 = vrot.slane %v1295, 4
      %v1298 = vrot.slane %v255, 5
      %v1299 = vsel %vm1292, %v1297, %v1298
      %v1300 = vrot.slane %v256, 5
      %v1301 = vrot.slane %v1300, 4
      %v1302 = vrot.slane %v257, 5
      %v1303 = vsel %vm1292, %v1301, %v1302
      %v1304 = vrot.slane %v1302, 4
      %v1305 = vrot.slane %v258, 5
      %v1306 = vsel %vm1292, %v1304, %v1305
      %v1307 = vrot.slane %v259, 5
      %v1308 = vrot.slane %v1307, 4
      %v1309 = vrot.slane %v260, 5
      %v1310 = vsel %vm1292, %v1308, %v1309
      %v1311 = vrot.slane %v1309, 4
      %v1312 = vrot.slane %v261, 5
      %v1313 = vsel %vm1292, %v1311, %v1312
      %v1314 = vrot.slane %v262, 5
      %v1315 = vrot.slane %v1314, 4
      %v1316 = vrot.slane %v263, 5
      %v1317 = vsel %vm1292, %v1315, %v1316
      %v1318 = vrot.slane %v1316, 4
      %v1319 = vrot.slane %v264, 5
      %v1320 = vsel %vm1292, %v1318, %v1319
      %v1321 = vrot.slane %v265, 5
      %v1322 = vrot.slane %v1321, 4
      %v1323 = vrot.slane %v266, 5
      %v1324 = vsel %vm1292, %v1322, %v1323
      %v1325 = vrot.slane %v1323, 4
      %v1326 = vrot.slane %v267, 5
      %v1327 = vsel %vm1292, %v1325, %v1326
      %v1328 = vrot.slane %v268, 5
      %v1329 = vrot.slane %v1328, 4
      %v1330 = vrot.slane %v269, 5
      %v1331 = vsel %vm1292, %v1329, %v1330
      %v1332 = vrot.slane %v1330, 4
      %v1333 = vrot.slane %v270, 5
      %v1334 = vsel %vm1292, %v1332, %v1333
      %v1335 = vrot.slane %v271, 5
      %v1336 = vrot.slane %v1335, 4
      %v1337 = vrot.slane %v272, 5
      %v1338 = vsel %vm1292, %v1336, %v1337
      %v1339 = vrot.slane %v1337, 4
      %v1340 = vrot.slane %v273, 5
      %v1341 = vsel %vm1292, %v1339, %v1340
      %v1342 = vrot.slane %v274, 5
      %v1343 = vrot.slane %v1342, 4
      %v1344 = vrot.slane %v275, 5
      %v1345 = vsel %vm1292, %v1343, %v1344
      %v1346 = vrot.slane %v1344, 4
      %v1347 = vrot.slane %v276, 5
      %v1348 = vsel %vm1292, %v1346, %v1347
      %v1349 = vrot.slane %v277, 5
      %v1350 = vrot.slane %v1349, 4
      %v1351 = vrot.slane %v278, 5
      %v1352 = vsel %vm1292, %v1350, %v1351
      %v1353 = vrot.slane %v1351, 4
      %v1354 = vrot.slane %v279, 5
      %v1355 = vsel %vm1292, %v1353, %v1354
      %v1356 = vrot.slane %v280, 5
      %v1357 = vrot.slane %v1356, 4
      %v1358 = vrot.slane %v281, 5
      %v1359 = vsel %vm1292, %v1357, %v1358
      %v1360 = vrot.slane %v1358, 4
      %v1361 = vrot.slane %v282, 5
      %v1362 = vsel %vm1292, %v1360, %v1361
      %v1363 = vrot.slane %v283, 5
      %v1364 = vrot.slane %v1363, 4
      %v1365 = vrot.slane %v284, 5
      %v1366 = vsel %vm1292, %v1364, %v1365
      %v1367 = vrot.slane %v1365, 4
      %v1368 = vrot.slane %v285, 5
      %v1369 = vsel %vm1292, %v1367, %v1368
      %v1370 = vrot.slane %v286, 5
      %v1371 = vrot.slane %v1370, 4
      %v1372 = vrot.slane %v287, 5
      %v1373 = vsel %vm1292, %v1371, %v1372
      %v1374 = vrot.slane %v1372, 4
      %v1375 = vrot.slane %v288, 5
      %v1376 = vsel %vm1292, %v1374, %v1375
      %v1377 = vrot.slane %v289, 5
      %v1378 = vrot.slane %v1377, 4
      %v1379 = vrot.slane %v290, 5
      %v1380 = vsel %vm1292, %v1378, %v1379
      %v1381 = vrot.slane %v1379, 4
      %v1382 = vrot.slane %v291, 5
      %v1383 = vsel %vm1292, %v1381, %v1382
      %v1384 = vrot.slane %v292, 5
      %v1385 = vrot.slane %v1384, 4
      %v1386 = vrot.slane %v293, 5
      %v1387 = vsel %vm1292, %v1385, %v1386
      %v1388 = vrot.slane %v1386, 4
      %v1389 = vrot.slane %v294, 5
      %v1390 = vsel %vm1292, %v1388, %v1389
      %v1391 = vrot.slane %v295, 5
      %v1392 = vrot.slane %v1391, 4
      %v1393 = vrot.slane %v296, 5
      %v1394 = vsel %vm1292, %v1392, %v1393
      %v1395 = vrot.slane %v1393, 4
      %v1396 = vrot.slane %v297, 5
      %v1397 = vsel %vm1292, %v1395, %v1396
      %v1398 = vrot.slane %v298, 5
      %v1399 = vrot.slane %v1398, 4
      %v1400 = vrot.slane %v299, 5
      %v1401 = vsel %vm1292, %v1399, %v1400
      %v1402 = vrot.slane %v1400, 4
      %v1403 = vrot.slane %v300, 5
      %v1404 = vsel %vm1292, %v1402, %v1403
      %s1405 = scalar_lea.vmem %s1, 32
      %v1406 = vld [vmem:[%s1405] sm:$0xf]
      %v1407 = vld [vmem:[%s1405 + $0x4] sm:$0xf]
      %v1408 = vld [vmem:[%s1405 + $0x8] sm:$0xf]
      %v1409 = vld [vmem:[%s1405 + $0xc] sm:$0xf]
      %v1410 = vunpack.c.l.b16 %v1296
      %v1411 = vunpack.c.l.b16 %v1299
      %v1412 = vunpack.c.l.b16 %v1303
      %v1413 = vunpack.c.l.b16 %v1306
      %v1414 = vunpack.c.l.b16 %v1310
      %v1415 = vunpack.c.l.b16 %v1313
      %v1416 = vunpack.c.l.b16 %v1317
      %v1417 = vunpack.c.l.b16 %v1320
      %v1418 = vunpack.c.l.b16 %v1324
      %v1419 = vunpack.c.l.b16 %v1327
      %v1420 = vunpack.c.l.b16 %v1331
      %v1421 = vunpack.c.l.b16 %v1334
      %v1422 = vunpack.c.l.b16 %v1338
      %v1423 = vunpack.c.l.b16 %v1341
      %v1424 = vunpack.c.l.b16 %v1345
      %v1425 = vunpack.c.l.b16 %v1348
      %v1426 = vunpack.c.l.b16 %v1352
      %v1427 = vunpack.c.l.b16 %v1355
      %v1428 = vunpack.c.l.b16 %v1359
      %v1429 = vunpack.c.l.b16 %v1362
      %v1430 = vunpack.c.l.b16 %v1366
      %v1431 = vunpack.c.l.b16 %v1369
      %v1432 = vunpack.c.l.b16 %v1373
      %v1433 = vunpack.c.l.b16 %v1376
      %v1434 = vunpack.c.l.b16 %v1380
      %v1435 = vunpack.c.l.b16 %v1383
      %v1436 = vunpack.c.l.b16 %v1387
      %v1437 = vunpack.c.l.b16 %v1390
      %v1438 = vunpack.c.l.b16 %v1394
      %v1439 = vunpack.c.l.b16 %v1397
      %v1440 = vunpack.c.l.b16 %v1401
      %v1441 = vunpack.c.l.b16 %v1404
      %v1442 = vpack.c.b16 %v1411, %v1410
      %v1443 = vpack.c.b16 %v1413, %v1412
      %v1444 = vpack.c.b16 %v1415, %v1414
      %v1445 = vpack.c.b16 %v1417, %v1416
      %v1446 = vpack.c.b16 %v1419, %v1418
      %v1447 = vpack.c.b16 %v1421, %v1420
      %v1448 = vpack.c.b16 %v1423, %v1422
      %v1449 = vpack.c.b16 %v1425, %v1424
      %v1450 = vpack.c.b16 %v1427, %v1426
      %v1451 = vpack.c.b16 %v1429, %v1428
      %v1452 = vpack.c.b16 %v1431, %v1430
      %v1453 = vpack.c.b16 %v1433, %v1432
      %v1454 = vpack.c.b16 %v1435, %v1434
      %v1455 = vpack.c.b16 %v1437, %v1436
      %v1456 = vpack.c.b16 %v1439, %v1438
      %v1457 = vpack.c.b16 %v1441, %v1440
      %v1462 = vunpack.c.l.b16 %v1406
      %v1463 = vunpack.c.l.b16 %v1407
      %v1464 = vunpack.c.l.b16 %v1408
      %v1465 = vunpack.c.l.b16 %v1409
      %v1466 = vpack.c.b16 %v1463, %v1462
      %v1467 = vpack.c.b16 %v1465, %v1464
      %v1471 = vsel %vm763, %v1442, 0
      %v1474 = vsel %vm763, %v1443, 0
      %v1477 = vsel %vm763, %v1444, 0
      %v1480 = vsel %vm763, %v1445, 0
      %v1483 = vsel %vm763, %v1446, 0
      %v1486 = vsel %vm763, %v1447, 0
      %v1489 = vsel %vm763, %v1448, 0
      %v1492 = vsel %vm763, %v1449, 0
      %v1495 = vsel %vm763, %v1450, 0
      %v1498 = vsel %vm763, %v1451, 0
      %v1501 = vsel %vm763, %v1452, 0
      %v1504 = vsel %vm763, %v1453, 0
      %v1507 = vsel %vm763, %v1454, 0
      %v1510 = vsel %vm763, %v1455, 0
      %v1513 = vsel %vm763, %v1456, 0
      %v1516 = vsel %vm763, %v1457, 0
      %1518 = vmatprep.subr.bf16.mxu0 0
      %1519 = vmatpush1.bf16.msra.mxu0 %v1466
      %1520 = vmatprep.subr.bf16.mxu0 0
      %1521 = vmatpush1.bf16.msra.mxu0 %v1467
      %1522 = vmatprep.subr.bf16.mxu0 0
      %1523 = vmatpush1.bf16.msra.mxu0 0
      %1524 = vmatprep.subr.bf16.mxu0 0
      %1525 = vmatpush1.bf16.msra.mxu0 0
      %1526 = vmatprep.subr.bf16.mxu0 0
      %1527 = vmatpush1.bf16.msra.mxu0 0
      %1528 = vmatprep.subr.bf16.mxu0 0
      %1529 = vmatpush1.bf16.msra.mxu0 0
      %1530 = vmatprep.subr.bf16.mxu0 0
      %1531 = vmatpush1.bf16.msra.mxu0 0
      %1532 = vmatprep.subr.bf16.mxu0 0
      %1533 = vmatpush1.bf16.msra.mxu0 0
      %1534 = vmatprep.subr.bf16.mxu0 0
      %1535 = vmatpush1.bf16.msra.mxu0 0
      %1536 = vmatprep.subr.bf16.mxu0 0
      %1537 = vmatpush1.bf16.msra.mxu0 0
      %1538 = vmatprep.subr.bf16.mxu0 0
      %1539 = vmatpush1.bf16.msra.mxu0 0
      %1540 = vmatprep.subr.bf16.mxu0 0
      %1541 = vmatpush1.bf16.msra.mxu0 0
      %1542 = vmatprep.subr.bf16.mxu0 0
      %1543 = vmatpush1.bf16.msra.mxu0 0
      %1544 = vmatprep.subr.bf16.mxu0 0
      %1545 = vmatpush1.bf16.msra.mxu0 0
      %1546 = vmatprep.subr.bf16.mxu0 0
      %1547 = vmatpush1.bf16.msra.mxu0 0
      %1548 = vmatprep.subr.bf16.mxu0 0
      %1549 = vmatpush1.bf16.msra.mxu0 0
      %1550 = vmatprep.mubr.bf16.mxu0 0
      %1551 = vmatmul.mubr.bf16.gmra.mrb[0].mxu0 %v1471
      %v1552 = vpop.f32.mrb[0].mxu0
      %v1553 = vadd.f32 0.0, %v1552
      %v1554 = vpop.f32.mrb[0].mxu0
      %v1555 = vpop.f32.mrb[0].mxu0
      %v1556 = vadd.f32 0.0, %v1555
      %v1557 = vpop.f32.mrb[0].mxu0
      %1558 = vmatprep.mubr.bf16.mxu0 0
      %1559 = vmatmul.mubr.bf16.gmra.mrb[0].mxu0 %v1474
      %v1560 = vpop.f32.mrb[0].mxu0
      %v1561 = vadd.f32 0.0, %v1560
      %v1562 = vpop.f32.mrb[0].mxu0
      %v1563 = vpop.f32.mrb[0].mxu0
      %v1564 = vadd.f32 0.0, %v1563
      %v1565 = vpop.f32.mrb[0].mxu0
      %1566 = vmatprep.mubr.bf16.mxu0 0
      %1567 = vmatmul.mubr.bf16.gmra.mrb[0].mxu0 %v1477
      %v1568 = vpop.f32.mrb[0].mxu0
      %v1569 = vadd.f32 0.0, %v1568
      %v1570 = vpop.f32.mrb[0].mxu0
      %v1571 = vpop.f32.mrb[0].mxu0
      %v1572 = vadd.f32 0.0, %v1571
      %v1573 = vpop.f32.mrb[0].mxu0
      %1574 = vmatprep.mubr.bf16.mxu0 0
      %1575 = vmatmul.mubr.bf16.gmra.mrb[0].mxu0 %v1480
      %v1576 = vpop.f32.mrb[0].mxu0
      %v1577 = vadd.f32 0.0, %v1576
      %v1578 = vpop.f32.mrb[0].mxu0
      %v1579 = vpop.f32.mrb[0].mxu0
      %v1580 = vadd.f32 0.0, %v1579
      %v1581 = vpop.f32.mrb[0].mxu0
      %1582 = vmatprep.mubr.bf16.mxu0 0
      %1583 = vmatmul.mubr.bf16.gmra.mrb[0].mxu0 %v1483
      %v1584 = vpop.f32.mrb[0].mxu0
      %v1585 = vadd.f32 0.0, %v1584
      %v1586 = vpop.f32.mrb[0].mxu0
      %v1587 = vpop.f32.mrb[0].mxu0
      %v1588 = vadd.f32 0.0, %v1587
      %v1589 = vpop.f32.mrb[0].mxu0
      %1590 = vmatprep.mubr.bf16.mxu0 0
      %1591 = vmatmul.mubr.bf16.gmra.mrb[0].mxu0 %v1486
      %v1592 = vpop.f32.mrb[0].mxu0
      %v1593 = vadd.f32 0.0, %v1592
      %v1594 = vpop.f32.mrb[0].mxu0
      %v1595 = vpop.f32.mrb[0].mxu0
      %v1596 = vadd.f32 0.0, %v1595
      %v1597 = vpop.f32.mrb[0].mxu0
      %1598 = vmatprep.mubr.bf16.mxu0 0
      %1599 = vmatmul.mubr.bf16.gmra.mrb[0].mxu0 %v1489
      %v1600 = vpop.f32.mrb[0].mxu0
      %v1601 = vadd.f32 0.0, %v1600
      %v1602 = vpop.f32.mrb[0].mxu0
      %v1603 = vpop.f32.mrb[0].mxu0
      %v1604 = vadd.f32 0.0, %v1603
      %v1605 = vpop.f32.mrb[0].mxu0
      %1606 = vmatprep.mubr.bf16.mxu0 0
      %1607 = vmatmul.mubr.bf16.gmra.mrb[0].mxu0 %v1492
      %v1608 = vpop.f32.mrb[0].mxu0
      %v1609 = vadd.f32 0.0, %v1608
      %v1610 = vpop.f32.mrb[0].mxu0
      %v1611 = vpop.f32.mrb[0].mxu0
      %v1612 = vadd.f32 0.0, %v1611
      %v1613 = vpop.f32.mrb[0].mxu0
      %1614 = vmatprep.mubr.bf16.mxu0 0
      %1615 = vmatmul.mubr.bf16.gmra.mrb[0].mxu0 %v1495
      %v1616 = vpop.f32.mrb[0].mxu0
      %v1617 = vadd.f32 0.0, %v1616
      %v1618 = vpop.f32.mrb[0].mxu0
      %v1619 = vpop.f32.mrb[0].mxu0
      %v1620 = vadd.f32 0.0, %v1619
      %v1621 = vpop.f32.mrb[0].mxu0
      %1622 = vmatprep.mubr.bf16.mxu0 0
      %1623 = vmatmul.mubr.bf16.gmra.mrb[0].mxu0 %v1498
      %v1624 = vpop.f32.mrb[0].mxu0
      %v1625 = vadd.f32 0.0, %v1624
      %v1626 = vpop.f32.mrb[0].mxu0
      %v1627 = vpop.f32.mrb[0].mxu0
      %v1628 = vadd.f32 0.0, %v1627
      %v1629 = vpop.f32.mrb[0].mxu0
      %1630 = vmatprep.mubr.bf16.mxu0 0
      %1631 = vmatmul.mubr.bf16.gmra.mrb[0].mxu0 %v1501
      %v1632 = vpop.f32.mrb[0].mxu0
      %v1633 = vadd.f32 0.0, %v1632
      %v1634 = vpop.f32.mrb[0].mxu0
      %v1635 = vpop.f32.mrb[0].mxu0
      %v1636 = vadd.f32 0.0, %v1635
      %v1637 = vpop.f32.mrb[0].mxu0
      %1638 = vmatprep.mubr.bf16.mxu0 0
      %1639 = vmatmul.mubr.bf16.gmra.mrb[0].mxu0 %v1504
      %v1640 = vpop.f32.mrb[0].mxu0
      %v1641 = vadd.f32 0.0, %v1640
      %v1642 = vpop.f32.mrb[0].mxu0
      %v1643 = vpop.f32.mrb[0].mxu0
      %v1644 = vadd.f32 0.0, %v1643
      %v1645 = vpop.f32.mrb[0].mxu0
      %1646 = vmatprep.mubr.bf16.mxu0 0
      %1647 = vmatmul.mubr.bf16.gmra.mrb[0].mxu0 %v1507
      %v1648 = vpop.f32.mrb[0].mxu0
      %v1649 = vadd.f32 0.0, %v1648
      %v1650 = vpop.f32.mrb[0].mxu0
      %v1651 = vpop.f32.mrb[0].mxu0
      %v1652 = vadd.f32 0.0, %v1651
      %v1653 = vpop.f32.mrb[0].mxu0
      %1654 = vmatprep.mubr.bf16.mxu0 0
      %1655 = vmatmul.mubr.bf16.gmra.mrb[0].mxu0 %v1510
      %v1656 = vpop.f32.mrb[0].mxu0
      %v1657 = vadd.f32 0.0, %v1656
      %v1658 = vpop.f32.mrb[0].mxu0
      %v1659 = vpop.f32.mrb[0].mxu0
      %v1660 = vadd.f32 0.0, %v1659
      %v1661 = vpop.f32.mrb[0].mxu0
      %1662 = vmatprep.mubr.bf16.mxu0 0
      %1663 = vmatmul.mubr.bf16.gmra.mrb[0].mxu0 %v1513
      %v1664 = vpop.f32.mrb[0].mxu0
      %v1665 = vadd.f32 0.0, %v1664
      %v1666 = vpop.f32.mrb[0].mxu0
      %v1667 = vpop.f32.mrb[0].mxu0
      %v1668 = vadd.f32 0.0, %v1667
      %v1669 = vpop.f32.mrb[0].mxu0
      %1670 = vmatprep.mubr.bf16.mxu0 0
      %1671 = vmatmul.mubr.bf16.gmra.mrb[0].mxu0 %v1516
      %v1672 = vpop.f32.mrb[0].mxu0
      %v1673 = vadd.f32 0.0, %v1672
      %v1674 = vpop.f32.mrb[0].mxu0
      %v1675 = vpop.f32.mrb[0].mxu0
      %v1676 = vadd.f32 0.0, %v1675
      %v1677 = vpop.f32.mrb[0].mxu0
      %1678 = vdwg.mxu0
      %v1679 = vadd.f32 %v1148, %v1553
      %v1680 = vadd.f32 %v1151, %v1556
      %v1681 = vadd.f32 %v1156, %v1561
      %v1682 = vadd.f32 %v1159, %v1564
      %v1683 = vadd.f32 %v1164, %v1569
      %v1684 = vadd.f32 %v1167, %v1572
      %v1685 = vadd.f32 %v1172, %v1577
      %v1686 = vadd.f32 %v1175, %v1580
      %v1687 = vadd.f32 %v1180, %v1585
      %v1688 = vadd.f32 %v1183, %v1588
      %v1689 = vadd.f32 %v1188, %v1593
      %v1690 = vadd.f32 %v1191, %v1596
      %v1691 = vadd.f32 %v1196, %v1601
      %v1692 = vadd.f32 %v1199, %v1604
      %v1693 = vadd.f32 %v1204, %v1609
      %v1694 = vadd.f32 %v1207, %v1612
      %v1695 = vadd.f32 %v1212, %v1617
      %v1696 = vadd.f32 %v1215, %v1620
      %v1697 = vadd.f32 %v1220, %v1625
      %v1698 = vadd.f32 %v1223, %v1628
      %v1699 = vadd.f32 %v1228, %v1633
      %v1700 = vadd.f32 %v1231, %v1636
      %v1701 = vadd.f32 %v1236, %v1641
      %v1702 = vadd.f32 %v1239, %v1644
      %v1703 = vadd.f32 %v1244, %v1649
      %v1704 = vadd.f32 %v1247, %v1652
      %v1705 = vadd.f32 %v1252, %v1657
      %v1706 = vadd.f32 %v1255, %v1660
      %v1707 = vadd.f32 %v1260, %v1665
      %v1708 = vadd.f32 %v1263, %v1668
      %v1709 = vadd.f32 %v1268, %v1673
      %v1710 = vadd.f32 %v1271, %v1676
      %s1711 = scalar_lea.vmem %s1, 48
      %v1712 = vld [vmem:[%s1711] sm:$0xf]
      %v1713 = vld [vmem:[%s1711 + $0x4] sm:$0xf]
      %v1714 = vld [vmem:[%s1711 + $0x8] sm:$0xf]
      %v1715 = vld [vmem:[%s1711 + $0xc] sm:$0xf]
      %v1718 = vunpack.c.l.b16 %v301
      %v1719 = vunpack.c.l.b16 %v302
      %v1720 = vpack.c.b16 %v1719, %v1718
      %v1725 = vunpack.c.l.b16 %v1712
      %v1726 = vunpack.c.l.b16 %v1713
      %v1727 = vunpack.c.l.b16 %v1714
      %v1728 = vunpack.c.l.b16 %v1715
      %v1729 = vpack.c.b16 %v1726, %v1725
      %v1730 = vpack.c.b16 %v1728, %v1727
      %v1734 = vsel %vm763, %v1720, 0
      %1736 = vmatprep.subr.bf16.mxu0 0
      %1737 = vmatpush1.bf16.msra.mxu0 %v1729
      %1738 = vmatprep.subr.bf16.mxu0 0
      %1739 = vmatpush1.bf16.msra.mxu0 %v1730
      %1740 = vmatprep.subr.bf16.mxu0 0
      %1741 = vmatpush1.bf16.msra.mxu0 0
      %1742 = vmatprep.subr.bf16.mxu0 0
      %1743 = vmatpush1.bf16.msra.mxu0 0
      %1744 = vmatprep.subr.bf16.mxu0 0
      %1745 = vmatpush1.bf16.msra.mxu0 0
      %1746 = vmatprep.subr.bf16.mxu0 0
      %1747 = vmatpush1.bf16.msra.mxu0 0
      %1748 = vmatprep.subr.bf16.mxu0 0
      %1749 = vmatpush1.bf16.msra.mxu0 0
      %1750 = vmatprep.subr.bf16.mxu0 0
      %1751 = vmatpush1.bf16.msra.mxu0 0
      %1752 = vmatprep.subr.bf16.mxu0 0
      %1753 = vmatpush1.bf16.msra.mxu0 0
      %1754 = vmatprep.subr.bf16.mxu0 0
      %1755 = vmatpush1.bf16.msra.mxu0 0
      %1756 = vmatprep.subr.bf16.mxu0 0
      %1757 = vmatpush1.bf16.msra.mxu0 0
      %1758 = vmatprep.subr.bf16.mxu0 0
      %1759 = vmatpush1.bf16.msra.mxu0 0
      %1760 = vmatprep.subr.bf16.mxu0 0
      %1761 = vmatpush1.bf16.msra.mxu0 0
      %1762 = vmatprep.subr.bf16.mxu0 0
      %1763 = vmatpush1.bf16.msra.mxu0 0
      %1764 = vmatprep.subr.bf16.mxu0 0
      %1765 = vmatpush1.bf16.msra.mxu0 0
      %1766 = vmatprep.subr.bf16.mxu0 0
      %1767 = vmatpush1.bf16.msra.mxu0 0
      %1768 = vmatprep.mubr.bf16.mxu0 0
      %1769 = vmatmul.mubr.bf16.gmra.mrb[0].mxu0 %v1069
      %v1770 = vpop.f32.mrb[0].mxu0
      %v1771 = vadd.f32 0.0, %v1770
      %v1772 = vpop.f32.mrb[0].mxu0
      %v1773 = vpop.f32.mrb[0].mxu0
      %v1774 = vadd.f32 0.0, %v1773
      %v1775 = vpop.f32.mrb[0].mxu0
      %1776 = vmatprep.mubr.bf16.mxu0 0
      %1777 = vmatmul.mubr.bf16.gmra.mrb[0].mxu0 %v1072
      %v1778 = vpop.f32.mrb[0].mxu0
      %v1779 = vadd.f32 0.0, %v1778
      %v1780 = vpop.f32.mrb[0].mxu0
      %v1781 = vpop.f32.mrb[0].mxu0
      %v1782 = vadd.f32 0.0, %v1781
      %v1783 = vpop.f32.mrb[0].mxu0
      %1784 = vmatprep.mubr.bf16.mxu0 0
      %1785 = vmatmul.mubr.bf16.gmra.mrb[0].mxu0 %v1075
      %v1786 = vpop.f32.mrb[0].mxu0
      %v1787 = vadd.f32 0.0, %v1786
      %v1788 = vpop.f32.mrb[0].mxu0
      %v1789 = vpop.f32.mrb[0].mxu0
      %v1790 = vadd.f32 0.0, %v1789
      %v1791 = vpop.f32.mrb[0].mxu0
      %1792 = vmatprep.mubr.bf16.mxu0 0
      %1793 = vmatmul.mubr.bf16.gmra.mrb[0].mxu0 %v1078
      %v1794 = vpop.f32.mrb[0].mxu0
      %v1795 = vadd.f32 0.0, %v1794
      %v1796 = vpop.f32.mrb[0].mxu0
      %v1797 = vpop.f32.mrb[0].mxu0
      %v1798 = vadd.f32 0.0, %v1797
      %v1799 = vpop.f32.mrb[0].mxu0
      %1800 = vmatprep.mubr.bf16.mxu0 0
      %1801 = vmatmul.mubr.bf16.gmra.mrb[0].mxu0 %v1081
      %v1802 = vpop.f32.mrb[0].mxu0
      %v1803 = vadd.f32 0.0, %v1802
      %v1804 = vpop.f32.mrb[0].mxu0
      %v1805 = vpop.f32.mrb[0].mxu0
      %v1806 = vadd.f32 0.0, %v1805
      %v1807 = vpop.f32.mrb[0].mxu0
      %1808 = vmatprep.mubr.bf16.mxu0 0
      %1809 = vmatmul.mubr.bf16.gmra.mrb[0].mxu0 %v1084
      %v1810 = vpop.f32.mrb[0].mxu0
      %v1811 = vadd.f32 0.0, %v1810
      %v1812 = vpop.f32.mrb[0].mxu0
      %v1813 = vpop.f32.mrb[0].mxu0
      %v1814 = vadd.f32 0.0, %v1813
      %v1815 = vpop.f32.mrb[0].mxu0
      %1816 = vmatprep.mubr.bf16.mxu0 0
      %1817 = vmatmul.mubr.bf16.gmra.mrb[0].mxu0 %v1087
      %v1818 = vpop.f32.mrb[0].mxu0
      %v1819 = vadd.f32 0.0, %v1818
      %v1820 = vpop.f32.mrb[0].mxu0
      %v1821 = vpop.f32.mrb[0].mxu0
      %v1822 = vadd.f32 0.0, %v1821
      %v1823 = vpop.f32.mrb[0].mxu0
      %1824 = vmatprep.mubr.bf16.mxu0 0
      %1825 = vmatmul.mubr.bf16.gmra.mrb[0].mxu0 %v1090
      %v1826 = vpop.f32.mrb[0].mxu0
      %v1827 = vadd.f32 0.0, %v1826
      %v1828 = vpop.f32.mrb[0].mxu0
      %v1829 = vpop.f32.mrb[0].mxu0
      %v1830 = vadd.f32 0.0, %v1829
      %v1831 = vpop.f32.mrb[0].mxu0
      %1832 = vmatprep.mubr.bf16.mxu0 0
      %1833 = vmatmul.mubr.bf16.gmra.mrb[0].mxu0 %v1093
      %v1834 = vpop.f32.mrb[0].mxu0
      %v1835 = vadd.f32 0.0, %v1834
      %v1836 = vpop.f32.mrb[0].mxu0
      %v1837 = vpop.f32.mrb[0].mxu0
      %v1838 = vadd.f32 0.0, %v1837
      %v1839 = vpop.f32.mrb[0].mxu0
      %1840 = vmatprep.mubr.bf16.mxu0 0
      %1841 = vmatmul.mubr.bf16.gmra.mrb[0].mxu0 %v1096
      %v1842 = vpop.f32.mrb[0].mxu0
      %v1843 = vadd.f32 0.0, %v1842
      %v1844 = vpop.f32.mrb[0].mxu0
      %v1845 = vpop.f32.mrb[0].mxu0
      %v1846 = vadd.f32 0.0, %v1845
      %v1847 = vpop.f32.mrb[0].mxu0
      %1848 = vmatprep.mubr.bf16.mxu0 0
      %1849 = vmatmul.mubr.bf16.gmra.mrb[0].mxu0 %v1099
      %v1850 = vpop.f32.mrb[0].mxu0
      %v1851 = vadd.f32 0.0, %v1850
      %v1852 = vpop.f32.mrb[0].mxu0
      %v1853 = vpop.f32.mrb[0].mxu0
      %v1854 = vadd.f32 0.0, %v1853
      %v1855 = vpop.f32.mrb[0].mxu0
      %1856 = vmatprep.mubr.bf16.mxu0 0
      %1857 = vmatmul.mubr.bf16.gmra.mrb[0].mxu0 %v1102
      %v1858 = vpop.f32.mrb[0].mxu0
      %v1859 = vadd.f32 0.0, %v1858
      %v1860 = vpop.f32.mrb[0].mxu0
      %v1861 = vpop.f32.mrb[0].mxu0
      %v1862 = vadd.f32 0.0, %v1861
      %v1863 = vpop.f32.mrb[0].mxu0
      %1864 = vmatprep.mubr.bf16.mxu0 0
      %1865 = vmatmul.mubr.bf16.gmra.mrb[0].mxu0 %v1105
      %v1866 = vpop.f32.mrb[0].mxu0
      %v1867 = vadd.f32 0.0, %v1866
      %v1868 = vpop.f32.mrb[0].mxu0
      %v1869 = vpop.f32.mrb[0].mxu0
      %v1870 = vadd.f32 0.0, %v1869
      %v1871 = vpop.f32.mrb[0].mxu0
      %1872 = vmatprep.mubr.bf16.mxu0 0
      %1873 = vmatmul.mubr.bf16.gmra.mrb[0].mxu0 %v1108
      %v1874 = vpop.f32.mrb[0].mxu0
      %v1875 = vadd.f32 0.0, %v1874
      %v1876 = vpop.f32.mrb[0].mxu0
      %v1877 = vpop.f32.mrb[0].mxu0
      %v1878 = vadd.f32 0.0, %v1877
      %v1879 = vpop.f32.mrb[0].mxu0
      %1880 = vmatprep.mubr.bf16.mxu0 0
      %1881 = vmatmul.mubr.bf16.gmra.mrb[0].mxu0 %v1111
      %v1882 = vpop.f32.mrb[0].mxu0
      %v1883 = vadd.f32 0.0, %v1882
      %v1884 = vpop.f32.mrb[0].mxu0
      %v1885 = vpop.f32.mrb[0].mxu0
      %v1886 = vadd.f32 0.0, %v1885
      %v1887 = vpop.f32.mrb[0].mxu0
      %1888 = vmatprep.mubr.bf16.mxu0 0
      %1889 = vmatmul.mubr.bf16.gmra.mrb[0].mxu0 %v1734
      %v1890 = vpop.f32.mrb[0].mxu0
      %v1891 = vadd.f32 0.0, %v1890
      %v1892 = vpop.f32.mrb[0].mxu0
      %v1893 = vpop.f32.mrb[0].mxu0
      %v1894 = vadd.f32 0.0, %v1893
      %v1895 = vpop.f32.mrb[0].mxu0
      %1896 = vdwg.mxu0
      %v1897 = vadd.f32 %v1679, %v1771
      %v1898 = vadd.f32 %v1680, %v1774
      %v1899 = vadd.f32 %v1681, %v1779
      %v1900 = vadd.f32 %v1682, %v1782
      %v1901 = vadd.f32 %v1683, %v1787
      %v1902 = vadd.f32 %v1684, %v1790
      %v1903 = vadd.f32 %v1685, %v1795
      %v1904 = vadd.f32 %v1686, %v1798
      %v1905 = vadd.f32 %v1687, %v1803
      %v1906 = vadd.f32 %v1688, %v1806
      %v1907 = vadd.f32 %v1689, %v1811
      %v1908 = vadd.f32 %v1690, %v1814
      %v1909 = vadd.f32 %v1691, %v1819
      %v1910 = vadd.f32 %v1692, %v1822
      %v1911 = vadd.f32 %v1693, %v1827
      %v1912 = vadd.f32 %v1694, %v1830
      %v1913 = vadd.f32 %v1695, %v1835
      %v1914 = vadd.f32 %v1696, %v1838
      %v1915 = vadd.f32 %v1697, %v1843
      %v1916 = vadd.f32 %v1698, %v1846
      %v1917 = vadd.f32 %v1699, %v1851
      %v1918 = vadd.f32 %v1700, %v1854
      %v1919 = vadd.f32 %v1701, %v1859
      %v1920 = vadd.f32 %v1702, %v1862
      %v1921 = vadd.f32 %v1703, %v1867
      %v1922 = vadd.f32 %v1704, %v1870
      %v1923 = vadd.f32 %v1705, %v1875
      %v1924 = vadd.f32 %v1706, %v1878
      %v1925 = vadd.f32 %v1707, %v1883
      %v1926 = vadd.f32 %v1708, %v1886
      %v1927 = vadd.f32 %v1709, %v1891
      %v1928 = vadd.f32 %v1710, %v1894
      %v1930 = vshrl.u32 %v301, 16
      %v1932 = vrot.slane %v1930, 4
      %v1933 = vshll.u32 %v301, 16
      %v1935 = vrot.slane %v1933, 5
      %v1936 = vor.u32 %v1932, %v1935
      %v1937 = vrot.slane %v1936, 4
      %v1939 = vshll.u32 %v302, 16
      %v1941 = vrot.slane %v1939, 5
      %v1942 = vsel %vm313, %v1937, %v1941
      %v1943 = vshrl.u32 %v302, 16
      %v1945 = vrot.slane %v1943, 4
      %v1946 = vor.u32 %v1945, %v1941
      %v1947 = vrot.slane %v1946, 4
      %v1949 = vshll.u32 %v303, 16
      %v1951 = vrot.slane %v1949, 5
      %v1952 = vsel %vm313, %v1947, %v1951
      %s1953 = scalar_lea.vmem %s1, 64
      %v1954 = vld [vmem:[%s1953] sm:$0xf]
      %v1955 = vld [vmem:[%s1953 + $0x4] sm:$0xf]
      %v1956 = vld [vmem:[%s1953 + $0x8] sm:$0xf]
      %v1957 = vld [vmem:[%s1953 + $0xc] sm:$0xf]
      %v1958 = vunpack.c.l.b16 %v1942
      %v1959 = vunpack.c.l.b16 %v1952
      %v1960 = vpack.c.b16 %v1959, %v1958
      %v1965 = vunpack.c.l.b16 %v1954
      %v1966 = vunpack.c.l.b16 %v1955
      %v1967 = vunpack.c.l.b16 %v1956
      %v1968 = vunpack.c.l.b16 %v1957
      %v1969 = vpack.c.b16 %v1966, %v1965
      %v1970 = vpack.c.b16 %v1968, %v1967
      %v1974 = vsel %vm763, %v1960, 0
      %1976 = vmatprep.subr.bf16.mxu0 0
      %1977 = vmatpush1.bf16.msra.mxu0 %v1969
      %1978 = vmatprep.subr.bf16.mxu0 0
      %1979 = vmatpush1.bf16.msra.mxu0 %v1970
      %1980 = vmatprep.subr.bf16.mxu0 0
      %1981 = vmatpush1.bf16.msra.mxu0 0
      %1982 = vmatprep.subr.bf16.mxu0 0
      %1983 = vmatpush1.bf16.msra.mxu0 0
      %1984 = vmatprep.subr.bf16.mxu0 0
      %1985 = vmatpush1.bf16.msra.mxu0 0
      %1986 = vmatprep.subr.bf16.mxu0 0
      %1987 = vmatpush1.bf16.msra.mxu0 0
      %1988 = vmatprep.subr.bf16.mxu0 0
      %1989 = vmatpush1.bf16.msra.mxu0 0
      %1990 = vmatprep.subr.bf16.mxu0 0
      %1991 = vmatpush1.bf16.msra.mxu0 0
      %1992 = vmatprep.subr.bf16.mxu0 0
      %1993 = vmatpush1.bf16.msra.mxu0 0
      %1994 = vmatprep.subr.bf16.mxu0 0
      %1995 = vmatpush1.bf16.msra.mxu0 0
      %1996 = vmatprep.subr.bf16.mxu0 0
      %1997 = vmatpush1.bf16.msra.mxu0 0
      %1998 = vmatprep.subr.bf16.mxu0 0
      %1999 = vmatpush1.bf16.msra.mxu0 0
      %2000 = vmatprep.subr.bf16.mxu0 0
      %2001 = vmatpush1.bf16.msra.mxu0 0
      %2002 = vmatprep.subr.bf16.mxu0 0
      %2003 = vmatpush1.bf16.msra.mxu0 0
      %2004 = vmatprep.subr.bf16.mxu0 0
      %2005 = vmatpush1.bf16.msra.mxu0 0
      %2006 = vmatprep.subr.bf16.mxu0 0
      %2007 = vmatpush1.bf16.msra.mxu0 0
      %2008 = vmatprep.mubr.bf16.mxu0 0
      %2009 = vmatmul.mubr.bf16.gmra.mrb[0].mxu0 %v768
      %v2010 = vpop.f32.mrb[0].mxu0
      %v2011 = vadd.f32 0.0, %v2010
      %v2012 = vpop.f32.mrb[0].mxu0
      %v2013 = vpop.f32.mrb[0].mxu0
      %v2014 = vadd.f32 0.0, %v2013
      %v2015 = vpop.f32.mrb[0].mxu0
      %2016 = vmatprep.mubr.bf16.mxu0 0
      %2017 = vmatmul.mubr.bf16.gmra.mrb[0].mxu0 %v771
      %v2018 = vpop.f32.mrb[0].mxu0
      %v2019 = vadd.f32 0.0, %v2018
      %v2020 = vpop.f32.mrb[0].mxu0
      %v2021 = vpop.f32.mrb[0].mxu0
      %v2022 = vadd.f32 0.0, %v2021
      %v2023 = vpop.f32.mrb[0].mxu0
      %2024 = vmatprep.mubr.bf16.mxu0 0
      %2025 = vmatmul.mubr.bf16.gmra.mrb[0].mxu0 %v774
      %v2026 = vpop.f32.mrb[0].mxu0
      %v2027 = vadd.f32 0.0, %v2026
      %v2028 = vpop.f32.mrb[0].mxu0
      %v2029 = vpop.f32.mrb[0].mxu0
      %v2030 = vadd.f32 0.0, %v2029
      %v2031 = vpop.f32.mrb[0].mxu0
      %2032 = vmatprep.mubr.bf16.mxu0 0
      %2033 = vmatmul.mubr.bf16.gmra.mrb[0].mxu0 %v777
      %v2034 = vpop.f32.mrb[0].mxu0
      %v2035 = vadd.f32 0.0, %v2034
      %v2036 = vpop.f32.mrb[0].mxu0
      %v2037 = vpop.f32.mrb[0].mxu0
      %v2038 = vadd.f32 0.0, %v2037
      %v2039 = vpop.f32.mrb[0].mxu0
      %2040 = vmatprep.mubr.bf16.mxu0 0
      %2041 = vmatmul.mubr.bf16.gmra.mrb[0].mxu0 %v780
      %v2042 = vpop.f32.mrb[0].mxu0
      %v2043 = vadd.f32 0.0, %v2042
      %v2044 = vpop.f32.mrb[0].mxu0
      %v2045 = vpop.f32.mrb[0].mxu0
      %v2046 = vadd.f32 0.0, %v2045
      %v2047 = vpop.f32.mrb[0].mxu0
      %2048 = vmatprep.mubr.bf16.mxu0 0
      %2049 = vmatmul.mubr.bf16.gmra.mrb[0].mxu0 %v783
      %v2050 = vpop.f32.mrb[0].mxu0
      %v2051 = vadd.f32 0.0, %v2050
      %v2052 = vpop.f32.mrb[0].mxu0
      %v2053 = vpop.f32.mrb[0].mxu0
      %v2054 = vadd.f32 0.0, %v2053
      %v2055 = vpop.f32.mrb[0].mxu0
      %2056 = vmatprep.mubr.bf16.mxu0 0
      %2057 = vmatmul.mubr.bf16.gmra.mrb[0].mxu0 %v786
      %v2058 = vpop.f32.mrb[0].mxu0
      %v2059 = vadd.f32 0.0, %v2058
      %v2060 = vpop.f32.mrb[0].mxu0
      %v2061 = vpop.f32.mrb[0].mxu0
      %v2062 = vadd.f32 0.0, %v2061
      %v2063 = vpop.f32.mrb[0].mxu0
      %2064 = vmatprep.mubr.bf16.mxu0 0
      %2065 = vmatmul.mubr.bf16.gmra.mrb[0].mxu0 %v789
      %v2066 = vpop.f32.mrb[0].mxu0
      %v2067 = vadd.f32 0.0, %v2066
      %v2068 = vpop.f32.mrb[0].mxu0
      %v2069 = vpop.f32.mrb[0].mxu0
      %v2070 = vadd.f32 0.0, %v2069
      %v2071 = vpop.f32.mrb[0].mxu0
      %2072 = vmatprep.mubr.bf16.mxu0 0
      %2073 = vmatmul.mubr.bf16.gmra.mrb[0].mxu0 %v792
      %v2074 = vpop.f32.mrb[0].mxu0
      %v2075 = vadd.f32 0.0, %v2074
      %v2076 = vpop.f32.mrb[0].mxu0
      %v2077 = vpop.f32.mrb[0].mxu0
      %v2078 = vadd.f32 0.0, %v2077
      %v2079 = vpop.f32.mrb[0].mxu0
      %2080 = vmatprep.mubr.bf16.mxu0 0
      %2081 = vmatmul.mubr.bf16.gmra.mrb[0].mxu0 %v795
      %v2082 = vpop.f32.mrb[0].mxu0
      %v2083 = vadd.f32 0.0, %v2082
      %v2084 = vpop.f32.mrb[0].mxu0
      %v2085 = vpop.f32.mrb[0].mxu0
      %v2086 = vadd.f32 0.0, %v2085
      %v2087 = vpop.f32.mrb[0].mxu0
      %2088 = vmatprep.mubr.bf16.mxu0 0
      %2089 = vmatmul.mubr.bf16.gmra.mrb[0].mxu0 %v798
      %v2090 = vpop.f32.mrb[0].mxu0
      %v2091 = vadd.f32 0.0, %v2090
      %v2092 = vpop.f32.mrb[0].mxu0
      %v2093 = vpop.f32.mrb[0].mxu0
      %v2094 = vadd.f32 0.0, %v2093
      %v2095 = vpop.f32.mrb[0].mxu0
      %2096 = vmatprep.mubr.bf16.mxu0 0
      %2097 = vmatmul.mubr.bf16.gmra.mrb[0].mxu0 %v801
      %v2098 = vpop.f32.mrb[0].mxu0
      %v2099 = vadd.f32 0.0, %v2098
      %v2100 = vpop.f32.mrb[0].mxu0
      %v2101 = vpop.f32.mrb[0].mxu0
      %v2102 = vadd.f32 0.0, %v2101
      %v2103 = vpop.f32.mrb[0].mxu0
      %2104 = vmatprep.mubr.bf16.mxu0 0
      %2105 = vmatmul.mubr.bf16.gmra.mrb[0].mxu0 %v804
      %v2106 = vpop.f32.mrb[0].mxu0
      %v2107 = vadd.f32 0.0, %v2106
      %v2108 = vpop.f32.mrb[0].mxu0
      %v2109 = vpop.f32.mrb[0].mxu0
      %v2110 = vadd.f32 0.0, %v2109
      %v2111 = vpop.f32.mrb[0].mxu0
      %2112 = vmatprep.mubr.bf16.mxu0 0
      %2113 = vmatmul.mubr.bf16.gmra.mrb[0].mxu0 %v807
      %v2114 = vpop.f32.mrb[0].mxu0
      %v2115 = vadd.f32 0.0, %v2114
      %v2116 = vpop.f32.mrb[0].mxu0
      %v2117 = vpop.f32.mrb[0].mxu0
      %v2118 = vadd.f32 0.0, %v2117
      %v2119 = vpop.f32.mrb[0].mxu0
      %2120 = vmatprep.mubr.bf16.mxu0 0
      %2121 = vmatmul.mubr.bf16.gmra.mrb[0].mxu0 %v810
      %v2122 = vpop.f32.mrb[0].mxu0
      %v2123 = vadd.f32 0.0, %v2122
      %v2124 = vpop.f32.mrb[0].mxu0
      %v2125 = vpop.f32.mrb[0].mxu0
      %v2126 = vadd.f32 0.0, %v2125
      %v2127 = vpop.f32.mrb[0].mxu0
      %2128 = vmatprep.mubr.bf16.mxu0 0
      %2129 = vmatmul.mubr.bf16.gmra.mrb[0].mxu0 %v1974
      %v2130 = vpop.f32.mrb[0].mxu0
      %v2131 = vadd.f32 0.0, %v2130
      %v2132 = vpop.f32.mrb[0].mxu0
      %v2133 = vpop.f32.mrb[0].mxu0
      %v2134 = vadd.f32 0.0, %v2133
      %v2135 = vpop.f32.mrb[0].mxu0
      %2136 = vdwg.mxu0
      %v2137 = vadd.f32 %v1897, %v2011
      %v2138 = vadd.f32 %v1898, %v2014
      %v2139 = vadd.f32 %v1899, %v2019
      %v2140 = vadd.f32 %v1900, %v2022
      %v2141 = vadd.f32 %v1901, %v2027
      %v2142 = vadd.f32 %v1902, %v2030
      %v2143 = vadd.f32 %v1903, %v2035
      %v2144 = vadd.f32 %v1904, %v2038
      %v2145 = vadd.f32 %v1905, %v2043
      %v2146 = vadd.f32 %v1906, %v2046
      %v2147 = vadd.f32 %v1907, %v2051
      %v2148 = vadd.f32 %v1908, %v2054
      %v2149 = vadd.f32 %v1909, %v2059
      %v2150 = vadd.f32 %v1910, %v2062
      %v2151 = vadd.f32 %v1911, %v2067
      %v2152 = vadd.f32 %v1912, %v2070
      %v2153 = vadd.f32 %v1913, %v2075
      %v2154 = vadd.f32 %v1914, %v2078
      %v2155 = vadd.f32 %v1915, %v2083
      %v2156 = vadd.f32 %v1916, %v2086
      %v2157 = vadd.f32 %v1917, %v2091
      %v2158 = vadd.f32 %v1918, %v2094
      %v2159 = vadd.f32 %v1919, %v2099
      %v2160 = vadd.f32 %v1920, %v2102
      %v2161 = vadd.f32 %v1921, %v2107
      %v2162 = vadd.f32 %v1922, %v2110
      %v2163 = vadd.f32 %v1923, %v2115
      %v2164 = vadd.f32 %v1924, %v2118
      %v2165 = vadd.f32 %v1925, %v2123
      %v2166 = vadd.f32 %v1926, %v2126
      %v2167 = vadd.f32 %v1927, %v2131
      %v2168 = vadd.f32 %v1928, %v2134
      %v2170 = vrot.slane %v301, 5
      %v2171 = vrot.slane %v2170, 4
      %v2172 = vrot.slane %v302, 5
      %v2173 = vsel %vm1292, %v2171, %v2172
      %v2174 = vrot.slane %v2172, 4
      %v2175 = vrot.slane %v303, 5
      %v2176 = vsel %vm1292, %v2174, %v2175
      %s2177 = scalar_lea.vmem %s1, 80
      %v2178 = vld [vmem:[%s2177] sm:$0xf]
      %v2179 = vld [vmem:[%s2177 + $0x4] sm:$0xf]
      %v2180 = vld [vmem:[%s2177 + $0x8] sm:$0xf]
      %v2181 = vld [vmem:[%s2177 + $0xc] sm:$0xf]
      %v2182 = vunpack.c.l.b16 %v2173
      %v2183 = vunpack.c.l.b16 %v2176
      %v2184 = vpack.c.b16 %v2183, %v2182
      %v2189 = vunpack.c.l.b16 %v2178
      %v2190 = vunpack.c.l.b16 %v2179
      %v2191 = vunpack.c.l.b16 %v2180
      %v2192 = vunpack.c.l.b16 %v2181
      %v2193 = vpack.c.b16 %v2190, %v2189
      %v2194 = vpack.c.b16 %v2192, %v2191
      %v2198 = vsel %vm763, %v2184, 0
      %2200 = vmatprep.subr.bf16.mxu0 0
      %2201 = vmatpush1.bf16.msra.mxu0 %v2193
      %2202 = vmatprep.subr.bf16.mxu0 0
      %2203 = vmatpush1.bf16.msra.mxu0 %v2194
      %2204 = vmatprep.subr.bf16.mxu0 0
      %2205 = vmatpush1.bf16.msra.mxu0 0
      %2206 = vmatprep.subr.bf16.mxu0 0
      %2207 = vmatpush1.bf16.msra.mxu0 0
      %2208 = vmatprep.subr.bf16.mxu0 0
      %2209 = vmatpush1.bf16.msra.mxu0 0
      %2210 = vmatprep.subr.bf16.mxu0 0
      %2211 = vmatpush1.bf16.msra.mxu0 0
      %2212 = vmatprep.subr.bf16.mxu0 0
      %2213 = vmatpush1.bf16.msra.mxu0 0
      %2214 = vmatprep.subr.bf16.mxu0 0
      %2215 = vmatpush1.bf16.msra.mxu0 0
      %2216 = vmatprep.subr.bf16.mxu0 0
      %2217 = vmatpush1.bf16.msra.mxu0 0
      %2218 = vmatprep.subr.bf16.mxu0 0
      %2219 = vmatpush1.bf16.msra.mxu0 0
      %2220 = vmatprep.subr.bf16.mxu0 0
      %2221 = vmatpush1.bf16.msra.mxu0 0
      %2222 = vmatprep.subr.bf16.mxu0 0
      %2223 = vmatpush1.bf16.msra.mxu0 0
      %2224 = vmatprep.subr.bf16.mxu0 0
      %2225 = vmatpush1.bf16.msra.mxu0 0
      %2226 = vmatprep.subr.bf16.mxu0 0
      %2227 = vmatpush1.bf16.msra.mxu0 0
      %2228 = vmatprep.subr.bf16.mxu0 0
      %2229 = vmatpush1.bf16.msra.mxu0 0
      %2230 = vmatprep.subr.bf16.mxu0 0
      %2231 = vmatpush1.bf16.msra.mxu0 0
      %2232 = vmatprep.mubr.bf16.mxu0 0
      %2233 = vmatmul.mubr.bf16.gmra.mrb[0].mxu0 %v1474
      %v2234 = vpop.f32.mrb[0].mxu0
      %v2235 = vadd.f32 0.0, %v2234
      %v2236 = vpop.f32.mrb[0].mxu0
      %v2237 = vpop.f32.mrb[0].mxu0
      %v2238 = vadd.f32 0.0, %v2237
      %v2239 = vpop.f32.mrb[0].mxu0
      %2240 = vmatprep.mubr.bf16.mxu0 0
      %2241 = vmatmul.mubr.bf16.gmra.mrb[0].mxu0 %v1477
      %v2242 = vpop.f32.mrb[0].mxu0
      %v2243 = vadd.f32 0.0, %v2242
      %v2244 = vpop.f32.mrb[0].mxu0
      %v2245 = vpop.f32.mrb[0].mxu0
      %v2246 = vadd.f32 0.0, %v2245
      %v2247 = vpop.f32.mrb[0].mxu0
      %2248 = vmatprep.mubr.bf16.mxu0 0
      %2249 = vmatmul.mubr.bf16.gmra.mrb[0].mxu0 %v1480
      %v2250 = vpop.f32.mrb[0].mxu0
      %v2251 = vadd.f32 0.0, %v2250
      %v2252 = vpop.f32.mrb[0].mxu0
      %v2253 = vpop.f32.mrb[0].mxu0
      %v2254 = vadd.f32 0.0, %v2253
      %v2255 = vpop.f32.mrb[0].mxu0
      %2256 = vmatprep.mubr.bf16.mxu0 0
      %2257 = vmatmul.mubr.bf16.gmra.mrb[0].mxu0 %v1483
      %v2258 = vpop.f32.mrb[0].mxu0
      %v2259 = vadd.f32 0.0, %v2258
      %v2260 = vpop.f32.mrb[0].mxu0
      %v2261 = vpop.f32.mrb[0].mxu0
      %v2262 = vadd.f32 0.0, %v2261
      %v2263 = vpop.f32.mrb[0].mxu0
      %2264 = vmatprep.mubr.bf16.mxu0 0
      %2265 = vmatmul.mubr.bf16.gmra.mrb[0].mxu0 %v1486
      %v2266 = vpop.f32.mrb[0].mxu0
      %v2267 = vadd.f32 0.0, %v2266
      %v2268 = vpop.f32.mrb[0].mxu0
      %v2269 = vpop.f32.mrb[0].mxu0
      %v2270 = vadd.f32 0.0, %v2269
      %v2271 = vpop.f32.mrb[0].mxu0
      %2272 = vmatprep.mubr.bf16.mxu0 0
      %2273 = vmatmul.mubr.bf16.gmra.mrb[0].mxu0 %v1489
      %v2274 = vpop.f32.mrb[0].mxu0
      %v2275 = vadd.f32 0.0, %v2274
      %v2276 = vpop.f32.mrb[0].mxu0
      %v2277 = vpop.f32.mrb[0].mxu0
      %v2278 = vadd.f32 0.0, %v2277
      %v2279 = vpop.f32.mrb[0].mxu0
      %2280 = vmatprep.mubr.bf16.mxu0 0
      %2281 = vmatmul.mubr.bf16.gmra.mrb[0].mxu0 %v1492
      %v2282 = vpop.f32.mrb[0].mxu0
      %v2283 = vadd.f32 0.0, %v2282
      %v2284 = vpop.f32.mrb[0].mxu0
      %v2285 = vpop.f32.mrb[0].mxu0
      %v2286 = vadd.f32 0.0, %v2285
      %v2287 = vpop.f32.mrb[0].mxu0
      %2288 = vmatprep.mubr.bf16.mxu0 0
      %2289 = vmatmul.mubr.bf16.gmra.mrb[0].mxu0 %v1495
      %v2290 = vpop.f32.mrb[0].mxu0
      %v2291 = vadd.f32 0.0, %v2290
      %v2292 = vpop.f32.mrb[0].mxu0
      %v2293 = vpop.f32.mrb[0].mxu0
      %v2294 = vadd.f32 0.0, %v2293
      %v2295 = vpop.f32.mrb[0].mxu0
      %2296 = vmatprep.mubr.bf16.mxu0 0
      %2297 = vmatmul.mubr.bf16.gmra.mrb[0].mxu0 %v1498
      %v2298 = vpop.f32.mrb[0].mxu0
      %v2299 = vadd.f32 0.0, %v2298
      %v2300 = vpop.f32.mrb[0].mxu0
      %v2301 = vpop.f32.mrb[0].mxu0
      %v2302 = vadd.f32 0.0, %v2301
      %v2303 = vpop.f32.mrb[0].mxu0
      %2304 = vmatprep.mubr.bf16.mxu0 0
      %2305 = vmatmul.mubr.bf16.gmra.mrb[0].mxu0 %v1501
      %v2306 = vpop.f32.mrb[0].mxu0
      %v2307 = vadd.f32 0.0, %v2306
      %v2308 = vpop.f32.mrb[0].mxu0
      %v2309 = vpop.f32.mrb[0].mxu0
      %v2310 = vadd.f32 0.0, %v2309
      %v2311 = vpop.f32.mrb[0].mxu0
      %2312 = vmatprep.mubr.bf16.mxu0 0
      %2313 = vmatmul.mubr.bf16.gmra.mrb[0].mxu0 %v1504
      %v2314 = vpop.f32.mrb[0].mxu0
      %v2315 = vadd.f32 0.0, %v2314
      %v2316 = vpop.f32.mrb[0].mxu0
      %v2317 = vpop.f32.mrb[0].mxu0
      %v2318 = vadd.f32 0.0, %v2317
      %v2319 = vpop.f32.mrb[0].mxu0
      %2320 = vmatprep.mubr.bf16.mxu0 0
      %2321 = vmatmul.mubr.bf16.gmra.mrb[0].mxu0 %v1507
      %v2322 = vpop.f32.mrb[0].mxu0
      %v2323 = vadd.f32 0.0, %v2322
      %v2324 = vpop.f32.mrb[0].mxu0
      %v2325 = vpop.f32.mrb[0].mxu0
      %v2326 = vadd.f32 0.0, %v2325
      %v2327 = vpop.f32.mrb[0].mxu0
      %2328 = vmatprep.mubr.bf16.mxu0 0
      %2329 = vmatmul.mubr.bf16.gmra.mrb[0].mxu0 %v1510
      %v2330 = vpop.f32.mrb[0].mxu0
      %v2331 = vadd.f32 0.0, %v2330
      %v2332 = vpop.f32.mrb[0].mxu0
      %v2333 = vpop.f32.mrb[0].mxu0
      %v2334 = vadd.f32 0.0, %v2333
      %v2335 = vpop.f32.mrb[0].mxu0
      %2336 = vmatprep.mubr.bf16.mxu0 0
      %2337 = vmatmul.mubr.bf16.gmra.mrb[0].mxu0 %v1513
      %v2338 = vpop.f32.mrb[0].mxu0
      %v2339 = vadd.f32 0.0, %v2338
      %v2340 = vpop.f32.mrb[0].mxu0
      %v2341 = vpop.f32.mrb[0].mxu0
      %v2342 = vadd.f32 0.0, %v2341
      %v2343 = vpop.f32.mrb[0].mxu0
      %2344 = vmatprep.mubr.bf16.mxu0 0
      %2345 = vmatmul.mubr.bf16.gmra.mrb[0].mxu0 %v1516
      %v2346 = vpop.f32.mrb[0].mxu0
      %v2347 = vadd.f32 0.0, %v2346
      %v2348 = vpop.f32.mrb[0].mxu0
      %v2349 = vpop.f32.mrb[0].mxu0
      %v2350 = vadd.f32 0.0, %v2349
      %v2351 = vpop.f32.mrb[0].mxu0
      %2352 = vmatprep.mubr.bf16.mxu0 0
      %2353 = vmatmul.mubr.bf16.gmra.mrb[0].mxu0 %v2198
      %v2354 = vpop.f32.mrb[0].mxu0
      %v2355 = vadd.f32 0.0, %v2354
      %v2356 = vpop.f32.mrb[0].mxu0
      %v2357 = vpop.f32.mrb[0].mxu0
      %v2358 = vadd.f32 0.0, %v2357
      %v2359 = vpop.f32.mrb[0].mxu0
      %2360 = vdwg.mxu0
      %v2361 = vadd.f32 %v2137, %v2235
      %v2362 = vadd.f32 %v2138, %v2238
      %v2363 = vadd.f32 %v2139, %v2243
      %v2364 = vadd.f32 %v2140, %v2246
      %v2365 = vadd.f32 %v2141, %v2251
      %v2366 = vadd.f32 %v2142, %v2254
      %v2367 = vadd.f32 %v2143, %v2259
      %v2368 = vadd.f32 %v2144, %v2262
      %v2369 = vadd.f32 %v2145, %v2267
      %v2370 = vadd.f32 %v2146, %v2270
      %v2371 = vadd.f32 %v2147, %v2275
      %v2372 = vadd.f32 %v2148, %v2278
      %v2373 = vadd.f32 %v2149, %v2283
      %v2374 = vadd.f32 %v2150, %v2286
      %v2375 = vadd.f32 %v2151, %v2291
      %v2376 = vadd.f32 %v2152, %v2294
      %v2377 = vadd.f32 %v2153, %v2299
      %v2378 = vadd.f32 %v2154, %v2302
      %v2379 = vadd.f32 %v2155, %v2307
      %v2380 = vadd.f32 %v2156, %v2310
      %v2381 = vadd.f32 %v2157, %v2315
      %v2382 = vadd.f32 %v2158, %v2318
      %v2383 = vadd.f32 %v2159, %v2323
      %v2384 = vadd.f32 %v2160, %v2326
      %v2385 = vadd.f32 %v2161, %v2331
      %v2386 = vadd.f32 %v2162, %v2334
      %v2387 = vadd.f32 %v2163, %v2339
      %v2388 = vadd.f32 %v2164, %v2342
      %v2389 = vadd.f32 %v2165, %v2347
      %v2390 = vadd.f32 %v2166, %v2350
      %v2391 = vadd.f32 %v2167, %v2355
      %v2392 = vadd.f32 %v2168, %v2358
      %s2393 = scalar_lea.vmem %s1, 96
      %v2394 = vld [vmem:[%s2393] sm:$0xf]
      %v2395 = vld [vmem:[%s2393 + $0x4] sm:$0xf]
      %v2396 = vld [vmem:[%s2393 + $0x8] sm:$0xf]
      %v2397 = vld [vmem:[%s2393 + $0xc] sm:$0xf]
      %v2400 = vunpack.c.l.b16 %v304
      %v2401 = vunpack.c.l.b16 %v305
      %v2402 = vpack.c.b16 %v2401, %v2400
      %v2407 = vunpack.c.l.b16 %v2394
      %v2408 = vunpack.c.l.b16 %v2395
      %v2409 = vunpack.c.l.b16 %v2396
      %v2410 = vunpack.c.l.b16 %v2397
      %v2411 = vpack.c.b16 %v2408, %v2407
      %v2412 = vpack.c.b16 %v2410, %v2409
      %v2416 = vsel %vm763, %v2402, 0
      %2418 = vmatprep.subr.bf16.mxu0 0
      %2419 = vmatpush1.bf16.msra.mxu0 %v2411
      %2420 = vmatprep.subr.bf16.mxu0 0
      %2421 = vmatpush1.bf16.msra.mxu0 %v2412
      %2422 = vmatprep.subr.bf16.mxu0 0
      %2423 = vmatpush1.bf16.msra.mxu0 0
      %2424 = vmatprep.subr.bf16.mxu0 0
      %2425 = vmatpush1.bf16.msra.mxu0 0
      %2426 = vmatprep.subr.bf16.mxu0 0
      %2427 = vmatpush1.bf16.msra.mxu0 0
      %2428 = vmatprep.subr.bf16.mxu0 0
      %2429 = vmatpush1.bf16.msra.mxu0 0
      %2430 = vmatprep.subr.bf16.mxu0 0
      %2431 = vmatpush1.bf16.msra.mxu0 0
      %2432 = vmatprep.subr.bf16.mxu0 0
      %2433 = vmatpush1.bf16.msra.mxu0 0
      %2434 = vmatprep.subr.bf16.mxu0 0
      %2435 = vmatpush1.bf16.msra.mxu0 0
      %2436 = vmatprep.subr.bf16.mxu0 0
      %2437 = vmatpush1.bf16.msra.mxu0 0
      %2438 = vmatprep.subr.bf16.mxu0 0
      %2439 = vmatpush1.bf16.msra.mxu0 0
      %2440 = vmatprep.subr.bf16.mxu0 0
      %2441 = vmatpush1.bf16.msra.mxu0 0
      %2442 = vmatprep.subr.bf16.mxu0 0
      %2443 = vmatpush1.bf16.msra.mxu0 0
      %2444 = vmatprep.subr.bf16.mxu0 0
      %2445 = vmatpush1.bf16.msra.mxu0 0
      %2446 = vmatprep.subr.bf16.mxu0 0
      %2447 = vmatpush1.bf16.msra.mxu0 0
      %2448 = vmatprep.subr.bf16.mxu0 0
      %2449 = vmatpush1.bf16.msra.mxu0 0
      %2450 = vmatprep.mubr.bf16.mxu0 0
      %2451 = vmatmul.mubr.bf16.gmra.mrb[0].mxu0 %v1072
      %v2452 = vpop.f32.mrb[0].mxu0
      %v2453 = vadd.f32 0.0, %v2452
      %v2454 = vpop.f32.mrb[0].mxu0
      %v2455 = vpop.f32.mrb[0].mxu0
      %v2456 = vadd.f32 0.0, %v2455
      %v2457 = vpop.f32.mrb[0].mxu0
      %2458 = vmatprep.mubr.bf16.mxu0 0
      %2459 = vmatmul.mubr.bf16.gmra.mrb[0].mxu0 %v1075
      %v2460 = vpop.f32.mrb[0].mxu0
      %v2461 = vadd.f32 0.0, %v2460
      %v2462 = vpop.f32.mrb[0].mxu0
      %v2463 = vpop.f32.mrb[0].mxu0
      %v2464 = vadd.f32 0.0, %v2463
      %v2465 = vpop.f32.mrb[0].mxu0
      %2466 = vmatprep.mubr.bf16.mxu0 0
      %2467 = vmatmul.mubr.bf16.gmra.mrb[0].mxu0 %v1078
      %v2468 = vpop.f32.mrb[0].mxu0
      %v2469 = vadd.f32 0.0, %v2468
      %v2470 = vpop.f32.mrb[0].mxu0
      %v2471 = vpop.f32.mrb[0].mxu0
      %v2472 = vadd.f32 0.0, %v2471
      %v2473 = vpop.f32.mrb[0].mxu0
      %2474 = vmatprep.mubr.bf16.mxu0 0
      %2475 = vmatmul.mubr.bf16.gmra.mrb[0].mxu0 %v1081
      %v2476 = vpop.f32.mrb[0].mxu0
      %v2477 = vadd.f32 0.0, %v2476
      %v2478 = vpop.f32.mrb[0].mxu0
      %v2479 = vpop.f32.mrb[0].mxu0
      %v2480 = vadd.f32 0.0, %v2479
      %v2481 = vpop.f32.mrb[0].mxu0
      %2482 = vmatprep.mubr.bf16.mxu0 0
      %2483 = vmatmul.mubr.bf16.gmra.mrb[0].mxu0 %v1084
      %v2484 = vpop.f32.mrb[0].mxu0
      %v2485 = vadd.f32 0.0, %v2484
      %v2486 = vpop.f32.mrb[0].mxu0
      %v2487 = vpop.f32.mrb[0].mxu0
      %v2488 = vadd.f32 0.0, %v2487
      %v2489 = vpop.f32.mrb[0].mxu0
      %2490 = vmatprep.mubr.bf16.mxu0 0
      %2491 = vmatmul.mubr.bf16.gmra.mrb[0].mxu0 %v1087
      %v2492 = vpop.f32.mrb[0].mxu0
      %v2493 = vadd.f32 0.0, %v2492
      %v2494 = vpop.f32.mrb[0].mxu0
      %v2495 = vpop.f32.mrb[0].mxu0
      %v2496 = vadd.f32 0.0, %v2495
      %v2497 = vpop.f32.mrb[0].mxu0
      %2498 = vmatprep.mubr.bf16.mxu0 0
      %2499 = vmatmul.mubr.bf16.gmra.mrb[0].mxu0 %v1090
      %v2500 = vpop.f32.mrb[0].mxu0
      %v2501 = vadd.f32 0.0, %v2500
      %v2502 = vpop.f32.mrb[0].mxu0
      %v2503 = vpop.f32.mrb[0].mxu0
      %v2504 = vadd.f32 0.0, %v2503
      %v2505 = vpop.f32.mrb[0].mxu0
      %2506 = vmatprep.mubr.bf16.mxu0 0
      %2507 = vmatmul.mubr.bf16.gmra.mrb[0].mxu0 %v1093
      %v2508 = vpop.f32.mrb[0].mxu0
      %v2509 = vadd.f32 0.0, %v2508
      %v2510 = vpop.f32.mrb[0].mxu0
      %v2511 = vpop.f32.mrb[0].mxu0
      %v2512 = vadd.f32 0.0, %v2511
      %v2513 = vpop.f32.mrb[0].mxu0
      %2514 = vmatprep.mubr.bf16.mxu0 0
      %2515 = vmatmul.mubr.bf16.gmra.mrb[0].mxu0 %v1096
      %v2516 = vpop.f32.mrb[0].mxu0
      %v2517 = vadd.f32 0.0, %v2516
      %v2518 = vpop.f32.mrb[0].mxu0
      %v2519 = vpop.f32.mrb[0].mxu0
      %v2520 = vadd.f32 0.0, %v2519
      %v2521 = vpop.f32.mrb[0].mxu0
      %2522 = vmatprep.mubr.bf16.mxu0 0
      %2523 = vmatmul.mubr.bf16.gmra.mrb[0].mxu0 %v1099
      %v2524 = vpop.f32.mrb[0].mxu0
      %v2525 = vadd.f32 0.0, %v2524
      %v2526 = vpop.f32.mrb[0].mxu0
      %v2527 = vpop.f32.mrb[0].mxu0
      %v2528 = vadd.f32 0.0, %v2527
      %v2529 = vpop.f32.mrb[0].mxu0
      %2530 = vmatprep.mubr.bf16.mxu0 0
      %2531 = vmatmul.mubr.bf16.gmra.mrb[0].mxu0 %v1102
      %v2532 = vpop.f32.mrb[0].mxu0
      %v2533 = vadd.f32 0.0, %v2532
      %v2534 = vpop.f32.mrb[0].mxu0
      %v2535 = vpop.f32.mrb[0].mxu0
      %v2536 = vadd.f32 0.0, %v2535
      %v2537 = vpop.f32.mrb[0].mxu0
      %2538 = vmatprep.mubr.bf16.mxu0 0
      %2539 = vmatmul.mubr.bf16.gmra.mrb[0].mxu0 %v1105
      %v2540 = vpop.f32.mrb[0].mxu0
      %v2541 = vadd.f32 0.0, %v2540
      %v2542 = vpop.f32.mrb[0].mxu0
      %v2543 = vpop.f32.mrb[0].mxu0
      %v2544 = vadd.f32 0.0, %v2543
      %v2545 = vpop.f32.mrb[0].mxu0
      %2546 = vmatprep.mubr.bf16.mxu0 0
      %2547 = vmatmul.mubr.bf16.gmra.mrb[0].mxu0 %v1108
      %v2548 = vpop.f32.mrb[0].mxu0
      %v2549 = vadd.f32 0.0, %v2548
      %v2550 = vpop.f32.mrb[0].mxu0
      %v2551 = vpop.f32.mrb[0].mxu0
      %v2552 = vadd.f32 0.0, %v2551
      %v2553 = vpop.f32.mrb[0].mxu0
      %2554 = vmatprep.mubr.bf16.mxu0 0
      %2555 = vmatmul.mubr.bf16.gmra.mrb[0].mxu0 %v1111
      %v2556 = vpop.f32.mrb[0].mxu0
      %v2557 = vadd.f32 0.0, %v2556
      %v2558 = vpop.f32.mrb[0].mxu0
      %v2559 = vpop.f32.mrb[0].mxu0
      %v2560 = vadd.f32 0.0, %v2559
      %v2561 = vpop.f32.mrb[0].mxu0
      %2562 = vmatprep.mubr.bf16.mxu0 0
      %2563 = vmatmul.mubr.bf16.gmra.mrb[0].mxu0 %v1734
      %v2564 = vpop.f32.mrb[0].mxu0
      %v2565 = vadd.f32 0.0, %v2564
      %v2566 = vpop.f32.mrb[0].mxu0
      %v2567 = vpop.f32.mrb[0].mxu0
      %v2568 = vadd.f32 0.0, %v2567
      %v2569 = vpop.f32.mrb[0].mxu0
      %2570 = vmatprep.mubr.bf16.mxu0 0
      %2571 = vmatmul.mubr.bf16.gmra.mrb[0].mxu0 %v2416
      %v2572 = vpop.f32.mrb[0].mxu0
      %v2573 = vadd.f32 0.0, %v2572
      %v2574 = vpop.f32.mrb[0].mxu0
      %v2575 = vpop.f32.mrb[0].mxu0
      %v2576 = vadd.f32 0.0, %v2575
      %v2577 = vpop.f32.mrb[0].mxu0
      %2578 = vdwg.mxu0
      %v2579 = vadd.f32 %v2361, %v2453
      %v2580 = vadd.f32 %v2362, %v2456
      %v2581 = vadd.f32 %v2363, %v2461
      %v2582 = vadd.f32 %v2364, %v2464
      %v2583 = vadd.f32 %v2365, %v2469
      %v2584 = vadd.f32 %v2366, %v2472
      %v2585 = vadd.f32 %v2367, %v2477
      %v2586 = vadd.f32 %v2368, %v2480
      %v2587 = vadd.f32 %v2369, %v2485
      %v2588 = vadd.f32 %v2370, %v2488
      %v2589 = vadd.f32 %v2371, %v2493
      %v2590 = vadd.f32 %v2372, %v2496
      %v2591 = vadd.f32 %v2373, %v2501
      %v2592 = vadd.f32 %v2374, %v2504
      %v2593 = vadd.f32 %v2375, %v2509
      %v2594 = vadd.f32 %v2376, %v2512
      %v2595 = vadd.f32 %v2377, %v2517
      %v2596 = vadd.f32 %v2378, %v2520
      %v2597 = vadd.f32 %v2379, %v2525
      %v2598 = vadd.f32 %v2380, %v2528
      %v2599 = vadd.f32 %v2381, %v2533
      %v2600 = vadd.f32 %v2382, %v2536
      %v2601 = vadd.f32 %v2383, %v2541
      %v2602 = vadd.f32 %v2384, %v2544
      %v2603 = vadd.f32 %v2385, %v2549
      %v2604 = vadd.f32 %v2386, %v2552
      %v2605 = vadd.f32 %v2387, %v2557
      %v2606 = vadd.f32 %v2388, %v2560
      %v2607 = vadd.f32 %v2389, %v2565
      %v2608 = vadd.f32 %v2390, %v2568
      %v2609 = vadd.f32 %v2391, %v2573
      %v2610 = vadd.f32 %v2392, %v2576
      %v2612 = vshrl.u32 %v304, 16
      %v2614 = vrot.slane %v2612, 4
      %v2615 = vshll.u32 %v304, 16
      %v2617 = vrot.slane %v2615, 5
      %v2618 = vor.u32 %v2614, %v2617
      %v2619 = vrot.slane %v2618, 4
      %v2621 = vshll.u32 %v305, 16
      %v2623 = vrot.slane %v2621, 5
      %v2624 = vsel %vm313, %v2619, %v2623
      %v2625 = vshrl.u32 %v305, 16
      %v2627 = vrot.slane %v2625, 4
      %v2628 = vor.u32 %v2627, %v2623
      %v2629 = vrot.slane %v2628, 4
      %v2631 = vshll.u32 %v306, 16
      %v2633 = vrot.slane %v2631, 5
      %v2634 = vsel %vm313, %v2629, %v2633
      %s2635 = scalar_lea.vmem %s1, 112
      %v2636 = vld [vmem:[%s2635] sm:$0xf]
      %v2637 = vld [vmem:[%s2635 + $0x4] sm:$0xf]
      %v2638 = vld [vmem:[%s2635 + $0x8] sm:$0xf]
      %v2639 = vld [vmem:[%s2635 + $0xc] sm:$0xf]
      %v2640 = vunpack.c.l.b16 %v2624
      %v2641 = vunpack.c.l.b16 %v2634
      %v2642 = vpack.c.b16 %v2641, %v2640
      %v2647 = vunpack.c.l.b16 %v2636
      %v2648 = vunpack.c.l.b16 %v2637
      %v2649 = vunpack.c.l.b16 %v2638
      %v2650 = vunpack.c.l.b16 %v2639
      %v2651 = vpack.c.b16 %v2648, %v2647
      %v2652 = vpack.c.b16 %v2650, %v2649
      %v2656 = vsel %vm763, %v2642, 0
      %2658 = vmatprep.subr.bf16.mxu0 0
      %2659 = vmatpush1.bf16.msra.mxu0 %v2651
      %2660 = vmatprep.subr.bf16.mxu0 0
      %2661 = vmatpush1.bf16.msra.mxu0 %v2652
      %2662 = vmatprep.subr.bf16.mxu0 0
      %2663 = vmatpush1.bf16.msra.mxu0 0
      %2664 = vmatprep.subr.bf16.mxu0 0
      %2665 = vmatpush1.bf16.msra.mxu0 0
      %2666 = vmatprep.subr.bf16.mxu0 0
      %2667 = vmatpush1.bf16.msra.mxu0 0
      %2668 = vmatprep.subr.bf16.mxu0 0
      %2669 = vmatpush1.bf16.msra.mxu0 0
      %2670 = vmatprep.subr.bf16.mxu0 0
      %2671 = vmatpush1.bf16.msra.mxu0 0
      %2672 = vmatprep.subr.bf16.mxu0 0
      %2673 = vmatpush1.bf16.msra.mxu0 0
      %2674 = vmatprep.subr.bf16.mxu0 0
      %2675 = vmatpush1.bf16.msra.mxu0 0
      %2676 = vmatprep.subr.bf16.mxu0 0
      %2677 = vmatpush1.bf16.msra.mxu0 0
      %2678 = vmatprep.subr.bf16.mxu0 0
      %2679 = vmatpush1.bf16.msra.mxu0 0
      %2680 = vmatprep.subr.bf16.mxu0 0
      %2681 = vmatpush1.bf16.msra.mxu0 0
      %2682 = vmatprep.subr.bf16.mxu0 0
      %2683 = vmatpush1.bf16.msra.mxu0 0
      %2684 = vmatprep.subr.bf16.mxu0 0
      %2685 = vmatpush1.bf16.msra.mxu0 0
      %2686 = vmatprep.subr.bf16.mxu0 0
      %2687 = vmatpush1.bf16.msra.mxu0 0
      %2688 = vmatprep.subr.bf16.mxu0 0
      %2689 = vmatpush1.bf16.msra.mxu0 0
      %2690 = vmatprep.mubr.bf16.mxu0 0
      %2691 = vmatmul.mubr.bf16.gmra.mrb[0].mxu0 %v771
      %v2692 = vpop.f32.mrb[0].mxu0
      %v2693 = vadd.f32 0.0, %v2692
      %v2694 = vpop.f32.mrb[0].mxu0
      %v2695 = vpop.f32.mrb[0].mxu0
      %v2696 = vadd.f32 0.0, %v2695
      %v2697 = vpop.f32.mrb[0].mxu0
      %2698 = vmatprep.mubr.bf16.mxu0 0
      %2699 = vmatmul.mubr.bf16.gmra.mrb[0].mxu0 %v774
      %v2700 = vpop.f32.mrb[0].mxu0
      %v2701 = vadd.f32 0.0, %v2700
      %v2702 = vpop.f32.mrb[0].mxu0
      %v2703 = vpop.f32.mrb[0].mxu0
      %v2704 = vadd.f32 0.0, %v2703
      %v2705 = vpop.f32.mrb[0].mxu0
      %2706 = vmatprep.mubr.bf16.mxu0 0
      %2707 = vmatmul.mubr.bf16.gmra.mrb[0].mxu0 %v777
      %v2708 = vpop.f32.mrb[0].mxu0
      %v2709 = vadd.f32 0.0, %v2708
      %v2710 = vpop.f32.mrb[0].mxu0
      %v2711 = vpop.f32.mrb[0].mxu0
      %v2712 = vadd.f32 0.0, %v2711
      %v2713 = vpop.f32.mrb[0].mxu0
      %2714 = vmatprep.mubr.bf16.mxu0 0
      %2715 = vmatmul.mubr.bf16.gmra.mrb[0].mxu0 %v780
      %v2716 = vpop.f32.mrb[0].mxu0
      %v2717 = vadd.f32 0.0, %v2716
      %v2718 = vpop.f32.mrb[0].mxu0
      %v2719 = vpop.f32.mrb[0].mxu0
      %v2720 = vadd.f32 0.0, %v2719
      %v2721 = vpop.f32.mrb[0].mxu0
      %2722 = vmatprep.mubr.bf16.mxu0 0
      %2723 = vmatmul.mubr.bf16.gmra.mrb[0].mxu0 %v783
      %v2724 = vpop.f32.mrb[0].mxu0
      %v2725 = vadd.f32 0.0, %v2724
      %v2726 = vpop.f32.mrb[0].mxu0
      %v2727 = vpop.f32.mrb[0].mxu0
      %v2728 = vadd.f32 0.0, %v2727
      %v2729 = vpop.f32.mrb[0].mxu0
      %2730 = vmatprep.mubr.bf16.mxu0 0
      %2731 = vmatmul.mubr.bf16.gmra.mrb[0].mxu0 %v786
      %v2732 = vpop.f32.mrb[0].mxu0
      %v2733 = vadd.f32 0.0, %v2732
      %v2734 = vpop.f32.mrb[0].mxu0
      %v2735 = vpop.f32.mrb[0].mxu0
      %v2736 = vadd.f32 0.0, %v2735
      %v2737 = vpop.f32.mrb[0].mxu0
      %2738 = vmatprep.mubr.bf16.mxu0 0
      %2739 = vmatmul.mubr.bf16.gmra.mrb[0].mxu0 %v789
      %v2740 = vpop.f32.mrb[0].mxu0
      %v2741 = vadd.f32 0.0, %v2740
      %v2742 = vpop.f32.mrb[0].mxu0
      %v2743 = vpop.f32.mrb[0].mxu0
      %v2744 = vadd.f32 0.0, %v2743
      %v2745 = vpop.f32.mrb[0].mxu0
      %2746 = vmatprep.mubr.bf16.mxu0 0
      %2747 = vmatmul.mubr.bf16.gmra.mrb[0].mxu0 %v792
      %v2748 = vpop.f32.mrb[0].mxu0
      %v2749 = vadd.f32 0.0, %v2748
      %v2750 = vpop.f32.mrb[0].mxu0
      %v2751 = vpop.f32.mrb[0].mxu0
      %v2752 = vadd.f32 0.0, %v2751
      %v2753 = vpop.f32.mrb[0].mxu0
      %2754 = vmatprep.mubr.bf16.mxu0 0
      %2755 = vmatmul.mubr.bf16.gmra.mrb[0].mxu0 %v795
      %v2756 = vpop.f32.mrb[0].mxu0
      %v2757 = vadd.f32 0.0, %v2756
      %v2758 = vpop.f32.mrb[0].mxu0
      %v2759 = vpop.f32.mrb[0].mxu0
      %v2760 = vadd.f32 0.0, %v2759
      %v2761 = vpop.f32.mrb[0].mxu0
      %2762 = vmatprep.mubr.bf16.mxu0 0
      %2763 = vmatmul.mubr.bf16.gmra.mrb[0].mxu0 %v798
      %v2764 = vpop.f32.mrb[0].mxu0
      %v2765 = vadd.f32 0.0, %v2764
      %v2766 = vpop.f32.mrb[0].mxu0
      %v2767 = vpop.f32.mrb[0].mxu0
      %v2768 = vadd.f32 0.0, %v2767
      %v2769 = vpop.f32.mrb[0].mxu0
      %2770 = vmatprep.mubr.bf16.mxu0 0
      %2771 = vmatmul.mubr.bf16.gmra.mrb[0].mxu0 %v801
      %v2772 = vpop.f32.mrb[0].mxu0
      %v2773 = vadd.f32 0.0, %v2772
      %v2774 = vpop.f32.mrb[0].mxu0
      %v2775 = vpop.f32.mrb[0].mxu0
      %v2776 = vadd.f32 0.0, %v2775
      %v2777 = vpop.f32.mrb[0].mxu0
      %2778 = vmatprep.mubr.bf16.mxu0 0
      %2779 = vmatmul.mubr.bf16.gmra.mrb[0].mxu0 %v804
      %v2780 = vpop.f32.mrb[0].mxu0
      %v2781 = vadd.f32 0.0, %v2780
      %v2782 = vpop.f32.mrb[0].mxu0
      %v2783 = vpop.f32.mrb[0].mxu0
      %v2784 = vadd.f32 0.0, %v2783
      %v2785 = vpop.f32.mrb[0].mxu0
      %2786 = vmatprep.mubr.bf16.mxu0 0
      %2787 = vmatmul.mubr.bf16.gmra.mrb[0].mxu0 %v807
      %v2788 = vpop.f32.mrb[0].mxu0
      %v2789 = vadd.f32 0.0, %v2788
      %v2790 = vpop.f32.mrb[0].mxu0
      %v2791 = vpop.f32.mrb[0].mxu0
      %v2792 = vadd.f32 0.0, %v2791
      %v2793 = vpop.f32.mrb[0].mxu0
      %2794 = vmatprep.mubr.bf16.mxu0 0
      %2795 = vmatmul.mubr.bf16.gmra.mrb[0].mxu0 %v810
      %v2796 = vpop.f32.mrb[0].mxu0
      %v2797 = vadd.f32 0.0, %v2796
      %v2798 = vpop.f32.mrb[0].mxu0
      %v2799 = vpop.f32.mrb[0].mxu0
      %v2800 = vadd.f32 0.0, %v2799
      %v2801 = vpop.f32.mrb[0].mxu0
      %2802 = vmatprep.mubr.bf16.mxu0 0
      %2803 = vmatmul.mubr.bf16.gmra.mrb[0].mxu0 %v1974
      %v2804 = vpop.f32.mrb[0].mxu0
      %v2805 = vadd.f32 0.0, %v2804
      %v2806 = vpop.f32.mrb[0].mxu0
      %v2807 = vpop.f32.mrb[0].mxu0
      %v2808 = vadd.f32 0.0, %v2807
      %v2809 = vpop.f32.mrb[0].mxu0
      %2810 = vmatprep.mubr.bf16.mxu0 0
      %2811 = vmatmul.mubr.bf16.gmra.mrb[0].mxu0 %v2656
      %v2812 = vpop.f32.mrb[0].mxu0
      %v2813 = vadd.f32 0.0, %v2812
      %v2814 = vpop.f32.mrb[0].mxu0
      %v2815 = vpop.f32.mrb[0].mxu0
      %v2816 = vadd.f32 0.0, %v2815
      %v2817 = vpop.f32.mrb[0].mxu0
      %2818 = vdwg.mxu0
      %v2819 = vadd.f32 %v2579, %v2693
      %v2820 = vadd.f32 %v2580, %v2696
      %v2821 = vadd.f32 %v2581, %v2701
      %v2822 = vadd.f32 %v2582, %v2704
      %v2823 = vadd.f32 %v2583, %v2709
      %v2824 = vadd.f32 %v2584, %v2712
      %v2825 = vadd.f32 %v2585, %v2717
      %v2826 = vadd.f32 %v2586, %v2720
      %v2827 = vadd.f32 %v2587, %v2725
      %v2828 = vadd.f32 %v2588, %v2728
      %v2829 = vadd.f32 %v2589, %v2733
      %v2830 = vadd.f32 %v2590, %v2736
      %v2831 = vadd.f32 %v2591, %v2741
      %v2832 = vadd.f32 %v2592, %v2744
      %v2833 = vadd.f32 %v2593, %v2749
      %v2834 = vadd.f32 %v2594, %v2752
      %v2835 = vadd.f32 %v2595, %v2757
      %v2836 = vadd.f32 %v2596, %v2760
      %v2837 = vadd.f32 %v2597, %v2765
      %v2838 = vadd.f32 %v2598, %v2768
      %v2839 = vadd.f32 %v2599, %v2773
      %v2840 = vadd.f32 %v2600, %v2776
      %v2841 = vadd.f32 %v2601, %v2781
      %v2842 = vadd.f32 %v2602, %v2784
      %v2843 = vadd.f32 %v2603, %v2789
      %v2844 = vadd.f32 %v2604, %v2792
      %v2845 = vadd.f32 %v2605, %v2797
      %v2846 = vadd.f32 %v2606, %v2800
      %v2847 = vadd.f32 %v2607, %v2805
      %v2848 = vadd.f32 %v2608, %v2808
      %v2849 = vadd.f32 %v2609, %v2813
      %v2850 = vadd.f32 %v2610, %v2816
      %v2852 = vrot.slane %v304, 5
      %v2853 = vrot.slane %v2852, 4
      %v2854 = vrot.slane %v305, 5
      %v2855 = vsel %vm1292, %v2853, %v2854
      %v2856 = vrot.slane %v2854, 4
      %v2857 = vrot.slane %v306, 5
      %v2858 = vsel %vm1292, %v2856, %v2857
      %s2859 = scalar_lea.vmem %s1, 128
      %v2860 = vld [vmem:[%s2859] sm:$0xf]
      %v2861 = vld [vmem:[%s2859 + $0x4] sm:$0xf]
      %v2862 = vld [vmem:[%s2859 + $0x8] sm:$0xf]
      %v2863 = vld [vmem:[%s2859 + $0xc] sm:$0xf]
      %v2864 = vunpack.c.l.b16 %v2855
      %v2865 = vunpack.c.l.b16 %v2858
      %v2866 = vpack.c.b16 %v2865, %v2864
      %v2871 = vunpack.c.l.b16 %v2860
      %v2872 = vunpack.c.l.b16 %v2861
      %v2873 = vunpack.c.l.b16 %v2862
      %v2874 = vunpack.c.l.b16 %v2863
      %v2875 = vpack.c.b16 %v2872, %v2871
      %v2876 = vpack.c.b16 %v2874, %v2873
      %v2880 = vsel %vm763, %v2866, 0
      %2882 = vmatprep.subr.bf16.mxu0 0
      %2883 = vmatpush1.bf16.msra.mxu0 %v2875
      %2884 = vmatprep.subr.bf16.mxu0 0
      %2885 = vmatpush1.bf16.msra.mxu0 %v2876
      %2886 = vmatprep.subr.bf16.mxu0 0
      %2887 = vmatpush1.bf16.msra.mxu0 0
      %2888 = vmatprep.subr.bf16.mxu0 0
      %2889 = vmatpush1.bf16.msra.mxu0 0
      %2890 = vmatprep.subr.bf16.mxu0 0
      %2891 = vmatpush1.bf16.msra.mxu0 0
      %2892 = vmatprep.subr.bf16.mxu0 0
      %2893 = vmatpush1.bf16.msra.mxu0 0
      %2894 = vmatprep.subr.bf16.mxu0 0
      %2895 = vmatpush1.bf16.msra.mxu0 0
      %2896 = vmatprep.subr.bf16.mxu0 0
      %2897 = vmatpush1.bf16.msra.mxu0 0
      %2898 = vmatprep.subr.bf16.mxu0 0
      %2899 = vmatpush1.bf16.msra.mxu0 0
      %2900 = vmatprep.subr.bf16.mxu0 0
      %2901 = vmatpush1.bf16.msra.mxu0 0
      %2902 = vmatprep.subr.bf16.mxu0 0
      %2903 = vmatpush1.bf16.msra.mxu0 0
      %2904 = vmatprep.subr.bf16.mxu0 0
      %2905 = vmatpush1.bf16.msra.mxu0 0
      %2906 = vmatprep.subr.bf16.mxu0 0
      %2907 = vmatpush1.bf16.msra.mxu0 0
      %2908 = vmatprep.subr.bf16.mxu0 0
      %2909 = vmatpush1.bf16.msra.mxu0 0
      %2910 = vmatprep.subr.bf16.mxu0 0
      %2911 = vmatpush1.bf16.msra.mxu0 0
      %2912 = vmatprep.subr.bf16.mxu0 0
      %2913 = vmatpush1.bf16.msra.mxu0 0
      %2914 = vmatprep.mubr.bf16.mxu0 0
      %2915 = vmatmul.mubr.bf16.gmra.mrb[0].mxu0 %v1477
      %v2916 = vpop.f32.mrb[0].mxu0
      %v2917 = vadd.f32 0.0, %v2916
      %v2918 = vpop.f32.mrb[0].mxu0
      %v2919 = vpop.f32.mrb[0].mxu0
      %v2920 = vadd.f32 0.0, %v2919
      %v2921 = vpop.f32.mrb[0].mxu0
      %2922 = vmatprep.mubr.bf16.mxu0 0
      %2923 = vmatmul.mubr.bf16.gmra.mrb[0].mxu0 %v1480
      %v2924 = vpop.f32.mrb[0].mxu0
      %v2925 = vadd.f32 0.0, %v2924
      %v2926 = vpop.f32.mrb[0].mxu0
      %v2927 = vpop.f32.mrb[0].mxu0
      %v2928 = vadd.f32 0.0, %v2927
      %v2929 = vpop.f32.mrb[0].mxu0
      %2930 = vmatprep.mubr.bf16.mxu0 0
      %2931 = vmatmul.mubr.bf16.gmra.mrb[0].mxu0 %v1483
      %v2932 = vpop.f32.mrb[0].mxu0
      %v2933 = vadd.f32 0.0, %v2932
      %v2934 = vpop.f32.mrb[0].mxu0
      %v2935 = vpop.f32.mrb[0].mxu0
      %v2936 = vadd.f32 0.0, %v2935
      %v2937 = vpop.f32.mrb[0].mxu0
      %2938 = vmatprep.mubr.bf16.mxu0 0
      %2939 = vmatmul.mubr.bf16.gmra.mrb[0].mxu0 %v1486
      %v2940 = vpop.f32.mrb[0].mxu0
      %v2941 = vadd.f32 0.0, %v2940
      %v2942 = vpop.f32.mrb[0].mxu0
      %v2943 = vpop.f32.mrb[0].mxu0
      %v2944 = vadd.f32 0.0, %v2943
      %v2945 = vpop.f32.mrb[0].mxu0
      %2946 = vmatprep.mubr.bf16.mxu0 0
      %2947 = vmatmul.mubr.bf16.gmra.mrb[0].mxu0 %v1489
      %v2948 = vpop.f32.mrb[0].mxu0
      %v2949 = vadd.f32 0.0, %v2948
      %v2950 = vpop.f32.mrb[0].mxu0
      %v2951 = vpop.f32.mrb[0].mxu0
      %v2952 = vadd.f32 0.0, %v2951
      %v2953 = vpop.f32.mrb[0].mxu0
      %2954 = vmatprep.mubr.bf16.mxu0 0
      %2955 = vmatmul.mubr.bf16.gmra.mrb[0].mxu0 %v1492
      %v2956 = vpop.f32.mrb[0].mxu0
      %v2957 = vadd.f32 0.0, %v2956
      %v2958 = vpop.f32.mrb[0].mxu0
      %v2959 = vpop.f32.mrb[0].mxu0
      %v2960 = vadd.f32 0.0, %v2959
      %v2961 = vpop.f32.mrb[0].mxu0
      %2962 = vmatprep.mubr.bf16.mxu0 0
      %2963 = vmatmul.mubr.bf16.gmra.mrb[0].mxu0 %v1495
      %v2964 = vpop.f32.mrb[0].mxu0
      %v2965 = vadd.f32 0.0, %v2964
      %v2966 = vpop.f32.mrb[0].mxu0
      %v2967 = vpop.f32.mrb[0].mxu0
      %v2968 = vadd.f32 0.0, %v2967
      %v2969 = vpop.f32.mrb[0].mxu0
      %2970 = vmatprep.mubr.bf16.mxu0 0
      %2971 = vmatmul.mubr.bf16.gmra.mrb[0].mxu0 %v1498
      %v2972 = vpop.f32.mrb[0].mxu0
      %v2973 = vadd.f32 0.0, %v2972
      %v2974 = vpop.f32.mrb[0].mxu0
      %v2975 = vpop.f32.mrb[0].mxu0
      %v2976 = vadd.f32 0.0, %v2975
      %v2977 = vpop.f32.mrb[0].mxu0
      %2978 = vmatprep.mubr.bf16.mxu0 0
      %2979 = vmatmul.mubr.bf16.gmra.mrb[0].mxu0 %v1501
      %v2980 = vpop.f32.mrb[0].mxu0
      %v2981 = vadd.f32 0.0, %v2980
      %v2982 = vpop.f32.mrb[0].mxu0
      %v2983 = vpop.f32.mrb[0].mxu0
      %v2984 = vadd.f32 0.0, %v2983
      %v2985 = vpop.f32.mrb[0].mxu0
      %2986 = vmatprep.mubr.bf16.mxu0 0
      %2987 = vmatmul.mubr.bf16.gmra.mrb[0].mxu0 %v1504
      %v2988 = vpop.f32.mrb[0].mxu0
      %v2989 = vadd.f32 0.0, %v2988
      %v2990 = vpop.f32.mrb[0].mxu0
      %v2991 = vpop.f32.mrb[0].mxu0
      %v2992 = vadd.f32 0.0, %v2991
      %v2993 = vpop.f32.mrb[0].mxu0
      %2994 = vmatprep.mubr.bf16.mxu0 0
      %2995 = vmatmul.mubr.bf16.gmra.mrb[0].mxu0 %v1507
      %v2996 = vpop.f32.mrb[0].mxu0
      %v2997 = vadd.f32 0.0, %v2996
      %v2998 = vpop.f32.mrb[0].mxu0
      %v2999 = vpop.f32.mrb[0].mxu0
      %v3000 = vadd.f32 0.0, %v2999
      %v3001 = vpop.f32.mrb[0].mxu0
      %3002 = vmatprep.mubr.bf16.mxu0 0
      %3003 = vmatmul.mubr.bf16.gmra.mrb[0].mxu0 %v1510
      %v3004 = vpop.f32.mrb[0].mxu0
      %v3005 = vadd.f32 0.0, %v3004
      %v3006 = vpop.f32.mrb[0].mxu0
      %v3007 = vpop.f32.mrb[0].mxu0
      %v3008 = vadd.f32 0.0, %v3007
      %v3009 = vpop.f32.mrb[0].mxu0
      %3010 = vmatprep.mubr.bf16.mxu0 0
      %3011 = vmatmul.mubr.bf16.gmra.mrb[0].mxu0 %v1513
      %v3012 = vpop.f32.mrb[0].mxu0
      %v3013 = vadd.f32 0.0, %v3012
      %v3014 = vpop.f32.mrb[0].mxu0
      %v3015 = vpop.f32.mrb[0].mxu0
      %v3016 = vadd.f32 0.0, %v3015
      %v3017 = vpop.f32.mrb[0].mxu0
      %3018 = vmatprep.mubr.bf16.mxu0 0
      %3019 = vmatmul.mubr.bf16.gmra.mrb[0].mxu0 %v1516
      %v3020 = vpop.f32.mrb[0].mxu0
      %v3021 = vadd.f32 0.0, %v3020
      %v3022 = vpop.f32.mrb[0].mxu0
      %v3023 = vpop.f32.mrb[0].mxu0
      %v3024 = vadd.f32 0.0, %v3023
      %v3025 = vpop.f32.mrb[0].mxu0
      %3026 = vmatprep.mubr.bf16.mxu0 0
      %3027 = vmatmul.mubr.bf16.gmra.mrb[0].mxu0 %v2198
      %v3028 = vpop.f32.mrb[0].mxu0
      %v3029 = vadd.f32 0.0, %v3028
      %v3030 = vpop.f32.mrb[0].mxu0
      %v3031 = vpop.f32.mrb[0].mxu0
      %v3032 = vadd.f32 0.0, %v3031
      %v3033 = vpop.f32.mrb[0].mxu0
      %3034 = vmatprep.mubr.bf16.mxu0 0
      %3035 = vmatmul.mubr.bf16.gmra.mrb[0].mxu0 %v2880
      %v3036 = vpop.f32.mrb[0].mxu0
      %v3037 = vadd.f32 0.0, %v3036
      %v3038 = vpop.f32.mrb[0].mxu0
      %v3039 = vpop.f32.mrb[0].mxu0
      %v3040 = vadd.f32 0.0, %v3039
      %v3041 = vpop.f32.mrb[0].mxu0
      %3042 = vdwg.mxu0
      %v3043 = vadd.f32 %v2819, %v2917
      %v3044 = vadd.f32 %v2820, %v2920
      %v3045 = vadd.f32 %v2821, %v2925
      %v3046 = vadd.f32 %v2822, %v2928
      %v3047 = vadd.f32 %v2823, %v2933
      %v3048 = vadd.f32 %v2824, %v2936
      %v3049 = vadd.f32 %v2825, %v2941
      %v3050 = vadd.f32 %v2826, %v2944
      %v3051 = vadd.f32 %v2827, %v2949
      %v3052 = vadd.f32 %v2828, %v2952
      %v3053 = vadd.f32 %v2829, %v2957
      %v3054 = vadd.f32 %v2830, %v2960
      %v3055 = vadd.f32 %v2831, %v2965
      %v3056 = vadd.f32 %v2832, %v2968
      %v3057 = vadd.f32 %v2833, %v2973
      %v3058 = vadd.f32 %v2834, %v2976
      %v3059 = vadd.f32 %v2835, %v2981
      %v3060 = vadd.f32 %v2836, %v2984
      %v3061 = vadd.f32 %v2837, %v2989
      %v3062 = vadd.f32 %v2838, %v2992
      %v3063 = vadd.f32 %v2839, %v2997
      %v3064 = vadd.f32 %v2840, %v3000
      %v3065 = vadd.f32 %v2841, %v3005
      %v3066 = vadd.f32 %v2842, %v3008
      %v3067 = vadd.f32 %v2843, %v3013
      %v3068 = vadd.f32 %v2844, %v3016
      %v3069 = vadd.f32 %v2845, %v3021
      %v3070 = vadd.f32 %v2846, %v3024
      %v3071 = vadd.f32 %v2847, %v3029
      %v3072 = vadd.f32 %v2848, %v3032
      %v3073 = vadd.f32 %v2849, %v3037
      %v3074 = vadd.f32 %v2850, %v3040
      %v3075 = vld [vmem:[%s2] sm:$0x1]
      %v3077 = vlaneseq
      %v3078 = vshrl.u32 %v3077, 7
      %v3079 = vsub.s32 0, %v3078
      %v3080 = vrot.slane %v3075, %v3079
      %v3082 = vadd.f32 %v3043, %v3080
      %v3083 = vadd.f32 %v3044, %v3080
      %v3084 = vadd.f32 %v3045, %v3080
      %v3085 = vadd.f32 %v3046, %v3080
      %v3086 = vadd.f32 %v3047, %v3080
      %v3087 = vadd.f32 %v3048, %v3080
      %v3088 = vadd.f32 %v3049, %v3080
      %v3089 = vadd.f32 %v3050, %v3080
      %v3090 = vadd.f32 %v3051, %v3080
      %v3091 = vadd.f32 %v3052, %v3080
      %v3092 = vadd.f32 %v3053, %v3080
      %v3093 = vadd.f32 %v3054, %v3080
      %v3094 = vadd.f32 %v3055, %v3080
      %v3095 = vadd.f32 %v3056, %v3080
      %v3096 = vadd.f32 %v3057, %v3080
      %v3097 = vadd.f32 %v3058, %v3080
      %v3098 = vadd.f32 %v3059, %v3080
      %v3099 = vadd.f32 %v3060, %v3080
      %v3100 = vadd.f32 %v3061, %v3080
      %v3101 = vadd.f32 %v3062, %v3080
      %v3102 = vadd.f32 %v3063, %v3080
      %v3103 = vadd.f32 %v3064, %v3080
      %v3104 = vadd.f32 %v3065, %v3080
      %v3105 = vadd.f32 %v3066, %v3080
      %v3106 = vadd.f32 %v3067, %v3080
      %v3107 = vadd.f32 %v3068, %v3080
      %v3108 = vadd.f32 %v3069, %v3080
      %v3109 = vadd.f32 %v3070, %v3080
      %v3110 = vadd.f32 %v3071, %v3080
      %v3111 = vadd.f32 %v3072, %v3080
      %v3112 = vadd.f32 %v3073, %v3080
      %v3113 = vadd.f32 %v3074, %v3080
      %v3114 = vmax.f32 %v3082, 0.0
      %v3115 = vmax.f32 %v3083, 0.0
      %v3116 = vmax.f32 %v3084, 0.0
      %v3117 = vmax.f32 %v3085, 0.0
      %v3118 = vmax.f32 %v3086, 0.0
      %v3119 = vmax.f32 %v3087, 0.0
      %v3120 = vmax.f32 %v3088, 0.0
      %v3121 = vmax.f32 %v3089, 0.0
      %v3122 = vmax.f32 %v3090, 0.0
      %v3123 = vmax.f32 %v3091, 0.0
      %v3124 = vmax.f32 %v3092, 0.0
      %v3125 = vmax.f32 %v3093, 0.0
      %v3126 = vmax.f32 %v3094, 0.0
      %v3127 = vmax.f32 %v3095, 0.0
      %v3128 = vmax.f32 %v3096, 0.0
      %v3129 = vmax.f32 %v3097, 0.0
      %v3130 = vmax.f32 %v3098, 0.0
      %v3131 = vmax.f32 %v3099, 0.0
      %v3132 = vmax.f32 %v3100, 0.0
      %v3133 = vmax.f32 %v3101, 0.0
      %v3134 = vmax.f32 %v3102, 0.0
      %v3135 = vmax.f32 %v3103, 0.0
      %v3136 = vmax.f32 %v3104, 0.0
      %v3137 = vmax.f32 %v3105, 0.0
      %v3138 = vmax.f32 %v3106, 0.0
      %v3139 = vmax.f32 %v3107, 0.0
      %v3140 = vmax.f32 %v3108, 0.0
      %v3141 = vmax.f32 %v3109, 0.0
      %v3142 = vmax.f32 %v3110, 0.0
      %v3143 = vmax.f32 %v3111, 0.0
      %v3144 = vmax.f32 %v3112, 0.0
      %v3145 = vmax.f32 %v3113, 0.0
      %v3146 = vpack.c.bf16 %v3115, %v3114
      %v3147 = vpack.c.bf16 %v3117, %v3116
      %v3148 = vpack.c.bf16 %v3119, %v3118
      %v3149 = vpack.c.bf16 %v3121, %v3120
      %v3150 = vpack.c.bf16 %v3123, %v3122
      %v3151 = vpack.c.bf16 %v3125, %v3124
      %v3152 = vpack.c.bf16 %v3127, %v3126
      %v3153 = vpack.c.bf16 %v3129, %v3128
      %v3154 = vpack.c.bf16 %v3131, %v3130
      %v3155 = vpack.c.bf16 %v3133, %v3132
      %v3156 = vpack.c.bf16 %v3135, %v3134
      %v3157 = vpack.c.bf16 %v3137, %v3136
      %v3158 = vpack.c.bf16 %v3139, %v3138
      %v3159 = vpack.c.bf16 %v3141, %v3140
      %v3160 = vpack.c.bf16 %v3143, %v3142
      %v3161 = vpack.c.bf16 %v3145, %v3144
      %v3162 = vld [vmem:[%s3] sm:$0xf]
      %v3163 = vld [vmem:[%s3 + $0x4] sm:$0xf]
      %v3164 = vld [vmem:[%s3 + $0x8] sm:$0xf]
      %v3165 = vld [vmem:[%s3 + $0xc] sm:$0xf]
      %v3166 = vld [vmem:[%s3 + $0x10] sm:$0xf]
      %v3167 = vld [vmem:[%s3 + $0x14] sm:$0xf]
      %v3168 = vld [vmem:[%s3 + $0x18] sm:$0xf]
      %v3169 = vld [vmem:[%s3 + $0x1c] sm:$0xf]
      %v3170 = vld [vmem:[%s3 + $0x20] sm:$0xf]
      %v3171 = vld [vmem:[%s3 + $0x24] sm:$0xf]
      %v3172 = vld [vmem:[%s3 + $0x28] sm:$0xf]
      %v3173 = vld [vmem:[%s3 + $0x2c] sm:$0xf]
      %v3174 = vld [vmem:[%s4] sm:$0x1]
      %v3176 = vlaneseq
      %v3177 = vshrl.u32 %v3176, 7
      %v3178 = vsub.s32 0, %v3177
      %v3179 = vrot.slane %v3174, %v3178
      %v3193 = vunpack.c.l.b16 %v3162
      %v3194 = vunpack.c.l.b16 %v3163
      %v3195 = vunpack.c.l.b16 %v3164
      %v3196 = vunpack.c.l.b16 %v3165
      %v3197 = vunpack.c.l.b16 %v3166
      %v3198 = vunpack.c.l.b16 %v3167
      %v3199 = vunpack.c.l.b16 %v3168
      %v3200 = vunpack.c.l.b16 %v3169
      %v3201 = vunpack.c.l.b16 %v3170
      %v3202 = vunpack.c.l.b16 %v3171
      %v3203 = vunpack.c.l.b16 %v3172
      %v3204 = vunpack.c.l.b16 %v3173
      %v3205 = vpack.c.b16 %v3194, %v3193
      %v3206 = vpack.c.b16 %v3196, %v3195
      %v3207 = vpack.c.b16 %v3198, %v3197
      %v3208 = vpack.c.b16 %v3200, %v3199
      %v3209 = vpack.c.b16 %v3202, %v3201
      %v3210 = vpack.c.b16 %v3204, %v3203
      %vm3217 = vcmask 785408
      %v3219 = vsel %vm3217, %v3146, 0
      %v3222 = vsel %vm3217, %v3147, 0
      %v3225 = vsel %vm3217, %v3148, 0
      %v3228 = vsel %vm3217, %v3149, 0
      %v3231 = vsel %vm3217, %v3150, 0
      %v3234 = vsel %vm3217, %v3151, 0
      %v3237 = vsel %vm3217, %v3152, 0
      %v3240 = vsel %vm3217, %v3153, 0
      %v3243 = vsel %vm3217, %v3154, 0
      %v3246 = vsel %vm3217, %v3155, 0
      %v3249 = vsel %vm3217, %v3156, 0
      %v3252 = vsel %vm3217, %v3157, 0
      %v3255 = vsel %vm3217, %v3158, 0
      %v3258 = vsel %vm3217, %v3159, 0
      %v3261 = vsel %vm3217, %v3160, 0
      %v3264 = vsel %vm3217, %v3161, 0
      %3266 = vmatprep.subr.bf16.mxu0 0
      %3267 = vmatpush1.bf16.msra.mxu0 %v3205
      %3268 = vmatprep.subr.bf16.mxu0 0
      %3269 = vmatpush1.bf16.msra.mxu0 %v3206
      %3270 = vmatprep.subr.bf16.mxu0 0
      %3271 = vmatpush1.bf16.msra.mxu0 %v3207
      %3272 = vmatprep.subr.bf16.mxu0 0
      %3273 = vmatpush1.bf16.msra.mxu0 %v3208
      %3274 = vmatprep.subr.bf16.mxu0 0
      %3275 = vmatpush1.bf16.msra.mxu0 %v3209
      %3276 = vmatprep.subr.bf16.mxu0 0
      %3277 = vmatpush1.bf16.msra.mxu0 %v3210
      %3278 = vmatprep.subr.bf16.mxu0 0
      %3279 = vmatpush1.bf16.msra.mxu0 0
      %3280 = vmatprep.subr.bf16.mxu0 0
      %3281 = vmatpush1.bf16.msra.mxu0 0
      %3282 = vmatprep.subr.bf16.mxu0 0
      %3283 = vmatpush1.bf16.msra.mxu0 0
      %3284 = vmatprep.subr.bf16.mxu0 0
      %3285 = vmatpush1.bf16.msra.mxu0 0
      %3286 = vmatprep.subr.bf16.mxu0 0
      %3287 = vmatpush1.bf16.msra.mxu0 0
      %3288 = vmatprep.subr.bf16.mxu0 0
      %3289 = vmatpush1.bf16.msra.mxu0 0
      %3290 = vmatprep.subr.bf16.mxu0 0
      %3291 = vmatpush1.bf16.msra.mxu0 0
      %3292 = vmatprep.subr.bf16.mxu0 0
      %3293 = vmatpush1.bf16.msra.mxu0 0
      %3294 = vmatprep.subr.bf16.mxu0 0
      %3295 = vmatpush1.bf16.msra.mxu0 0
      %3296 = vmatprep.subr.bf16.mxu0 0
      %3297 = vmatpush1.bf16.msra.mxu0 0
      %3298 = vmatprep.mubr.bf16.mxu0 0
      %3299 = vmatmul.mubr.bf16.gmra.mrb[0].mxu0 %v3219
      %v3300 = vpop.f32.mrb[0].mxu0
      %v3301 = vadd.f32 %v3179, %v3300
      %v3302 = vpop.f32.mrb[0].mxu0
      %v3303 = vpop.f32.mrb[0].mxu0
      %v3304 = vadd.f32 %v3179, %v3303
      %v3305 = vpop.f32.mrb[0].mxu0
      %3306 = vmatprep.mubr.bf16.mxu0 0
      %3307 = vmatmul.mubr.bf16.gmra.mrb[0].mxu0 %v3222
      %v3308 = vpop.f32.mrb[0].mxu0
      %v3309 = vadd.f32 %v3179, %v3308
      %v3310 = vpop.f32.mrb[0].mxu0
      %v3311 = vpop.f32.mrb[0].mxu0
      %v3312 = vadd.f32 %v3179, %v3311
      %v3313 = vpop.f32.mrb[0].mxu0
      %3314 = vmatprep.mubr.bf16.mxu0 0
      %3315 = vmatmul.mubr.bf16.gmra.mrb[0].mxu0 %v3225
      %v3316 = vpop.f32.mrb[0].mxu0
      %v3317 = vadd.f32 %v3179, %v3316
      %v3318 = vpop.f32.mrb[0].mxu0
      %v3319 = vpop.f32.mrb[0].mxu0
      %v3320 = vadd.f32 %v3179, %v3319
      %v3321 = vpop.f32.mrb[0].mxu0
      %3322 = vmatprep.mubr.bf16.mxu0 0
      %3323 = vmatmul.mubr.bf16.gmra.mrb[0].mxu0 %v3228
      %v3324 = vpop.f32.mrb[0].mxu0
      %v3325 = vadd.f32 %v3179, %v3324
      %v3326 = vpop.f32.mrb[0].mxu0
      %v3327 = vpop.f32.mrb[0].mxu0
      %v3328 = vadd.f32 %v3179, %v3327
      %v3329 = vpop.f32.mrb[0].mxu0
      %3330 = vmatprep.mubr.bf16.mxu0 0
      %3331 = vmatmul.mubr.bf16.gmra.mrb[0].mxu0 %v3231
      %v3332 = vpop.f32.mrb[0].mxu0
      %v3333 = vadd.f32 %v3179, %v3332
      %v3334 = vpop.f32.mrb[0].mxu0
      %v3335 = vpop.f32.mrb[0].mxu0
      %v3336 = vadd.f32 %v3179, %v3335
      %v3337 = vpop.f32.mrb[0].mxu0
      %3338 = vmatprep.mubr.bf16.mxu0 0
      %3339 = vmatmul.mubr.bf16.gmra.mrb[0].mxu0 %v3234
      %v3340 = vpop.f32.mrb[0].mxu0
      %v3341 = vadd.f32 %v3179, %v3340
      %v3342 = vpop.f32.mrb[0].mxu0
      %v3343 = vpop.f32.mrb[0].mxu0
      %v3344 = vadd.f32 %v3179, %v3343
      %v3345 = vpop.f32.mrb[0].mxu0
      %3346 = vmatprep.mubr.bf16.mxu0 0
      %3347 = vmatmul.mubr.bf16.gmra.mrb[0].mxu0 %v3237
      %v3348 = vpop.f32.mrb[0].mxu0
      %v3349 = vadd.f32 %v3179, %v3348
      %v3350 = vpop.f32.mrb[0].mxu0
      %v3351 = vpop.f32.mrb[0].mxu0
      %v3352 = vadd.f32 %v3179, %v3351
      %v3353 = vpop.f32.mrb[0].mxu0
      %3354 = vmatprep.mubr.bf16.mxu0 0
      %3355 = vmatmul.mubr.bf16.gmra.mrb[0].mxu0 %v3240
      %v3356 = vpop.f32.mrb[0].mxu0
      %v3357 = vadd.f32 %v3179, %v3356
      %v3358 = vpop.f32.mrb[0].mxu0
      %v3359 = vpop.f32.mrb[0].mxu0
      %v3360 = vadd.f32 %v3179, %v3359
      %v3361 = vpop.f32.mrb[0].mxu0
      %3362 = vmatprep.mubr.bf16.mxu0 0
      %3363 = vmatmul.mubr.bf16.gmra.mrb[0].mxu0 %v3243
      %v3364 = vpop.f32.mrb[0].mxu0
      %v3365 = vadd.f32 %v3179, %v3364
      %v3366 = vpop.f32.mrb[0].mxu0
      %v3367 = vpop.f32.mrb[0].mxu0
      %v3368 = vadd.f32 %v3179, %v3367
      %v3369 = vpop.f32.mrb[0].mxu0
      %3370 = vmatprep.mubr.bf16.mxu0 0
      %3371 = vmatmul.mubr.bf16.gmra.mrb[0].mxu0 %v3246
      %v3372 = vpop.f32.mrb[0].mxu0
      %v3373 = vadd.f32 %v3179, %v3372
      %v3374 = vpop.f32.mrb[0].mxu0
      %v3375 = vpop.f32.mrb[0].mxu0
      %v3376 = vadd.f32 %v3179, %v3375
      %v3377 = vpop.f32.mrb[0].mxu0
      %3378 = vmatprep.mubr.bf16.mxu0 0
      %3379 = vmatmul.mubr.bf16.gmra.mrb[0].mxu0 %v3249
      %v3380 = vpop.f32.mrb[0].mxu0
      %v3381 = vadd.f32 %v3179, %v3380
      %v3382 = vpop.f32.mrb[0].mxu0
      %v3383 = vpop.f32.mrb[0].mxu0
      %v3384 = vadd.f32 %v3179, %v3383
      %v3385 = vpop.f32.mrb[0].mxu0
      %3386 = vmatprep.mubr.bf16.mxu0 0
      %3387 = vmatmul.mubr.bf16.gmra.mrb[0].mxu0 %v3252
      %v3388 = vpop.f32.mrb[0].mxu0
      %v3389 = vadd.f32 %v3179, %v3388
      %v3390 = vpop.f32.mrb[0].mxu0
      %v3391 = vpop.f32.mrb[0].mxu0
      %v3392 = vadd.f32 %v3179, %v3391
      %v3393 = vpop.f32.mrb[0].mxu0
      %3394 = vmatprep.mubr.bf16.mxu0 0
      %3395 = vmatmul.mubr.bf16.gmra.mrb[0].mxu0 %v3255
      %v3396 = vpop.f32.mrb[0].mxu0
      %v3397 = vadd.f32 %v3179, %v3396
      %v3398 = vpop.f32.mrb[0].mxu0
      %v3399 = vpop.f32.mrb[0].mxu0
      %v3400 = vadd.f32 %v3179, %v3399
      %v3401 = vpop.f32.mrb[0].mxu0
      %3402 = vmatprep.mubr.bf16.mxu0 0
      %3403 = vmatmul.mubr.bf16.gmra.mrb[0].mxu0 %v3258
      %v3404 = vpop.f32.mrb[0].mxu0
      %v3405 = vadd.f32 %v3179, %v3404
      %v3406 = vpop.f32.mrb[0].mxu0
      %v3407 = vpop.f32.mrb[0].mxu0
      %v3408 = vadd.f32 %v3179, %v3407
      %v3409 = vpop.f32.mrb[0].mxu0
      %3410 = vmatprep.mubr.bf16.mxu0 0
      %3411 = vmatmul.mubr.bf16.gmra.mrb[0].mxu0 %v3261
      %v3412 = vpop.f32.mrb[0].mxu0
      %v3413 = vadd.f32 %v3179, %v3412
      %v3414 = vpop.f32.mrb[0].mxu0
      %v3415 = vpop.f32.mrb[0].mxu0
      %v3416 = vadd.f32 %v3179, %v3415
      %v3417 = vpop.f32.mrb[0].mxu0
      %3418 = vmatprep.mubr.bf16.mxu0 0
      %3419 = vmatmul.mubr.bf16.gmra.mrb[0].mxu0 %v3264
      %v3420 = vpop.f32.mrb[0].mxu0
      %v3421 = vadd.f32 %v3179, %v3420
      %v3422 = vpop.f32.mrb[0].mxu0
      %v3423 = vpop.f32.mrb[0].mxu0
      %v3424 = vadd.f32 %v3179, %v3423
      %v3425 = vpop.f32.mrb[0].mxu0
      %3426 = vdwg.mxu0
      %v3427 = vlaneseq
      %v3428 = vand.u32 %v3427, 127
      %vm3429 = vcmp.lt.s32.totalorder %v3428, 4
      %v3430 = vxor.u32 %v3301, 2147483648
      %v3431 = vxor.u32 %v3304, 2147483648
      %v3432 = vxor.u32 %v3309, 2147483648
      %v3433 = vxor.u32 %v3312, 2147483648
      %v3434 = vxor.u32 %v3317, 2147483648
      %v3435 = vxor.u32 %v3320, 2147483648
      %v3436 = vxor.u32 %v3325, 2147483648
      %v3437 = vxor.u32 %v3328, 2147483648
      %v3438 = vxor.u32 %v3333, 2147483648
      %v3439 = vxor.u32 %v3336, 2147483648
      %v3440 = vxor.u32 %v3341, 2147483648
      %v3441 = vxor.u32 %v3344, 2147483648
      %v3442 = vxor.u32 %v3349, 2147483648
      %v3443 = vxor.u32 %v3352, 2147483648
      %v3444 = vxor.u32 %v3357, 2147483648
      %v3445 = vxor.u32 %v3360, 2147483648
      %v3446 = vxor.u32 %v3365, 2147483648
      %v3447 = vxor.u32 %v3368, 2147483648
      %v3448 = vxor.u32 %v3373, 2147483648
      %v3449 = vxor.u32 %v3376, 2147483648
      %v3450 = vxor.u32 %v3381, 2147483648
      %v3451 = vxor.u32 %v3384, 2147483648
      %v3452 = vxor.u32 %v3389, 2147483648
      %v3453 = vxor.u32 %v3392, 2147483648
      %v3454 = vxor.u32 %v3397, 2147483648
      %v3455 = vxor.u32 %v3400, 2147483648
      %v3456 = vxor.u32 %v3405, 2147483648
      %v3457 = vxor.u32 %v3408, 2147483648
      %v3458 = vxor.u32 %v3413, 2147483648
      %v3459 = vxor.u32 %v3416, 2147483648
      %v3460 = vxor.u32 %v3421, 2147483648
      %v3461 = vxor.u32 %v3424, 2147483648
      %v3462 = vmul.f32 %v3430, 1.442695
      %v3463 = vpow.pop %v3462
      %v3464 = vmul.f32 %v3431, 1.442695
      %v3465 = vpow.pop %v3464
      %v3466 = vmul.f32 %v3432, 1.442695
      %v3467 = vpow.pop %v3466
      %v3468 = vmul.f32 %v3433, 1.442695
      %v3469 = vpow.pop %v3468
      %v3470 = vmul.f32 %v3434, 1.442695
      %v3471 = vpow.pop %v3470
      %v3472 = vmul.f32 %v3435, 1.442695
      %v3473 = vpow.pop %v3472
      %v3474 = vmul.f32 %v3436, 1.442695
      %v3475 = vpow.pop %v3474
      %v3476 = vmul.f32 %v3437, 1.442695
      %v3477 = vpow.pop %v3476
      %v3478 = vmul.f32 %v3438, 1.442695
      %v3479 = vpow.pop %v3478
      %v3480 = vmul.f32 %v3439, 1.442695
      %v3481 = vpow.pop %v3480
      %v3482 = vmul.f32 %v3440, 1.442695
      %v3483 = vpow.pop %v3482
      %v3484 = vmul.f32 %v3441, 1.442695
      %v3485 = vpow.pop %v3484
      %v3486 = vmul.f32 %v3442, 1.442695
      %v3487 = vpow.pop %v3486
      %v3488 = vmul.f32 %v3443, 1.442695
      %v3489 = vpow.pop %v3488
      %v3490 = vmul.f32 %v3444, 1.442695
      %v3491 = vpow.pop %v3490
      %v3492 = vmul.f32 %v3445, 1.442695
      %v3493 = vpow.pop %v3492
      %v3494 = vmul.f32 %v3446, 1.442695
      %v3495 = vpow.pop %v3494
      %v3496 = vmul.f32 %v3447, 1.442695
      %v3497 = vpow.pop %v3496
      %v3498 = vmul.f32 %v3448, 1.442695
      %v3499 = vpow.pop %v3498
      %v3500 = vmul.f32 %v3449, 1.442695
      %v3501 = vpow.pop %v3500
      %v3502 = vmul.f32 %v3450, 1.442695
      %v3503 = vpow.pop %v3502
      %v3504 = vmul.f32 %v3451, 1.442695
      %v3505 = vpow.pop %v3504
      %v3506 = vmul.f32 %v3452, 1.442695
      %v3507 = vpow.pop %v3506
      %v3508 = vmul.f32 %v3453, 1.442695
      %v3509 = vpow.pop %v3508
      %v3510 = vmul.f32 %v3454, 1.442695
      %v3511 = vpow.pop %v3510
      %v3512 = vmul.f32 %v3455, 1.442695
      %v3513 = vpow.pop %v3512
      %v3514 = vmul.f32 %v3456, 1.442695
      %v3515 = vpow.pop %v3514
      %v3516 = vmul.f32 %v3457, 1.442695
      %v3517 = vpow.pop %v3516
      %v3518 = vmul.f32 %v3458, 1.442695
      %v3519 = vpow.pop %v3518
      %v3520 = vmul.f32 %v3459, 1.442695
      %v3521 = vpow.pop %v3520
      %v3522 = vmul.f32 %v3460, 1.442695
      %v3523 = vpow.pop %v3522
      %v3524 = vmul.f32 %v3461, 1.442695
      %v3525 = vpow.pop %v3524
      %v3526 = vadd.f32 %v3463, 1.0
      %v3527 = vadd.f32 %v3465, 1.0
      %v3528 = vadd.f32 %v3467, 1.0
      %v3529 = vadd.f32 %v3469, 1.0
      %v3530 = vadd.f32 %v3471, 1.0
      %v3531 = vadd.f32 %v3473, 1.0
      %v3532 = vadd.f32 %v3475, 1.0
      %v3533 = vadd.f32 %v3477, 1.0
      %v3534 = vadd.f32 %v3479, 1.0
      %v3535 = vadd.f32 %v3481, 1.0
      %v3536 = vadd.f32 %v3483, 1.0
      %v3537 = vadd.f32 %v3485, 1.0
      %v3538 = vadd.f32 %v3487, 1.0
      %v3539 = vadd.f32 %v3489, 1.0
      %v3540 = vadd.f32 %v3491, 1.0
      %v3541 = vadd.f32 %v3493, 1.0
      %v3542 = vadd.f32 %v3495, 1.0
      %v3543 = vadd.f32 %v3497, 1.0
      %v3544 = vadd.f32 %v3499, 1.0
      %v3545 = vadd.f32 %v3501, 1.0
      %v3546 = vadd.f32 %v3503, 1.0
      %v3547 = vadd.f32 %v3505, 1.0
      %v3548 = vadd.f32 %v3507, 1.0
      %v3549 = vadd.f32 %v3509, 1.0
      %v3550 = vadd.f32 %v3511, 1.0
      %v3551 = vadd.f32 %v3513, 1.0
      %v3552 = vadd.f32 %v3515, 1.0
      %v3553 = vadd.f32 %v3517, 1.0
      %v3554 = vadd.f32 %v3519, 1.0
      %v3555 = vadd.f32 %v3521, 1.0
      %v3556 = vadd.f32 %v3523, 1.0
      %v3557 = vadd.f32 %v3525, 1.0
      %v3558 = vrcp.pop %v3526
      %v3559 = vmul.f32 1.0, %v3558
      %v3560 = vrcp.pop %v3527
      %v3561 = vmul.f32 1.0, %v3560
      %v3562 = vrcp.pop %v3528
      %v3563 = vmul.f32 1.0, %v3562
      %v3564 = vrcp.pop %v3529
      %v3565 = vmul.f32 1.0, %v3564
      %v3566 = vrcp.pop %v3530
      %v3567 = vmul.f32 1.0, %v3566
      %v3568 = vrcp.pop %v3531
      %v3569 = vmul.f32 1.0, %v3568
      %v3570 = vrcp.pop %v3532
      %v3571 = vmul.f32 1.0, %v3570
      %v3572 = vrcp.pop %v3533
      %v3573 = vmul.f32 1.0, %v3572
      %v3574 = vrcp.pop %v3534
      %v3575 = vmul.f32 1.0, %v3574
      %v3576 = vrcp.pop %v3535
      %v3577 = vmul.f32 1.0, %v3576
      %v3578 = vrcp.pop %v3536
      %v3579 = vmul.f32 1.0, %v3578
      %v3580 = vrcp.pop %v3537
      %v3581 = vmul.f32 1.0, %v3580
      %v3582 = vrcp.pop %v3538
      %v3583 = vmul.f32 1.0, %v3582
      %v3584 = vrcp.pop %v3539
      %v3585 = vmul.f32 1.0, %v3584
      %v3586 = vrcp.pop %v3540
      %v3587 = vmul.f32 1.0, %v3586
      %v3588 = vrcp.pop %v3541
      %v3589 = vmul.f32 1.0, %v3588
      %v3590 = vrcp.pop %v3542
      %v3591 = vmul.f32 1.0, %v3590
      %v3592 = vrcp.pop %v3543
      %v3593 = vmul.f32 1.0, %v3592
      %v3594 = vrcp.pop %v3544
      %v3595 = vmul.f32 1.0, %v3594
      %v3596 = vrcp.pop %v3545
      %v3597 = vmul.f32 1.0, %v3596
      %v3598 = vrcp.pop %v3546
      %v3599 = vmul.f32 1.0, %v3598
      %v3600 = vrcp.pop %v3547
      %v3601 = vmul.f32 1.0, %v3600
      %v3602 = vrcp.pop %v3548
      %v3603 = vmul.f32 1.0, %v3602
      %v3604 = vrcp.pop %v3549
      %v3605 = vmul.f32 1.0, %v3604
      %v3606 = vrcp.pop %v3550
      %v3607 = vmul.f32 1.0, %v3606
      %v3608 = vrcp.pop %v3551
      %v3609 = vmul.f32 1.0, %v3608
      %v3610 = vrcp.pop %v3552
      %v3611 = vmul.f32 1.0, %v3610
      %v3612 = vrcp.pop %v3553
      %v3613 = vmul.f32 1.0, %v3612
      %v3614 = vrcp.pop %v3554
      %v3615 = vmul.f32 1.0, %v3614
      %v3616 = vrcp.pop %v3555
      %v3617 = vmul.f32 1.0, %v3616
      %v3618 = vrcp.pop %v3556
      %v3619 = vmul.f32 1.0, %v3618
      %v3620 = vrcp.pop %v3557
      %v3621 = vmul.f32 1.0, %v3620
      %v3622 = vsel %vm3429, %v3559, %v3301
      %v3623 = vsel %vm3429, %v3561, %v3304
      %v3624 = vsel %vm3429, %v3563, %v3309
      %v3625 = vsel %vm3429, %v3565, %v3312
      %v3626 = vsel %vm3429, %v3567, %v3317
      %v3627 = vsel %vm3429, %v3569, %v3320
      %v3628 = vsel %vm3429, %v3571, %v3325
      %v3629 = vsel %vm3429, %v3573, %v3328
      %v3630 = vsel %vm3429, %v3575, %v3333
      %v3631 = vsel %vm3429, %v3577, %v3336
      %v3632 = vsel %vm3429, %v3579, %v3341
      %v3633 = vsel %vm3429, %v3581, %v3344
      %v3634 = vsel %vm3429, %v3583, %v3349
      %v3635 = vsel %vm3429, %v3585, %v3352
      %v3636 = vsel %vm3429, %v3587, %v3357
      %v3637 = vsel %vm3429, %v3589, %v3360
      %v3638 = vsel %vm3429, %v3591, %v3365
      %v3639 = vsel %vm3429, %v3593, %v3368
      %v3640 = vsel %vm3429, %v3595, %v3373
      %v3641 = vsel %vm3429, %v3597, %v3376
      %v3642 = vsel %vm3429, %v3599, %v3381
      %v3643 = vsel %vm3429, %v3601, %v3384
      %v3644 = vsel %vm3429, %v3603, %v3389
      %v3645 = vsel %vm3429, %v3605, %v3392
      %v3646 = vsel %vm3429, %v3607, %v3397
      %v3647 = vsel %vm3429, %v3609, %v3400
      %v3648 = vsel %vm3429, %v3611, %v3405
      %v3649 = vsel %vm3429, %v3613, %v3408
      %v3650 = vsel %vm3429, %v3615, %v3413
      %v3651 = vsel %vm3429, %v3617, %v3416
      %v3652 = vsel %vm3429, %v3619, %v3421
      %v3653 = vsel %vm3429, %v3621, %v3424
      %vm3654 = vcmask 64512
      %3655 = vst.msk [vmem:[%s246] sm:$0xff] %vm3654, %v3622
      %3656 = vst.msk [vmem:[%s246 + $0x8] sm:$0xff] %vm3654, %v3623
      %3657 = vst.msk [vmem:[%s246 + $0x10] sm:$0xff] %vm3654, %v3624
      %3658 = vst.msk [vmem:[%s246 + $0x18] sm:$0xff] %vm3654, %v3625
      %3659 = vst.msk [vmem:[%s246 + $0x20] sm:$0xff] %vm3654, %v3626
      %3660 = vst.msk [vmem:[%s246 + $0x28] sm:$0xff] %vm3654, %v3627
      %3661 = vst.msk [vmem:[%s246 + $0x30] sm:$0xff] %vm3654, %v3628
      %3662 = vst.msk [vmem:[%s246 + $0x38] sm:$0xff] %vm3654, %v3629
      %3663 = vst.msk [vmem:[%s246 + $0x40] sm:$0xff] %vm3654, %v3630
      %3664 = vst.msk [vmem:[%s246 + $0x48] sm:$0xff] %vm3654, %v3631
      %3665 = vst.msk [vmem:[%s246 + $0x50] sm:$0xff] %vm3654, %v3632
      %3666 = vst.msk [vmem:[%s246 + $0x58] sm:$0xff] %vm3654, %v3633
      %3667 = vst.msk [vmem:[%s246 + $0x60] sm:$0xff] %vm3654, %v3634
      %3668 = vst.msk [vmem:[%s246 + $0x68] sm:$0xff] %vm3654, %v3635
      %3669 = vst.msk [vmem:[%s246 + $0x70] sm:$0xff] %vm3654, %v3636
      %3670 = vst.msk [vmem:[%s246 + $0x78] sm:$0xff] %vm3654, %v3637
      %3671 = vst.msk [vmem:[%s246 + $0x80] sm:$0xff] %vm3654, %v3638
      %3672 = vst.msk [vmem:[%s246 + $0x88] sm:$0xff] %vm3654, %v3639
      %3673 = vst.msk [vmem:[%s246 + $0x90] sm:$0xff] %vm3654, %v3640
      %3674 = vst.msk [vmem:[%s246 + $0x98] sm:$0xff] %vm3654, %v3641
      %3675 = vst.msk [vmem:[%s246 + $0xa0] sm:$0xff] %vm3654, %v3642
      %3676 = vst.msk [vmem:[%s246 + $0xa8] sm:$0xff] %vm3654, %v3643
      %3677 = vst.msk [vmem:[%s246 + $0xb0] sm:$0xff] %vm3654, %v3644
      %3678 = vst.msk [vmem:[%s246 + $0xb8] sm:$0xff] %vm3654, %v3645
      %3679 = vst.msk [vmem:[%s246 + $0xc0] sm:$0xff] %vm3654, %v3646
      %3680 = vst.msk [vmem:[%s246 + $0xc8] sm:$0xff] %vm3654, %v3647
      %3681 = vst.msk [vmem:[%s246 + $0xd0] sm:$0xff] %vm3654, %v3648
      %3682 = vst.msk [vmem:[%s246 + $0xd8] sm:$0xff] %vm3654, %v3649
      %3683 = vst.msk [vmem:[%s246 + $0xe0] sm:$0xff] %vm3654, %v3650
      %3684 = vst.msk [vmem:[%s246 + $0xe8] sm:$0xff] %vm3654, %v3651
      %3685 = vst.msk [vmem:[%s246 + $0xf0] sm:$0xff] %vm3654, %v3652
      %3686 = vst.msk [vmem:[%s246 + $0xf8] sm:$0xff] %vm3654, %v3653
      %s3687 = smul.u32 32, %s21
      %p3688 = scmp.lt.s32.totalorder %s20, 1
      %s3689 = scalar_select %p3688, %s20, 1
      %p3690 = scmp.lt.s32.totalorder %s3687, 31
      %s3691 = scalar_select %p3690, %s3687, 31
      %s3692 = smul.addr %s3689, 32
      %s3693 = sadd.s32 %s3691, %s3692
      %s3694 = smul.addr %s3693, 8
      %s3695 = scalar_lea.vmem %s5, %s3694
      // Predicated region
      $region41: #{centernet_head_forward.1} parent=39 // pred_check
        %p3696 = pneg %p158
      $region42: #{centernet_head_forward.1} parent=39 // pred_check_branch
        %3698 = sbr.rel (%p3696) target = $region44
      $region43: #{centernet_head_forward.1} parent=39 // pred_region
        %s3699 = smul.u32 32, %s21
      $region44: #{centernet_head_forward.1} parent=39 // pred_fallthru
        _
    $region40: #{centernet_head_forward.1} parent=5 // pred_fallthru
      _
    %p3700 = scmp.le.s32.totalorder 2, %s11
    // Predicated region
    $region45: #{centernet_head_forward.1} parent=5 // pred_check
      %p3701 = pneg %p3700
    $region46: #{centernet_head_forward.1} parent=5 // pred_check_branch
      %3703 = sbr.rel (%p3701) target = $region48
    $region47: #{centernet_head_forward.1} parent=5 // pred_region
      %s3704 = ssub.s32 %s11, 2
      // Predicated region
      $region49: #{centernet_head_forward.1} parent=47 // pred_check
        %p3705 = pneg %p164
      $region50: #{centernet_head_forward.1} parent=47 // pred_check_branch
        %3707 = sbr.rel (%p3705) target = $region52
      $region51: #{centernet_head_forward.1} parent=47 // pred_region
        %s3708 = smul.u32 32, %s23
        %p3709 = scmp.lt.s32.totalorder %s22, 1
        %s3710 = scalar_select %p3709, %s22, 1
        %p3711 = scmp.lt.s32.totalorder %s3708, 31
        %s3712 = scalar_select %p3711, %s3708, 31
        %s3713 = smul.addr %s3710, 32
        %s3714 = sadd.s32 %s3712, %s3713
        %s3715 = smul.addr %s3714, 8
        %s3716 = scalar_lea.vmem %s5, %s3715
      $region52: #{centernet_head_forward.1} parent=47 // pred_fallthru
        _
    $region48: #{centernet_head_forward.1} parent=5 // pred_fallthru
      _
  $region6: #{centernet_head_forward.1} parent=0 // loop_footer
    %s15 = sadd.s32 1, %s11
  $region7: #{centernet_head_forward.1} parent=0 // loop_footer_branch
    %10 = sbr.rel target = $region3
  $region8: #{centernet_head_forward.1} parent=0 // loop_exit
    _

</llo_original>
